<compile_context>
chip_gen: v5e
topology: v5e:2x2
jax: 0.10.0
libtpu: 0.0.40
codegen_flags: <defaults>
</compile_context>

<pallas_src>
import math
import functools

import jax
import jax.numpy as jnp
from jax import lax
from jax.experimental import pallas as pl
from jax.experimental.pallas import tpu as pltpu


def _layer_norm(x, g, b, eps):
    mu = jnp.mean(x, axis=-1, keepdims=True)
    var = jnp.mean((x - mu) ** 2, axis=-1, keepdims=True)
    return (x - mu) * lax.rsqrt(var + eps) * g + b


def _encoder_layer_kernel(
    x_ref, bias_ref, npm_ref,
    ln1g_ref, ln1b_ref,
    wq_ref, bq_ref, wk_ref, bk_ref, wv_ref, bv_ref, wo_ref, bo_ref,
    ln2g_ref, ln2b_ref, w1_ref, b1_ref, w2_ref, b2_ref,
    out_ref, attn_ref,
    k_scr, v_scr, o_scr,
    *, n_head, d_k, d_v, tq, ffn_chunk, ln_eps,
):
    cdt = wq_ref.dtype                       # MXU compute dtype (bf16)
    t = pl.program_id(1)

    ln1g = ln1g_ref[0]
    ln1b = ln1b_ref[0]

    # ---- K/V for the FULL sequence: computed once per batch (t == 0) into
    #      persistent bf16 VMEM scratch, reused across all query tiles. ----
    @pl.when(t == 0)
    def _():
        x_full = x_ref[0]                                            # [L, D] f32
        xn_kv = _layer_norm(x_full, ln1g, ln1b, ln_eps).astype(cdt)
        k_scr[...] = (jnp.dot(xn_kv, wk_ref[...],
                              preferred_element_type=jnp.float32)
                      + bk_ref[0]).astype(cdt)
        v_scr[...] = (jnp.dot(xn_kv, wv_ref[...],
                              preferred_element_type=jnp.float32)
                      + bv_ref[0]).astype(cdt)

    # ---- Query rows of this tile, sliced from the resident full-seq block. ----
    q0 = pl.multiple_of(t * tq, tq)
    x_q = x_ref[0, pl.ds(q0, tq), :]                                 # [TQ, D] f32
    bias = bias_ref[0]                                               # [TQ, L] f32
    npm = npm_ref[0]                                                 # [TQ, 1] f32

    xn_q = _layer_norm(x_q, ln1g, ln1b, ln_eps).astype(cdt)
    # 1/sqrt(d_k) folded into q (one multiply over [TQ, H*d_k], not per head).
    q_all = ((jnp.dot(xn_q, wq_ref[...], preferred_element_type=jnp.float32)
              + bq_ref[0]) * (1.0 / math.sqrt(d_k))).astype(cdt)     # [TQ, H*d_k]

    for h in range(n_head):                                          # static unroll
        qh = q_all[:, h * d_k:(h + 1) * d_k]                         # [TQ, d_k] bf16
        kh = k_scr[:, h * d_k:(h + 1) * d_k]                         # [L,  d_k] bf16
        vh = v_scr[:, h * d_v:(h + 1) * d_v]                         # [L,  d_v] bf16

        # Q·K^T without an explicit transpose: contract last dims of both.
        s = lax.dot_general(qh, kh, (((1,), (1,)), ((), ())),
                            preferred_element_type=jnp.float32) + bias  # [TQ, L]

        # Softmax (f32); denominator on the EUP via approx reciprocal.
        m = jnp.max(s, axis=-1, keepdims=True)
        p = jnp.exp(s - m)
        l = jnp.sum(p, axis=-1, keepdims=True)
        a = p * pl.reciprocal(l, approx=True)                        # [TQ, L] f32
        attn_ref[0, h] = a.astype(attn_ref.dtype)                    # bf16 store

        # Per-head context packed into a bf16 [TQ, H*d_v] scratch.
        o_scr[:, h * d_v:(h + 1) * d_v] = jnp.dot(
            a.astype(cdt), vh, preferred_element_type=jnp.float32).astype(cdt)

    # Single fused output projection (contraction = n_head*d_v) + residual.
    attn_out = (jnp.dot(o_scr[...], wo_ref[...],
                        preferred_element_type=jnp.float32)
                + bo_ref[0] + x_q)
    # TODO(synk): dropout omitted (deterministic / eval mode).
    attn_out = attn_out * npm

    # ---- Position-wise FFN (pre-norm), chunked over d_inner to bound the
    #      live ReLU intermediate. ----
    yn = _layer_norm(attn_out, ln2g_ref[0], ln2b_ref[0], ln_eps).astype(cdt)
    b1 = b1_ref[0]
    d_inner = w1_ref.shape[1]
    acc = attn_out + b2_ref[0]                                       # residual + b2
    for c0 in range(0, d_inner, ffn_chunk):                          # static unroll
        c1 = min(d_inner, c0 + ffn_chunk)
        h1 = jnp.maximum(
            jnp.dot(yn, w1_ref[:, c0:c1], preferred_element_type=jnp.float32)
            + b1[c0:c1], 0.0)
        acc = acc + jnp.dot(h1.astype(cdt), w2_ref[c0:c1, :],
                            preferred_element_type=jnp.float32)

    out_ref[0] = (acc * npm).astype(out_ref.dtype)


def _vmem_limit_bytes():
    """~100 MiB on v5e/v6e (128 MiB physical), ~56 MiB on v7x (64 MiB physical)."""
    try:
        cap = int(pltpu.get_tpu_info().vmem_capacity_bytes)
        return min(100 * 1024 * 1024, (cap * 7) // 8)
    except Exception:
        return None


def _default_tq_target():
    """Query-tile target: 128 on v7x (64 MiB VMEM), 256 on v5e/v6e (128 MiB)."""
    try:
        cap = int(pltpu.get_tpu_info().vmem_capacity_bytes)
        return 128 if cap <= (64 << 20) else 256
    except Exception:
        return 128


def _pick_tq(L, target):
    """Largest divisor of L that is <= target and a multiple of 8; only if no
    such divisor exists fall back to L (block == full dim is also legal)."""
    best = None
    for cand in range(8, min(target, L) + 1, 8):
        if L % cand == 0:
            best = cand
    return best if best is not None else L


def encoder_layer(enc_input, similarity, non_pad_mask, slf_attn_mask, params,
                  *, n_head, d_k, d_v, tq=None, ffn_chunk=512,
                  compute_dtype=jnp.bfloat16, attn_dtype=jnp.bfloat16,
                  ln_eps=1e-5):
    # TODO(synk): ln_eps=1e-5 matches the PyTorch nn.LayerNorm default; adjust if
    # the reference module passes a different eps.
    B, L, D = enc_input.shape

    tq = _pick_tq(L, tq if tq is not None else _default_tq_target())
    n_qt = L // tq

    f32 = jnp.float32
    cdt = compute_dtype

    enc_input = enc_input.astype(f32)
    non_pad_mask = non_pad_mask.astype(f32)
    # Additive logit bias (similarity with padded keys pushed to -1e9) is
    # precomputed once in the wrapper: one [B, L, L] side input instead of two.
    bias = jnp.where(slf_attn_mask.astype(f32) > 0.5,
                     jnp.float32(-1e9), similarity.astype(f32))

    # Matmul weights in bf16 (halves weight DMA + VMEM); biases / LN params in f32.
    cast = {"wq": cdt, "wk": cdt, "wv": cdt, "wo": cdt, "w1": cdt, "w2": cdt}
    weight_order = ["ln1_g", "ln1_b", "wq", "bq", "wk", "bk", "wv", "bv",
                    "wo", "bo", "ln2_g", "ln2_b", "w1", "b1", "w2", "b2"]
    weights = [params[name].astype(cast.get(name, f32)) for name in weight_order]

    kernel = functools.partial(
        _encoder_layer_kernel, n_head=n_head, d_k=d_k, d_v=d_v,
        tq=tq, ffn_chunk=ffn_chunk, ln_eps=ln_eps)

    out_shape = (
        jax.ShapeDtypeStruct((B, L, D), f32),
        jax.ShapeDtypeStruct((B, n_head, L, L), attn_dtype),
    )

    def make_call(single_buffer_weights):
        def shared_spec(shape):
            nd = len(shape)
            idx = lambda b, t, nd=nd: (0,) * nd
            if single_buffer_weights:
                # Constant-index weights: no need for a second (double) buffer.
                return pl.BlockSpec(shape, idx, pipeline_mode=pl.Buffered(1))
            return pl.BlockSpec(shape, idx)

        in_specs = [
            pl.BlockSpec((1, L, D), lambda b, t: (b, 0, 0)),    # enc_input (full seq)
            pl.BlockSpec((1, tq, L), lambda b, t: (b, t, 0)),   # logit bias (sim+mask)
            pl.BlockSpec((1, tq, 1), lambda b, t: (b, t, 0)),   # non_pad_mask
        ] + [shared_spec(w.shape) for w in weights]

        out_specs = [
            pl.BlockSpec((1, tq, D), lambda b, t: (b, t, 0)),
            pl.BlockSpec((1, n_head, tq, L), lambda b, t: (b, 0, t, 0)),
        ]

        return pl.pallas_call(
            kernel,
            out_shape=out_shape,
            grid_spec=pltpu.PrefetchScalarGridSpec(
                num_scalar_prefetch=0,
                grid=(B, n_qt),
                in_specs=in_specs,
                out_specs=out_specs,
                scratch_shapes=[
                    pltpu.VMEM((L, n_head * d_k), cdt),    # K, all heads (per batch)
                    pltpu.VMEM((L, n_head * d_v), cdt),    # V, all heads (per batch)
                    pltpu.VMEM((tq, n_head * d_v), cdt),   # packed per-head context
                ]),
            compiler_params=pltpu.CompilerParams(
                dimension_semantics=("parallel", "arbitrary"),
                vmem_limit_bytes=_vmem_limit_bytes()),
        )

    args = (enc_input, bias, non_pad_mask, *weights)
    try:
        return make_call(True)(*args)
    except Exception:
        # pl.Buffered(1) unsupported on this jax/libtpu -> default buffering.
        return make_call(False)(*args)


def init_params(key, d_model, d_inner, n_head, d_k, d_v):
    ks = jax.random.split(key, 8)
    s = 0.02
    return {
        "ln1_g": jnp.ones((1, d_model), jnp.float32),
        "ln1_b": jnp.zeros((1, d_model), jnp.float32),
        "wq": s * jax.random.normal(ks[0], (d_model, n_head * d_k), jnp.float32),
        "bq": jnp.zeros((1, n_head * d_k), jnp.float32),
        "wk": s * jax.random.normal(ks[1], (d_model, n_head * d_k), jnp.float32),
        "bk": jnp.zeros((1, n_head * d_k), jnp.float32),
        "wv": s * jax.random.normal(ks[2], (d_model, n_head * d_v), jnp.float32),
        "bv": jnp.zeros((1, n_head * d_v), jnp.float32),
        "wo": s * jax.random.normal(ks[3], (n_head * d_v, d_model), jnp.float32),
        "bo": jnp.zeros((1, d_model), jnp.float32),
        "ln2_g": jnp.ones((1, d_model), jnp.float32),
        "ln2_b": jnp.zeros((1, d_model), jnp.float32),
        "w1": s * jax.random.normal(ks[4], (d_model, d_inner), jnp.float32),
        "b1": jnp.zeros((1, d_inner), jnp.float32),
        "w2": s * jax.random.normal(ks[5], (d_inner, d_model), jnp.float32),
        "b2": jnp.zeros((1, d_model), jnp.float32),
    }


if __name__ == "__main__":
    B, L = 2, 8
    d_model, d_inner = 32, 64
    n_head, d_k, d_v = 4, 8, 8

    key = jax.random.PRNGKey(0)
    k_x, k_sim, k_p = jax.random.split(key, 3)

    enc_input = jax.random.normal(k_x, (B, L, d_model), jnp.float32)
    similarity = 0.1 * jax.random.normal(k_sim, (B, L, L), jnp.float32)

    # batch 0: all 8 positions valid; batch 1: first 6 valid, last 2 padded
    valid_len = jnp.array([8, 6])
    pos = jnp.arange(L)
    non_pad = (pos[None, :] < valid_len[:, None]).astype(jnp.float32)   # [B, L]
    non_pad_mask = non_pad[:, :, None]                                  # [B, L, 1]
    # slf_attn_mask[b, i, j] = 1 where key j is padding
    slf_attn_mask = jnp.broadcast_to((1.0 - non_pad)[:, None, :], (B, L, L))

    params = init_params(k_p, d_model, d_inner, n_head, d_k, d_v)

    enc_output, enc_slf_attn = encoder_layer(
        enc_input, similarity, non_pad_mask, slf_attn_mask, params,
        n_head=n_head, d_k=d_k, d_v=d_v)

    jax.block_until_ready((enc_output, enc_slf_attn))
    assert enc_output.shape == (B, L, d_model)
    assert enc_slf_attn.shape == (B, n_head, L, L)
    print("KERNEL_OK")
</pallas_src>

<mosaic_0001>
module attributes {stable_mosaic.version = 11 : i64} {
  func.func @_encoder_layer_kernel(%arg0: i32, %arg1: i32, %arg2: memref<1x8x32xf32, #tpu.memory_space<vmem>>, %arg3: memref<1x8x8xf32, #tpu.memory_space<vmem>>, %arg4: memref<1x8x1xf32, #tpu.memory_space<vmem>>, %arg5: memref<1x32xf32, #tpu.memory_space<vmem>>, %arg6: memref<1x32xf32, #tpu.memory_space<vmem>>, %arg7: memref<32x32xbf16, #tpu.memory_space<vmem>>, %arg8: memref<1x32xf32, #tpu.memory_space<vmem>>, %arg9: memref<32x32xbf16, #tpu.memory_space<vmem>>, %arg10: memref<1x32xf32, #tpu.memory_space<vmem>>, %arg11: memref<32x32xbf16, #tpu.memory_space<vmem>>, %arg12: memref<1x32xf32, #tpu.memory_space<vmem>>, %arg13: memref<32x32xbf16, #tpu.memory_space<vmem>>, %arg14: memref<1x32xf32, #tpu.memory_space<vmem>>, %arg15: memref<1x32xf32, #tpu.memory_space<vmem>>, %arg16: memref<1x32xf32, #tpu.memory_space<vmem>>, %arg17: memref<32x64xbf16, #tpu.memory_space<vmem>>, %arg18: memref<1x64xf32, #tpu.memory_space<vmem>>, %arg19: memref<64x32xbf16, #tpu.memory_space<vmem>>, %arg20: memref<1x32xf32, #tpu.memory_space<vmem>>, %arg21: memref<1x8x32xf32, #tpu.memory_space<vmem>>, %arg22: memref<1x4x8x8xbf16, #tpu.memory_space<vmem>>, %arg23: memref<8x32xbf16, #tpu.memory_space<vmem>>, %arg24: memref<8x32xbf16, #tpu.memory_space<vmem>>, %arg25: memref<8x32xbf16, #tpu.memory_space<vmem>>) attributes {dimension_semantics = [#tpu.dimension_semantics<parallel>, #tpu.dimension_semantics<arbitrary>], iteration_bounds = array<i64: 2, 1>, scalar_prefetch = 0 : i64, scratch_operands = 3 : i64, tpu.core_type = #tpu.core_type<tc>, window_params = [{transform_indices = @transform_0, window_bounds = array<i64: 1, 8, 32>}, {transform_indices = @transform_1, window_bounds = array<i64: 1, 8, 8>}, {transform_indices = @transform_2, window_bounds = array<i64: 1, 8, 1>}, {pipeline_mode = #tpu.pipeline_mode<synchronous>, transform_indices = @transform_3, window_bounds = array<i64: 1, 32>}, {pipeline_mode = #tpu.pipeline_mode<synchronous>, transform_indices = @transform_4, window_bounds = array<i64: 1, 32>}, {pipeline_mode = #tpu.pipeline_mode<synchronous>, transform_indices = @transform_5, window_bounds = array<i64: 32, 32>}, {pipeline_mode = #tpu.pipeline_mode<synchronous>, transform_indices = @transform_6, window_bounds = array<i64: 1, 32>}, {pipeline_mode = #tpu.pipeline_mode<synchronous>, transform_indices = @transform_7, window_bounds = array<i64: 32, 32>}, {pipeline_mode = #tpu.pipeline_mode<synchronous>, transform_indices = @transform_8, window_bounds = array<i64: 1, 32>}, {pipeline_mode = #tpu.pipeline_mode<synchronous>, transform_indices = @transform_9, window_bounds = array<i64: 32, 32>}, {pipeline_mode = #tpu.pipeline_mode<synchronous>, transform_indices = @transform_10, window_bounds = array<i64: 1, 32>}, {pipeline_mode = #tpu.pipeline_mode<synchronous>, transform_indices = @transform_11, window_bounds = array<i64: 32, 32>}, {pipeline_mode = #tpu.pipeline_mode<synchronous>, transform_indices = @transform_12, window_bounds = array<i64: 1, 32>}, {pipeline_mode = #tpu.pipeline_mode<synchronous>, transform_indices = @transform_13, window_bounds = array<i64: 1, 32>}, {pipeline_mode = #tpu.pipeline_mode<synchronous>, transform_indices = @transform_14, window_bounds = array<i64: 1, 32>}, {pipeline_mode = #tpu.pipeline_mode<synchronous>, transform_indices = @transform_15, window_bounds = array<i64: 32, 64>}, {pipeline_mode = #tpu.pipeline_mode<synchronous>, transform_indices = @transform_16, window_bounds = array<i64: 1, 64>}, {pipeline_mode = #tpu.pipeline_mode<synchronous>, transform_indices = @transform_17, window_bounds = array<i64: 64, 32>}, {pipeline_mode = #tpu.pipeline_mode<synchronous>, transform_indices = @transform_18, window_bounds = array<i64: 1, 32>}, {transform_indices = @transform_19, window_bounds = array<i64: 1, 8, 32>}, {transform_indices = @transform_20, window_bounds = array<i64: 1, 4, 8, 8>}]} {
    %c0 = arith.constant 0 : index
    %c0_0 = arith.constant 0 : index
    %0 = vector.load %arg5[%c0, %c0_0] : memref<1x32xf32, #tpu.memory_space<vmem>>, vector<1x32xf32>
    %1 = vector.shape_cast %0 : vector<1x32xf32> to vector<32xf32>
    %c0_1 = arith.constant 0 : index
    %c0_2 = arith.constant 0 : index
    %2 = vector.load %arg6[%c0_1, %c0_2] : memref<1x32xf32, #tpu.memory_space<vmem>>, vector<1x32xf32>
    %3 = vector.shape_cast %2 : vector<1x32xf32> to vector<32xf32>
    %c0_i32 = arith.constant 0 : i32
    %4 = arith.cmpi eq, %arg1, %c0_i32 : i32
    %5 = arith.extui %4 : i1 to i32
    %c0_i32_3 = arith.constant 0 : i32
    %6 = arith.cmpi ne, %5, %c0_i32_3 : i32
    scf.if %6 {
      %c0_102 = arith.constant 0 : index
      %c0_103 = arith.constant 0 : index
      %c0_104 = arith.constant 0 : index
      %206 = vector.load %arg2[%c0_102, %c0_103, %c0_104] : memref<1x8x32xf32, #tpu.memory_space<vmem>>, vector<1x8x32xf32>
      %207 = vector.shape_cast %206 : vector<1x8x32xf32> to vector<8x32xf32>
      %cst_105 = arith.constant dense<0.000000e+00> : vector<8xf32>
      %208 = vector.multi_reduction <add>, %207, %cst_105 [1] : vector<8x32xf32> to vector<8xf32>
      %209 = vector.shape_cast %208 : vector<8xf32> to vector<8x1xf32>
      %cst_106 = arith.constant 3.200000e+01 : f32
      %210 = vector.broadcast %cst_106 : f32 to vector<8x1xf32>
      %211 = arith.divf %209, %210 : vector<8x1xf32>
      %212 = vector.broadcast %211 : vector<8x1xf32> to vector<8x32xf32>
      %213 = arith.subf %207, %212 : vector<8x32xf32>
      %214 = arith.mulf %213, %213 : vector<8x32xf32>
      %cst_107 = arith.constant dense<0.000000e+00> : vector<8xf32>
      %215 = vector.multi_reduction <add>, %214, %cst_107 [1] : vector<8x32xf32> to vector<8xf32>
      %216 = vector.shape_cast %215 : vector<8xf32> to vector<8x1xf32>
      %cst_108 = arith.constant 3.200000e+01 : f32
      %217 = vector.broadcast %cst_108 : f32 to vector<8x1xf32>
      %218 = arith.divf %216, %217 : vector<8x1xf32>
      %219 = vector.broadcast %211 : vector<8x1xf32> to vector<8x32xf32>
      %220 = arith.subf %207, %219 : vector<8x32xf32>
      %cst_109 = arith.constant 9.99999974E-6 : f32
      %221 = vector.broadcast %cst_109 : f32 to vector<8x1xf32>
      %222 = arith.addf %218, %221 : vector<8x1xf32>
      %223 = math.rsqrt %222 : vector<8x1xf32>
      %224 = vector.broadcast %223 : vector<8x1xf32> to vector<8x32xf32>
      %225 = arith.mulf %220, %224 : vector<8x32xf32>
      %226 = vector.shape_cast %1 : vector<32xf32> to vector<1x32xf32>
      %227 = vector.broadcast %226 : vector<1x32xf32> to vector<8x32xf32>
      %228 = arith.mulf %225, %227 : vector<8x32xf32>
      %229 = vector.shape_cast %3 : vector<32xf32> to vector<1x32xf32>
      %230 = vector.broadcast %229 : vector<1x32xf32> to vector<8x32xf32>
      %231 = arith.addf %228, %230 : vector<8x32xf32>
      %232 = arith.truncf %231 : vector<8x32xf32> to vector<8x32xbf16>
      %c0_110 = arith.constant 0 : index
      %c0_111 = arith.constant 0 : index
      %233 = vector.load %arg9[%c0_110, %c0_111] : memref<32x32xbf16, #tpu.memory_space<vmem>>, vector<32x32xbf16>
      %cst_112 = arith.constant dense<0.000000e+00> : vector<8x32xf32>
      %234 = tpu.matmul %232, %233, %cst_112 {dimension_numbers = #tpu.dot_dimension_numbers<[1], [0], [0], [1], [0, 0, 1, 1], [], []>} : vector<8x32xbf16>, vector<32x32xbf16>, vector<8x32xf32> -> vector<8x32xf32>
      %c0_113 = arith.constant 0 : index
      %c0_114 = arith.constant 0 : index
      %235 = vector.load %arg10[%c0_113, %c0_114] : memref<1x32xf32, #tpu.memory_space<vmem>>, vector<1x32xf32>
      %236 = vector.shape_cast %235 : vector<1x32xf32> to vector<32xf32>
      %237 = vector.shape_cast %236 : vector<32xf32> to vector<1x32xf32>
      %238 = vector.broadcast %237 : vector<1x32xf32> to vector<8x32xf32>
      %239 = arith.addf %234, %238 : vector<8x32xf32>
      %240 = arith.truncf %239 : vector<8x32xf32> to vector<8x32xbf16>
      %c0_115 = arith.constant 0 : index
      %c0_116 = arith.constant 0 : index
      %241 = vector.load %arg23[%c0_115, %c0_116] : memref<8x32xbf16, #tpu.memory_space<vmem>>, vector<8x32xbf16>
      tpu.vector_store %arg23[%c0_115, %c0_116], %240 {strides = array<i32>} : memref<8x32xbf16, #tpu.memory_space<vmem>>, vector<8x32xbf16>,
      %c0_117 = arith.constant 0 : index
      %c0_118 = arith.constant 0 : index
      %242 = vector.load %arg11[%c0_117, %c0_118] : memref<32x32xbf16, #tpu.memory_space<vmem>>, vector<32x32xbf16>
      %cst_119 = arith.constant dense<0.000000e+00> : vector<8x32xf32>
      %243 = tpu.matmul %232, %242, %cst_119 {dimension_numbers = #tpu.dot_dimension_numbers<[1], [0], [0], [1], [0, 0, 1, 1], [], []>} : vector<8x32xbf16>, vector<32x32xbf16>, vector<8x32xf32> -> vector<8x32xf32>
      %c0_120 = arith.constant 0 : index
      %c0_121 = arith.constant 0 : index
      %244 = vector.load %arg12[%c0_120, %c0_121] : memref<1x32xf32, #tpu.memory_space<vmem>>, vector<1x32xf32>
      %245 = vector.shape_cast %244 : vector<1x32xf32> to vector<32xf32>
      %246 = vector.shape_cast %245 : vector<32xf32> to vector<1x32xf32>
      %247 = vector.broadcast %246 : vector<1x32xf32> to vector<8x32xf32>
      %248 = arith.addf %243, %247 : vector<8x32xf32>
      %249 = arith.truncf %248 : vector<8x32xf32> to vector<8x32xbf16>
      %c0_122 = arith.constant 0 : index
      %c0_123 = arith.constant 0 : index
      %250 = vector.load %arg24[%c0_122, %c0_123] : memref<8x32xbf16, #tpu.memory_space<vmem>>, vector<8x32xbf16>
      tpu.vector_store %arg24[%c0_122, %c0_123], %249 {strides = array<i32>} : memref<8x32xbf16, #tpu.memory_space<vmem>>, vector<8x32xbf16>,
    } else {
    }
    %c8_i32 = arith.constant 8 : i32
    %7 = arith.muli %arg1, %c8_i32 : i32
    %8 = tpu.assume_multiple %7, 8 : i32
    %c0_4 = arith.constant 0 : index
    %9 = arith.index_cast %8 : i32 to index
    %c0_5 = arith.constant 0 : index
    %10 = vector.load %arg2[%c0_4, %9, %c0_5] : memref<1x8x32xf32, #tpu.memory_space<vmem>>, vector<1x8x32xf32>
    %11 = vector.shape_cast %10 : vector<1x8x32xf32> to vector<8x32xf32>
    %c0_6 = arith.constant 0 : index
    %c0_7 = arith.constant 0 : index
    %c0_8 = arith.constant 0 : index
    %12 = vector.load %arg3[%c0_6, %c0_7, %c0_8] : memref<1x8x8xf32, #tpu.memory_space<vmem>>, vector<1x8x8xf32>
    %13 = vector.shape_cast %12 : vector<1x8x8xf32> to vector<8x8xf32>
    %c0_9 = arith.constant 0 : index
    %c0_10 = arith.constant 0 : index
    %c0_11 = arith.constant 0 : index
    %14 = vector.load %arg4[%c0_9, %c0_10, %c0_11] : memref<1x8x1xf32, #tpu.memory_space<vmem>>, vector<1x8x1xf32>
    %15 = vector.shape_cast %14 : vector<1x8x1xf32> to vector<8x1xf32>
    %cst = arith.constant dense<0.000000e+00> : vector<8xf32>
    %16 = vector.multi_reduction <add>, %11, %cst [1] : vector<8x32xf32> to vector<8xf32>
    %17 = vector.shape_cast %16 : vector<8xf32> to vector<8x1xf32>
    %cst_12 = arith.constant 3.200000e+01 : f32
    %18 = vector.broadcast %cst_12 : f32 to vector<8x1xf32>
    %19 = arith.divf %17, %18 : vector<8x1xf32>
    %20 = vector.broadcast %19 : vector<8x1xf32> to vector<8x32xf32>
    %21 = arith.subf %11, %20 : vector<8x32xf32>
    %22 = arith.mulf %21, %21 : vector<8x32xf32>
    %cst_13 = arith.constant dense<0.000000e+00> : vector<8xf32>
    %23 = vector.multi_reduction <add>, %22, %cst_13 [1] : vector<8x32xf32> to vector<8xf32>
    %24 = vector.shape_cast %23 : vector<8xf32> to vector<8x1xf32>
    %cst_14 = arith.constant 3.200000e+01 : f32
    %25 = vector.broadcast %cst_14 : f32 to vector<8x1xf32>
    %26 = arith.divf %24, %25 : vector<8x1xf32>
    %27 = vector.broadcast %19 : vector<8x1xf32> to vector<8x32xf32>
    %28 = arith.subf %11, %27 : vector<8x32xf32>
    %cst_15 = arith.constant 9.99999974E-6 : f32
    %29 = vector.broadcast %cst_15 : f32 to vector<8x1xf32>
    %30 = arith.addf %26, %29 : vector<8x1xf32>
    %31 = math.rsqrt %30 : vector<8x1xf32>
    %32 = vector.broadcast %31 : vector<8x1xf32> to vector<8x32xf32>
    %33 = arith.mulf %28, %32 : vector<8x32xf32>
    %34 = vector.shape_cast %1 : vector<32xf32> to vector<1x32xf32>
    %35 = vector.broadcast %34 : vector<1x32xf32> to vector<8x32xf32>
    %36 = arith.mulf %33, %35 : vector<8x32xf32>
    %37 = vector.shape_cast %3 : vector<32xf32> to vector<1x32xf32>
    %38 = vector.broadcast %37 : vector<1x32xf32> to vector<8x32xf32>
    %39 = arith.addf %36, %38 : vector<8x32xf32>
    %40 = arith.truncf %39 : vector<8x32xf32> to vector<8x32xbf16>
    %c0_16 = arith.constant 0 : index
    %c0_17 = arith.constant 0 : index
    %41 = vector.load %arg7[%c0_16, %c0_17] : memref<32x32xbf16, #tpu.memory_space<vmem>>, vector<32x32xbf16>
    %cst_18 = arith.constant dense<0.000000e+00> : vector<8x32xf32>
    %42 = tpu.matmul %40, %41, %cst_18 {dimension_numbers = #tpu.dot_dimension_numbers<[1], [0], [0], [1], [0, 0, 1, 1], [], []>} : vector<8x32xbf16>, vector<32x32xbf16>, vector<8x32xf32> -> vector<8x32xf32>
    %c0_19 = arith.constant 0 : index
    %c0_20 = arith.constant 0 : index
    %43 = vector.load %arg8[%c0_19, %c0_20] : memref<1x32xf32, #tpu.memory_space<vmem>>, vector<1x32xf32>
    %44 = vector.shape_cast %43 : vector<1x32xf32> to vector<32xf32>
    %45 = vector.shape_cast %44 : vector<32xf32> to vector<1x32xf32>
    %46 = vector.broadcast %45 : vector<1x32xf32> to vector<8x32xf32>
    %47 = arith.addf %42, %46 : vector<8x32xf32>
    %cst_21 = arith.constant 0.353553385 : f32
    %48 = vector.broadcast %cst_21 : f32 to vector<8x32xf32>
    %49 = arith.mulf %47, %48 : vector<8x32xf32>
    %50 = arith.truncf %49 : vector<8x32xf32> to vector<8x32xbf16>
    %51 = vector.extract_strided_slice %50 {offsets = [0, 0], sizes = [8, 8], strides = [1, 1]} : vector<8x32xbf16> to vector<8x8xbf16>
    %c0_22 = arith.constant 0 : index
    %c0_23 = arith.constant 0 : index
    %52 = vector.load %arg23[%c0_22, %c0_23] : memref<8x32xbf16, #tpu.memory_space<vmem>>, vector<8x8xbf16>
    %c0_24 = arith.constant 0 : index
    %c0_25 = arith.constant 0 : index
    %53 = vector.load %arg24[%c0_24, %c0_25] : memref<8x32xbf16, #tpu.memory_space<vmem>>, vector<8x8xbf16>
    %cst_26 = arith.constant dense<0.000000e+00> : vector<8x8xf32>
    %54 = tpu.matmul %51, %52, %cst_26 {dimension_numbers = #tpu.dot_dimension_numbers<[1], [1], [0], [0], [0, 0, 1, 0], [], []>} : vector<8x8xbf16>, vector<8x8xbf16>, vector<8x8xf32> -> vector<8x8xf32>
    %55 = arith.addf %54, %13 : vector<8x8xf32>
    %cst_27 = arith.constant dense<0xFF800000> : vector<8xf32>
    %56 = vector.multi_reduction <maximumf>, %55, %cst_27 [1] : vector<8x8xf32> to vector<8xf32>
    %57 = vector.shape_cast %56 : vector<8xf32> to vector<8x1xf32>
    %58 = vector.broadcast %57 : vector<8x1xf32> to vector<8x8xf32>
    %59 = arith.subf %55, %58 : vector<8x8xf32>
    %60 = math.exp %59 : vector<8x8xf32>
    %cst_28 = arith.constant dense<0.000000e+00> : vector<8xf32>
    %61 = vector.multi_reduction <add>, %60, %cst_28 [1] : vector<8x8xf32> to vector<8xf32>
    %62 = vector.shape_cast %61 : vector<8xf32> to vector<8x1xf32>
    %63 = tpu.reciprocal %62 {approx = true} : vector<8x1xf32> -> vector<8x1xf32>
    %64 = vector.broadcast %63 : vector<8x1xf32> to vector<8x8xf32>
    %65 = arith.mulf %60, %64 : vector<8x8xf32>
    %66 = arith.truncf %65 : vector<8x8xf32> to vector<8x8xbf16>
    %c0_29 = arith.constant 0 : index
    %c0_30 = arith.constant 0 : index
    %c0_31 = arith.constant 0 : index
    %c0_32 = arith.constant 0 : index
    %67 = vector.load %arg22[%c0_29, %c0_30, %c0_31, %c0_32] : memref<1x4x8x8xbf16, #tpu.memory_space<vmem>>, vector<1x1x8x8xbf16>
    %68 = vector.shape_cast %67 : vector<1x1x8x8xbf16> to vector<8x8xbf16>
    %69 = vector.shape_cast %66 : vector<8x8xbf16> to vector<1x1x8x8xbf16>
    tpu.vector_store %arg22[%c0_29, %c0_30, %c0_31, %c0_32], %69 {strides = array<i32>} : memref<1x4x8x8xbf16, #tpu.memory_space<vmem>>, vector<1x1x8x8xbf16>,
    %70 = arith.truncf %65 : vector<8x8xf32> to vector<8x8xbf16>
    %cst_33 = arith.constant dense<0.000000e+00> : vector<8x8xf32>
    %71 = tpu.matmul %70, %53, %cst_33 {dimension_numbers = #tpu.dot_dimension_numbers<[1], [0], [0], [1], [0, 0, 1, 1], [], []>} : vector<8x8xbf16>, vector<8x8xbf16>, vector<8x8xf32> -> vector<8x8xf32>
    %72 = arith.truncf %71 : vector<8x8xf32> to vector<8x8xbf16>
    %c0_34 = arith.constant 0 : index
    %c0_35 = arith.constant 0 : index
    %73 = vector.load %arg25[%c0_34, %c0_35] : memref<8x32xbf16, #tpu.memory_space<vmem>>, vector<8x8xbf16>
    tpu.vector_store %arg25[%c0_34, %c0_35], %72 {strides = array<i32>} : memref<8x32xbf16, #tpu.memory_space<vmem>>, vector<8x8xbf16>,
    %74 = vector.extract_strided_slice %50 {offsets = [0, 8], sizes = [8, 8], strides = [1, 1]} : vector<8x32xbf16> to vector<8x8xbf16>
    %c0_36 = arith.constant 0 : index
    %c8 = arith.constant 8 : index
    %75 = vector.load %arg23[%c0_36, %c8] : memref<8x32xbf16, #tpu.memory_space<vmem>>, vector<8x8xbf16>
    %c0_37 = arith.constant 0 : index
    %c8_38 = arith.constant 8 : index
    %76 = vector.load %arg24[%c0_37, %c8_38] : memref<8x32xbf16, #tpu.memory_space<vmem>>, vector<8x8xbf16>
    %cst_39 = arith.constant dense<0.000000e+00> : vector<8x8xf32>
    %77 = tpu.matmul %74, %75, %cst_39 {dimension_numbers = #tpu.dot_dimension_numbers<[1], [1], [0], [0], [0, 0, 1, 0], [], []>} : vector<8x8xbf16>, vector<8x8xbf16>, vector<8x8xf32> -> vector<8x8xf32>
    %78 = arith.addf %77, %13 : vector<8x8xf32>
    %cst_40 = arith.constant dense<0xFF800000> : vector<8xf32>
    %79 = vector.multi_reduction <maximumf>, %78, %cst_40 [1] : vector<8x8xf32> to vector<8xf32>
    %80 = vector.shape_cast %79 : vector<8xf32> to vector<8x1xf32>
    %81 = vector.broadcast %80 : vector<8x1xf32> to vector<8x8xf32>
    %82 = arith.subf %78, %81 : vector<8x8xf32>
    %83 = math.exp %82 : vector<8x8xf32>
    %cst_41 = arith.constant dense<0.000000e+00> : vector<8xf32>
    %84 = vector.multi_reduction <add>, %83, %cst_41 [1] : vector<8x8xf32> to vector<8xf32>
    %85 = vector.shape_cast %84 : vector<8xf32> to vector<8x1xf32>
    %86 = tpu.reciprocal %85 {approx = true} : vector<8x1xf32> -> vector<8x1xf32>
    %87 = vector.broadcast %86 : vector<8x1xf32> to vector<8x8xf32>
    %88 = arith.mulf %83, %87 : vector<8x8xf32>
    %89 = arith.truncf %88 : vector<8x8xf32> to vector<8x8xbf16>
    %c0_42 = arith.constant 0 : index
    %c1 = arith.constant 1 : index
    %c0_43 = arith.constant 0 : index
    %c0_44 = arith.constant 0 : index
    %90 = vector.load %arg22[%c0_42, %c1, %c0_43, %c0_44] : memref<1x4x8x8xbf16, #tpu.memory_space<vmem>>, vector<1x1x8x8xbf16>
    %91 = vector.shape_cast %90 : vector<1x1x8x8xbf16> to vector<8x8xbf16>
    %92 = vector.shape_cast %89 : vector<8x8xbf16> to vector<1x1x8x8xbf16>
    tpu.vector_store %arg22[%c0_42, %c1, %c0_43, %c0_44], %92 {strides = array<i32>} : memref<1x4x8x8xbf16, #tpu.memory_space<vmem>>, vector<1x1x8x8xbf16>,
    %93 = arith.truncf %88 : vector<8x8xf32> to vector<8x8xbf16>
    %cst_45 = arith.constant dense<0.000000e+00> : vector<8x8xf32>
    %94 = tpu.matmul %93, %76, %cst_45 {dimension_numbers = #tpu.dot_dimension_numbers<[1], [0], [0], [1], [0, 0, 1, 1], [], []>} : vector<8x8xbf16>, vector<8x8xbf16>, vector<8x8xf32> -> vector<8x8xf32>
    %95 = arith.truncf %94 : vector<8x8xf32> to vector<8x8xbf16>
    %c0_46 = arith.constant 0 : index
    %c8_47 = arith.constant 8 : index
    %96 = vector.load %arg25[%c0_46, %c8_47] : memref<8x32xbf16, #tpu.memory_space<vmem>>, vector<8x8xbf16>
    tpu.vector_store %arg25[%c0_46, %c8_47], %95 {strides = array<i32>} : memref<8x32xbf16, #tpu.memory_space<vmem>>, vector<8x8xbf16>,
    %97 = vector.extract_strided_slice %50 {offsets = [0, 16], sizes = [8, 8], strides = [1, 1]} : vector<8x32xbf16> to vector<8x8xbf16>
    %c0_48 = arith.constant 0 : index
    %c16 = arith.constant 16 : index
    %98 = vector.load %arg23[%c0_48, %c16] : memref<8x32xbf16, #tpu.memory_space<vmem>>, vector<8x8xbf16>
    %c0_49 = arith.constant 0 : index
    %c16_50 = arith.constant 16 : index
    %99 = vector.load %arg24[%c0_49, %c16_50] : memref<8x32xbf16, #tpu.memory_space<vmem>>, vector<8x8xbf16>
    %cst_51 = arith.constant dense<0.000000e+00> : vector<8x8xf32>
    %100 = tpu.matmul %97, %98, %cst_51 {dimension_numbers = #tpu.dot_dimension_numbers<[1], [1], [0], [0], [0, 0, 1, 0], [], []>} : vector<8x8xbf16>, vector<8x8xbf16>, vector<8x8xf32> -> vector<8x8xf32>
    %101 = arith.addf %100, %13 : vector<8x8xf32>
    %cst_52 = arith.constant dense<0xFF800000> : vector<8xf32>
    %102 = vector.multi_reduction <maximumf>, %101, %cst_52 [1] : vector<8x8xf32> to vector<8xf32>
    %103 = vector.shape_cast %102 : vector<8xf32> to vector<8x1xf32>
    %104 = vector.broadcast %103 : vector<8x1xf32> to vector<8x8xf32>
    %105 = arith.subf %101, %104 : vector<8x8xf32>
    %106 = math.exp %105 : vector<8x8xf32>
    %cst_53 = arith.constant dense<0.000000e+00> : vector<8xf32>
    %107 = vector.multi_reduction <add>, %106, %cst_53 [1] : vector<8x8xf32> to vector<8xf32>
    %108 = vector.shape_cast %107 : vector<8xf32> to vector<8x1xf32>
    %109 = tpu.reciprocal %108 {approx = true} : vector<8x1xf32> -> vector<8x1xf32>
    %110 = vector.broadcast %109 : vector<8x1xf32> to vector<8x8xf32>
    %111 = arith.mulf %106, %110 : vector<8x8xf32>
    %112 = arith.truncf %111 : vector<8x8xf32> to vector<8x8xbf16>
    %c0_54 = arith.constant 0 : index
    %c2 = arith.constant 2 : index
    %c0_55 = arith.constant 0 : index
    %c0_56 = arith.constant 0 : index
    %113 = vector.load %arg22[%c0_54, %c2, %c0_55, %c0_56] : memref<1x4x8x8xbf16, #tpu.memory_space<vmem>>, vector<1x1x8x8xbf16>
    %114 = vector.shape_cast %113 : vector<1x1x8x8xbf16> to vector<8x8xbf16>
    %115 = vector.shape_cast %112 : vector<8x8xbf16> to vector<1x1x8x8xbf16>
    tpu.vector_store %arg22[%c0_54, %c2, %c0_55, %c0_56], %115 {strides = array<i32>} : memref<1x4x8x8xbf16, #tpu.memory_space<vmem>>, vector<1x1x8x8xbf16>,
    %116 = arith.truncf %111 : vector<8x8xf32> to vector<8x8xbf16>
    %cst_57 = arith.constant dense<0.000000e+00> : vector<8x8xf32>
    %117 = tpu.matmul %116, %99, %cst_57 {dimension_numbers = #tpu.dot_dimension_numbers<[1], [0], [0], [1], [0, 0, 1, 1], [], []>} : vector<8x8xbf16>, vector<8x8xbf16>, vector<8x8xf32> -> vector<8x8xf32>
    %118 = arith.truncf %117 : vector<8x8xf32> to vector<8x8xbf16>
    %c0_58 = arith.constant 0 : index
    %c16_59 = arith.constant 16 : index
    %119 = vector.load %arg25[%c0_58, %c16_59] : memref<8x32xbf16, #tpu.memory_space<vmem>>, vector<8x8xbf16>
    tpu.vector_store %arg25[%c0_58, %c16_59], %118 {strides = array<i32>} : memref<8x32xbf16, #tpu.memory_space<vmem>>, vector<8x8xbf16>,
    %120 = vector.extract_strided_slice %50 {offsets = [0, 24], sizes = [8, 8], strides = [1, 1]} : vector<8x32xbf16> to vector<8x8xbf16>
    %c0_60 = arith.constant 0 : index
    %c24 = arith.constant 24 : index
    %121 = vector.load %arg23[%c0_60, %c24] : memref<8x32xbf16, #tpu.memory_space<vmem>>, vector<8x8xbf16>
    %c0_61 = arith.constant 0 : index
    %c24_62 = arith.constant 24 : index
    %122 = vector.load %arg24[%c0_61, %c24_62] : memref<8x32xbf16, #tpu.memory_space<vmem>>, vector<8x8xbf16>
    %cst_63 = arith.constant dense<0.000000e+00> : vector<8x8xf32>
    %123 = tpu.matmul %120, %121, %cst_63 {dimension_numbers = #tpu.dot_dimension_numbers<[1], [1], [0], [0], [0, 0, 1, 0], [], []>} : vector<8x8xbf16>, vector<8x8xbf16>, vector<8x8xf32> -> vector<8x8xf32>
    %124 = arith.addf %123, %13 : vector<8x8xf32>
    %cst_64 = arith.constant dense<0xFF800000> : vector<8xf32>
    %125 = vector.multi_reduction <maximumf>, %124, %cst_64 [1] : vector<8x8xf32> to vector<8xf32>
    %126 = vector.shape_cast %125 : vector<8xf32> to vector<8x1xf32>
    %127 = vector.broadcast %126 : vector<8x1xf32> to vector<8x8xf32>
    %128 = arith.subf %124, %127 : vector<8x8xf32>
    %129 = math.exp %128 : vector<8x8xf32>
    %cst_65 = arith.constant dense<0.000000e+00> : vector<8xf32>
    %130 = vector.multi_reduction <add>, %129, %cst_65 [1] : vector<8x8xf32> to vector<8xf32>
    %131 = vector.shape_cast %130 : vector<8xf32> to vector<8x1xf32>
    %132 = tpu.reciprocal %131 {approx = true} : vector<8x1xf32> -> vector<8x1xf32>
    %133 = vector.broadcast %132 : vector<8x1xf32> to vector<8x8xf32>
    %134 = arith.mulf %129, %133 : vector<8x8xf32>
    %135 = arith.truncf %134 : vector<8x8xf32> to vector<8x8xbf16>
    %c0_66 = arith.constant 0 : index
    %c3 = arith.constant 3 : index
    %c0_67 = arith.constant 0 : index
    %c0_68 = arith.constant 0 : index
    %136 = vector.load %arg22[%c0_66, %c3, %c0_67, %c0_68] : memref<1x4x8x8xbf16, #tpu.memory_space<vmem>>, vector<1x1x8x8xbf16>
    %137 = vector.shape_cast %136 : vector<1x1x8x8xbf16> to vector<8x8xbf16>
    %138 = vector.shape_cast %135 : vector<8x8xbf16> to vector<1x1x8x8xbf16>
    tpu.vector_store %arg22[%c0_66, %c3, %c0_67, %c0_68], %138 {strides = array<i32>} : memref<1x4x8x8xbf16, #tpu.memory_space<vmem>>, vector<1x1x8x8xbf16>,
    %139 = arith.truncf %134 : vector<8x8xf32> to vector<8x8xbf16>
    %cst_69 = arith.constant dense<0.000000e+00> : vector<8x8xf32>
    %140 = tpu.matmul %139, %122, %cst_69 {dimension_numbers = #tpu.dot_dimension_numbers<[1], [0], [0], [1], [0, 0, 1, 1], [], []>} : vector<8x8xbf16>, vector<8x8xbf16>, vector<8x8xf32> -> vector<8x8xf32>
    %141 = arith.truncf %140 : vector<8x8xf32> to vector<8x8xbf16>
    %c0_70 = arith.constant 0 : index
    %c24_71 = arith.constant 24 : index
    %142 = vector.load %arg25[%c0_70, %c24_71] : memref<8x32xbf16, #tpu.memory_space<vmem>>, vector<8x8xbf16>
    tpu.vector_store %arg25[%c0_70, %c24_71], %141 {strides = array<i32>} : memref<8x32xbf16, #tpu.memory_space<vmem>>, vector<8x8xbf16>,
    %c0_72 = arith.constant 0 : index
    %c0_73 = arith.constant 0 : index
    %143 = vector.load %arg25[%c0_72, %c0_73] : memref<8x32xbf16, #tpu.memory_space<vmem>>, vector<8x32xbf16>
    %c0_74 = arith.constant 0 : index
    %c0_75 = arith.constant 0 : index
    %144 = vector.load %arg13[%c0_74, %c0_75] : memref<32x32xbf16, #tpu.memory_space<vmem>>, vector<32x32xbf16>
    %cst_76 = arith.constant dense<0.000000e+00> : vector<8x32xf32>
    %145 = tpu.matmul %143, %144, %cst_76 {dimension_numbers = #tpu.dot_dimension_numbers<[1], [0], [0], [1], [0, 0, 1, 1], [], []>} : vector<8x32xbf16>, vector<32x32xbf16>, vector<8x32xf32> -> vector<8x32xf32>
    %c0_77 = arith.constant 0 : index
    %c0_78 = arith.constant 0 : index
    %146 = vector.load %arg14[%c0_77, %c0_78] : memref<1x32xf32, #tpu.memory_space<vmem>>, vector<1x32xf32>
    %147 = vector.shape_cast %146 : vector<1x32xf32> to vector<32xf32>
    %148 = vector.shape_cast %147 : vector<32xf32> to vector<1x32xf32>
    %149 = vector.broadcast %148 : vector<1x32xf32> to vector<8x32xf32>
    %150 = arith.addf %145, %149 : vector<8x32xf32>
    %151 = arith.addf %150, %11 : vector<8x32xf32>
    %152 = vector.broadcast %15 : vector<8x1xf32> to vector<8x32xf32>
    %153 = arith.mulf %151, %152 : vector<8x32xf32>
    %c0_79 = arith.constant 0 : index
    %c0_80 = arith.constant 0 : index
    %154 = vector.load %arg15[%c0_79, %c0_80] : memref<1x32xf32, #tpu.memory_space<vmem>>, vector<1x32xf32>
    %155 = vector.shape_cast %154 : vector<1x32xf32> to vector<32xf32>
    %c0_81 = arith.constant 0 : index
    %c0_82 = arith.constant 0 : index
    %156 = vector.load %arg16[%c0_81, %c0_82] : memref<1x32xf32, #tpu.memory_space<vmem>>, vector<1x32xf32>
    %157 = vector.shape_cast %156 : vector<1x32xf32> to vector<32xf32>
    %cst_83 = arith.constant dense<0.000000e+00> : vector<8xf32>
    %158 = vector.multi_reduction <add>, %153, %cst_83 [1] : vector<8x32xf32> to vector<8xf32>
    %159 = vector.shape_cast %158 : vector<8xf32> to vector<8x1xf32>
    %cst_84 = arith.constant 3.200000e+01 : f32
    %160 = vector.broadcast %cst_84 : f32 to vector<8x1xf32>
    %161 = arith.divf %159, %160 : vector<8x1xf32>
    %162 = vector.broadcast %161 : vector<8x1xf32> to vector<8x32xf32>
    %163 = arith.subf %153, %162 : vector<8x32xf32>
    %164 = arith.mulf %163, %163 : vector<8x32xf32>
    %cst_85 = arith.constant dense<0.000000e+00> : vector<8xf32>
    %165 = vector.multi_reduction <add>, %164, %cst_85 [1] : vector<8x32xf32> to vector<8xf32>
    %166 = vector.shape_cast %165 : vector<8xf32> to vector<8x1xf32>
    %cst_86 = arith.constant 3.200000e+01 : f32
    %167 = vector.broadcast %cst_86 : f32 to vector<8x1xf32>
    %168 = arith.divf %166, %167 : vector<8x1xf32>
    %169 = vector.broadcast %161 : vector<8x1xf32> to vector<8x32xf32>
    %170 = arith.subf %153, %169 : vector<8x32xf32>
    %cst_87 = arith.constant 9.99999974E-6 : f32
    %171 = vector.broadcast %cst_87 : f32 to vector<8x1xf32>
    %172 = arith.addf %168, %171 : vector<8x1xf32>
    %173 = math.rsqrt %172 : vector<8x1xf32>
    %174 = vector.broadcast %173 : vector<8x1xf32> to vector<8x32xf32>
    %175 = arith.mulf %170, %174 : vector<8x32xf32>
    %176 = vector.shape_cast %155 : vector<32xf32> to vector<1x32xf32>
    %177 = vector.broadcast %176 : vector<1x32xf32> to vector<8x32xf32>
    %178 = arith.mulf %175, %177 : vector<8x32xf32>
    %179 = vector.shape_cast %157 : vector<32xf32> to vector<1x32xf32>
    %180 = vector.broadcast %179 : vector<1x32xf32> to vector<8x32xf32>
    %181 = arith.addf %178, %180 : vector<8x32xf32>
    %182 = arith.truncf %181 : vector<8x32xf32> to vector<8x32xbf16>
    %c0_88 = arith.constant 0 : index
    %c0_89 = arith.constant 0 : index
    %183 = vector.load %arg18[%c0_88, %c0_89] : memref<1x64xf32, #tpu.memory_space<vmem>>, vector<1x64xf32>
    %184 = vector.shape_cast %183 : vector<1x64xf32> to vector<64xf32>
    %c0_90 = arith.constant 0 : index
    %c0_91 = arith.constant 0 : index
    %185 = vector.load %arg20[%c0_90, %c0_91] : memref<1x32xf32, #tpu.memory_space<vmem>>, vector<1x32xf32>
    %186 = vector.shape_cast %185 : vector<1x32xf32> to vector<32xf32>
    %187 = vector.shape_cast %186 : vector<32xf32> to vector<1x32xf32>
    %188 = vector.broadcast %187 : vector<1x32xf32> to vector<8x32xf32>
    %189 = arith.addf %153, %188 : vector<8x32xf32>
    %c0_92 = arith.constant 0 : index
    %c0_93 = arith.constant 0 : index
    %190 = vector.load %arg17[%c0_92, %c0_93] : memref<32x64xbf16, #tpu.memory_space<vmem>>, vector<32x64xbf16>
    %cst_94 = arith.constant dense<0.000000e+00> : vector<8x64xf32>
    %191 = tpu.matmul %182, %190, %cst_94 {dimension_numbers = #tpu.dot_dimension_numbers<[1], [0], [0], [1], [0, 0, 1, 1], [], []>} : vector<8x32xbf16>, vector<32x64xbf16>, vector<8x64xf32> -> vector<8x64xf32>
    %192 = vector.shape_cast %184 : vector<64xf32> to vector<1x64xf32>
    %193 = vector.broadcast %192 : vector<1x64xf32> to vector<8x64xf32>
    %194 = arith.addf %191, %193 : vector<8x64xf32>
    %cst_95 = arith.constant 0.000000e+00 : f32
    %195 = vector.broadcast %cst_95 : f32 to vector<8x64xf32>
    %196 = arith.maximumf %194, %195 : vector<8x64xf32>
    %197 = arith.truncf %196 : vector<8x64xf32> to vector<8x64xbf16>
    %c0_96 = arith.constant 0 : index
    %c0_97 = arith.constant 0 : index
    %198 = vector.load %arg19[%c0_96, %c0_97] : memref<64x32xbf16, #tpu.memory_space<vmem>>, vector<64x32xbf16>
    %cst_98 = arith.constant dense<0.000000e+00> : vector<8x32xf32>
    %199 = tpu.matmul %197, %198, %cst_98 {dimension_numbers = #tpu.dot_dimension_numbers<[1], [0], [0], [1], [0, 0, 1, 1], [], []>} : vector<8x64xbf16>, vector<64x32xbf16>, vector<8x32xf32> -> vector<8x32xf32>
    %200 = arith.addf %189, %199 : vector<8x32xf32>
    %201 = vector.broadcast %15 : vector<8x1xf32> to vector<8x32xf32>
    %202 = arith.mulf %200, %201 : vector<8x32xf32>
    %c0_99 = arith.constant 0 : index
    %c0_100 = arith.constant 0 : index
    %c0_101 = arith.constant 0 : index
    %203 = vector.load %arg21[%c0_99, %c0_100, %c0_101] : memref<1x8x32xf32, #tpu.memory_space<vmem>>, vector<1x8x32xf32>
    %204 = vector.shape_cast %203 : vector<1x8x32xf32> to vector<8x32xf32>
    %205 = vector.shape_cast %202 : vector<8x32xf32> to vector<1x8x32xf32>
    tpu.vector_store %arg21[%c0_99, %c0_100, %c0_101], %205 {strides = array<i32>} : memref<1x8x32xf32, #tpu.memory_space<vmem>>, vector<1x8x32xf32>,
    return
  }
  func.func @transform_0(%arg0: i32, %arg1: i32) -> (i32, i32, i32) {
    %c0_i32 = arith.constant 0 : i32
    %c0_i32_0 = arith.constant 0 : i32
    %c0_i32_1 = arith.constant 0 : i32
    return %arg0, %c0_i32, %c0_i32_0 : i32, i32, i32
  }
  func.func @transform_1(%arg0: i32, %arg1: i32) -> (i32, i32, i32) {
    %c0_i32 = arith.constant 0 : i32
    %c0_i32_0 = arith.constant 0 : i32
    return %arg0, %arg1, %c0_i32 : i32, i32, i32
  }
  func.func @transform_2(%arg0: i32, %arg1: i32) -> (i32, i32, i32) {
    %c0_i32 = arith.constant 0 : i32
    %c0_i32_0 = arith.constant 0 : i32
    return %arg0, %arg1, %c0_i32 : i32, i32, i32
  }
  func.func @transform_3(%arg0: i32, %arg1: i32) -> (i32, i32) {
    %c0_i32 = arith.constant 0 : i32
    %c0_i32_0 = arith.constant 0 : i32
    %c0_i32_1 = arith.constant 0 : i32
    return %c0_i32, %c0_i32_0 : i32, i32
  }
  func.func @transform_4(%arg0: i32, %arg1: i32) -> (i32, i32) {
    %c0_i32 = arith.constant 0 : i32
    %c0_i32_0 = arith.constant 0 : i32
    %c0_i32_1 = arith.constant 0 : i32
    return %c0_i32, %c0_i32_0 : i32, i32
  }
  func.func @transform_5(%arg0: i32, %arg1: i32) -> (i32, i32) {
    %c0_i32 = arith.constant 0 : i32
    %c0_i32_0 = arith.constant 0 : i32
    %c0_i32_1 = arith.constant 0 : i32
    return %c0_i32, %c0_i32_0 : i32, i32
  }
  func.func @transform_6(%arg0: i32, %arg1: i32) -> (i32, i32) {
    %c0_i32 = arith.constant 0 : i32
    %c0_i32_0 = arith.constant 0 : i32
    %c0_i32_1 = arith.constant 0 : i32
    return %c0_i32, %c0_i32_0 : i32, i32
  }
  func.func @transform_7(%arg0: i32, %arg1: i32) -> (i32, i32) {
    %c0_i32 = arith.constant 0 : i32
    %c0_i32_0 = arith.constant 0 : i32
    %c0_i32_1 = arith.constant 0 : i32
    return %c0_i32, %c0_i32_0 : i32, i32
  }
  func.func @transform_8(%arg0: i32, %arg1: i32) -> (i32, i32) {
    %c0_i32 = arith.constant 0 : i32
    %c0_i32_0 = arith.constant 0 : i32
    %c0_i32_1 = arith.constant 0 : i32
    return %c0_i32, %c0_i32_0 : i32, i32
  }
  func.func @transform_9(%arg0: i32, %arg1: i32) -> (i32, i32) {
    %c0_i32 = arith.constant 0 : i32
    %c0_i32_0 = arith.constant 0 : i32
    %c0_i32_1 = arith.constant 0 : i32
    return %c0_i32, %c0_i32_0 : i32, i32
  }
  func.func @transform_10(%arg0: i32, %arg1: i32) -> (i32, i32) {
    %c0_i32 = arith.constant 0 : i32
    %c0_i32_0 = arith.constant 0 : i32
    %c0_i32_1 = arith.constant 0 : i32
    return %c0_i32, %c0_i32_0 : i32, i32
  }
  func.func @transform_11(%arg0: i32, %arg1: i32) -> (i32, i32) {
    %c0_i32 = arith.constant 0 : i32
    %c0_i32_0 = arith.constant 0 : i32
    %c0_i32_1 = arith.constant 0 : i32
    return %c0_i32, %c0_i32_0 : i32, i32
  }
  func.func @transform_12(%arg0: i32, %arg1: i32) -> (i32, i32) {
    %c0_i32 = arith.constant 0 : i32
    %c0_i32_0 = arith.constant 0 : i32
    %c0_i32_1 = arith.constant 0 : i32
    return %c0_i32, %c0_i32_0 : i32, i32
  }
  func.func @transform_13(%arg0: i32, %arg1: i32) -> (i32, i32) {
    %c0_i32 = arith.constant 0 : i32
    %c0_i32_0 = arith.constant 0 : i32
    %c0_i32_1 = arith.constant 0 : i32
    return %c0_i32, %c0_i32_0 : i32, i32
  }
  func.func @transform_14(%arg0: i32, %arg1: i32) -> (i32, i32) {
    %c0_i32 = arith.constant 0 : i32
    %c0_i32_0 = arith.constant 0 : i32
    %c0_i32_1 = arith.constant 0 : i32
    return %c0_i32, %c0_i32_0 : i32, i32
  }
  func.func @transform_15(%arg0: i32, %arg1: i32) -> (i32, i32) {
    %c0_i32 = arith.constant 0 : i32
    %c0_i32_0 = arith.constant 0 : i32
    %c0_i32_1 = arith.constant 0 : i32
    return %c0_i32, %c0_i32_0 : i32, i32
  }
  func.func @transform_16(%arg0: i32, %arg1: i32) -> (i32, i32) {
    %c0_i32 = arith.constant 0 : i32
    %c0_i32_0 = arith.constant 0 : i32
    %c0_i32_1 = arith.constant 0 : i32
    return %c0_i32, %c0_i32_0 : i32, i32
  }
  func.func @transform_17(%arg0: i32, %arg1: i32) -> (i32, i32) {
    %c0_i32 = arith.constant 0 : i32
    %c0_i32_0 = arith.constant 0 : i32
    %c0_i32_1 = arith.constant 0 : i32
    return %c0_i32, %c0_i32_0 : i32, i32
  }
  func.func @transform_18(%arg0: i32, %arg1: i32) -> (i32, i32) {
    %c0_i32 = arith.constant 0 : i32
    %c0_i32_0 = arith.constant 0 : i32
    %c0_i32_1 = arith.constant 0 : i32
    return %c0_i32, %c0_i32_0 : i32, i32
  }
  func.func @transform_19(%arg0: i32, %arg1: i32) -> (i32, i32, i32) {
    %c0_i32 = arith.constant 0 : i32
    %c0_i32_0 = arith.constant 0 : i32
    return %arg0, %arg1, %c0_i32 : i32, i32, i32
  }
  func.func @transform_20(%arg0: i32, %arg1: i32) -> (i32, i32, i32, i32) {
    %c0_i32 = arith.constant 0 : i32
    %c0_i32_0 = arith.constant 0 : i32
    %c0_i32_1 = arith.constant 0 : i32
    return %arg0, %c0_i32, %arg1, %c0_i32_0 : i32, i32, i32, i32
  }
}

module attributes {stable_mosaic.version = 11 : i64} {
  func.func @_encoder_layer_kernel(%arg0: i32, %arg1: i32, %arg2: memref<1x8x32xf32, #tpu.memory_space<vmem>>, %arg3: memref<1x8x8xf32, #tpu.memory_space<vmem>>, %arg4: memref<1x8x1xf32, #tpu.memory_space<vmem>>, %arg5: memref<1x32xf32, #tpu.memory_space<vmem>>, %arg6: memref<1x32xf32, #tpu.memory_space<vmem>>, %arg7: memref<32x32xbf16, #tpu.memory_space<vmem>>, %arg8: memref<1x32xf32, #tpu.memory_space<vmem>>, %arg9: memref<32x32xbf16, #tpu.memory_space<vmem>>, %arg10: memref<1x32xf32, #tpu.memory_space<vmem>>, %arg11: memref<32x32xbf16, #tpu.memory_space<vmem>>, %arg12: memref<1x32xf32, #tpu.memory_space<vmem>>, %arg13: memref<32x32xbf16, #tpu.memory_space<vmem>>, %arg14: memref<1x32xf32, #tpu.memory_space<vmem>>, %arg15: memref<1x32xf32, #tpu.memory_space<vmem>>, %arg16: memref<1x32xf32, #tpu.memory_space<vmem>>, %arg17: memref<32x64xbf16, #tpu.memory_space<vmem>>, %arg18: memref<1x64xf32, #tpu.memory_space<vmem>>, %arg19: memref<64x32xbf16, #tpu.memory_space<vmem>>, %arg20: memref<1x32xf32, #tpu.memory_space<vmem>>, %arg21: memref<1x8x32xf32, #tpu.memory_space<vmem>>, %arg22: memref<1x4x8x8xbf16, #tpu.memory_space<vmem>>, %arg23: memref<8x32xbf16, #tpu.memory_space<vmem>>, %arg24: memref<8x32xbf16, #tpu.memory_space<vmem>>, %arg25: memref<8x32xbf16, #tpu.memory_space<vmem>>) attributes {dimension_semantics = [#tpu.dimension_semantics<parallel>, #tpu.dimension_semantics<arbitrary>], iteration_bounds = array<i64: 2, 1>, scalar_prefetch = 0 : i64, scratch_operands = 3 : i64, tpu.core_type = #tpu.core_type<tc>, window_params = [{transform_indices = @transform_0, window_bounds = array<i64: 1, 8, 32>}, {transform_indices = @transform_1, window_bounds = array<i64: 1, 8, 8>}, {transform_indices = @transform_2, window_bounds = array<i64: 1, 8, 1>}, {pipeline_mode = #tpu.pipeline_mode<synchronous>, transform_indices = @transform_3, window_bounds = array<i64: 1, 32>}, {pipeline_mode = #tpu.pipeline_mode<synchronous>, transform_indices = @transform_4, window_bounds = array<i64: 1, 32>}, {pipeline_mode = #tpu.pipeline_mode<synchronous>, transform_indices = @transform_5, window_bounds = array<i64: 32, 32>}, {pipeline_mode = #tpu.pipeline_mode<synchronous>, transform_indices = @transform_6, window_bounds = array<i64: 1, 32>}, {pipeline_mode = #tpu.pipeline_mode<synchronous>, transform_indices = @transform_7, window_bounds = array<i64: 32, 32>}, {pipeline_mode = #tpu.pipeline_mode<synchronous>, transform_indices = @transform_8, window_bounds = array<i64: 1, 32>}, {pipeline_mode = #tpu.pipeline_mode<synchronous>, transform_indices = @transform_9, window_bounds = array<i64: 32, 32>}, {pipeline_mode = #tpu.pipeline_mode<synchronous>, transform_indices = @transform_10, window_bounds = array<i64: 1, 32>}, {pipeline_mode = #tpu.pipeline_mode<synchronous>, transform_indices = @transform_11, window_bounds = array<i64: 32, 32>}, {pipeline_mode = #tpu.pipeline_mode<synchronous>, transform_indices = @transform_12, window_bounds = array<i64: 1, 32>}, {pipeline_mode = #tpu.pipeline_mode<synchronous>, transform_indices = @transform_13, window_bounds = array<i64: 1, 32>}, {pipeline_mode = #tpu.pipeline_mode<synchronous>, transform_indices = @transform_14, window_bounds = array<i64: 1, 32>}, {pipeline_mode = #tpu.pipeline_mode<synchronous>, transform_indices = @transform_15, window_bounds = array<i64: 32, 64>}, {pipeline_mode = #tpu.pipeline_mode<synchronous>, transform_indices = @transform_16, window_bounds = array<i64: 1, 64>}, {pipeline_mode = #tpu.pipeline_mode<synchronous>, transform_indices = @transform_17, window_bounds = array<i64: 64, 32>}, {pipeline_mode = #tpu.pipeline_mode<synchronous>, transform_indices = @transform_18, window_bounds = array<i64: 1, 32>}, {transform_indices = @transform_19, window_bounds = array<i64: 1, 8, 32>}, {transform_indices = @transform_20, window_bounds = array<i64: 1, 4, 8, 8>}]} {
    %c0 = arith.constant 0 : index
    %c0_0 = arith.constant 0 : index
    %0 = vector.load %arg5[%c0, %c0_0] : memref<1x32xf32, #tpu.memory_space<vmem>>, vector<1x32xf32>
    %1 = vector.shape_cast %0 : vector<1x32xf32> to vector<32xf32>
    %c0_1 = arith.constant 0 : index
    %c0_2 = arith.constant 0 : index
    %2 = vector.load %arg6[%c0_1, %c0_2] : memref<1x32xf32, #tpu.memory_space<vmem>>, vector<1x32xf32>
    %3 = vector.shape_cast %2 : vector<1x32xf32> to vector<32xf32>
    %c0_i32 = arith.constant 0 : i32
    %4 = arith.cmpi eq, %arg1, %c0_i32 : i32
    %5 = arith.extui %4 : i1 to i32
    %c0_i32_3 = arith.constant 0 : i32
    %6 = arith.cmpi ne, %5, %c0_i32_3 : i32
    scf.if %6 {
      %c0_102 = arith.constant 0 : index
      %c0_103 = arith.constant 0 : index
      %c0_104 = arith.constant 0 : index
      %206 = vector.load %arg2[%c0_102, %c0_103, %c0_104] : memref<1x8x32xf32, #tpu.memory_space<vmem>>, vector<1x8x32xf32>
      %207 = vector.shape_cast %206 : vector<1x8x32xf32> to vector<8x32xf32>
      %cst_105 = arith.constant dense<0.000000e+00> : vector<8xf32>
      %208 = vector.multi_reduction <add>, %207, %cst_105 [1] : vector<8x32xf32> to vector<8xf32>
      %209 = vector.shape_cast %208 : vector<8xf32> to vector<8x1xf32>
      %cst_106 = arith.constant 3.200000e+01 : f32
      %210 = vector.broadcast %cst_106 : f32 to vector<8x1xf32>
      %211 = arith.divf %209, %210 : vector<8x1xf32>
      %212 = vector.broadcast %211 : vector<8x1xf32> to vector<8x32xf32>
      %213 = arith.subf %207, %212 : vector<8x32xf32>
      %214 = arith.mulf %213, %213 : vector<8x32xf32>
      %cst_107 = arith.constant dense<0.000000e+00> : vector<8xf32>
      %215 = vector.multi_reduction <add>, %214, %cst_107 [1] : vector<8x32xf32> to vector<8xf32>
      %216 = vector.shape_cast %215 : vector<8xf32> to vector<8x1xf32>
      %cst_108 = arith.constant 3.200000e+01 : f32
      %217 = vector.broadcast %cst_108 : f32 to vector<8x1xf32>
      %218 = arith.divf %216, %217 : vector<8x1xf32>
      %219 = vector.broadcast %211 : vector<8x1xf32> to vector<8x32xf32>
      %220 = arith.subf %207, %219 : vector<8x32xf32>
      %cst_109 = arith.constant 9.99999974E-6 : f32
      %221 = vector.broadcast %cst_109 : f32 to vector<8x1xf32>
      %222 = arith.addf %218, %221 : vector<8x1xf32>
      %223 = math.rsqrt %222 : vector<8x1xf32>
      %224 = vector.broadcast %223 : vector<8x1xf32> to vector<8x32xf32>
      %225 = arith.mulf %220, %224 : vector<8x32xf32>
      %226 = vector.shape_cast %1 : vector<32xf32> to vector<1x32xf32>
      %227 = vector.broadcast %226 : vector<1x32xf32> to vector<8x32xf32>
      %228 = arith.mulf %225, %227 : vector<8x32xf32>
      %229 = vector.shape_cast %3 : vector<32xf32> to vector<1x32xf32>
      %230 = vector.broadcast %229 : vector<1x32xf32> to vector<8x32xf32>
      %231 = arith.addf %228, %230 : vector<8x32xf32>
      %232 = arith.truncf %231 : vector<8x32xf32> to vector<8x32xbf16>
      %c0_110 = arith.constant 0 : index
      %c0_111 = arith.constant 0 : index
      %233 = vector.load %arg9[%c0_110, %c0_111] : memref<32x32xbf16, #tpu.memory_space<vmem>>, vector<32x32xbf16>
      %cst_112 = arith.constant dense<0.000000e+00> : vector<8x32xf32>
      %234 = tpu.matmul %232, %233, %cst_112 {dimension_numbers = #tpu.dot_dimension_numbers<[1], [0], [0], [1], [0, 0, 1, 1], [], []>} : vector<8x32xbf16>, vector<32x32xbf16>, vector<8x32xf32> -> vector<8x32xf32>
      %c0_113 = arith.constant 0 : index
      %c0_114 = arith.constant 0 : index
      %235 = vector.load %arg10[%c0_113, %c0_114] : memref<1x32xf32, #tpu.memory_space<vmem>>, vector<1x32xf32>
      %236 = vector.shape_cast %235 : vector<1x32xf32> to vector<32xf32>
      %237 = vector.shape_cast %236 : vector<32xf32> to vector<1x32xf32>
      %238 = vector.broadcast %237 : vector<1x32xf32> to vector<8x32xf32>
      %239 = arith.addf %234, %238 : vector<8x32xf32>
      %240 = arith.truncf %239 : vector<8x32xf32> to vector<8x32xbf16>
      %c0_115 = arith.constant 0 : index
      %c0_116 = arith.constant 0 : index
      %241 = vector.load %arg23[%c0_115, %c0_116] : memref<8x32xbf16, #tpu.memory_space<vmem>>, vector<8x32xbf16>
      tpu.vector_store %arg23[%c0_115, %c0_116], %240 {strides = array<i32>} : memref<8x32xbf16, #tpu.memory_space<vmem>>, vector<8x32xbf16>,
      %c0_117 = arith.constant 0 : index
      %c0_118 = arith.constant 0 : index
      %242 = vector.load %arg11[%c0_117, %c0_118] : memref<32x32xbf16, #tpu.memory_space<vmem>>, vector<32x32xbf16>
      %cst_119 = arith.constant dense<0.000000e+00> : vector<8x32xf32>
      %243 = tpu.matmul %232, %242, %cst_119 {dimension_numbers = #tpu.dot_dimension_numbers<[1], [0], [0], [1], [0, 0, 1, 1], [], []>} : vector<8x32xbf16>, vector<32x32xbf16>, vector<8x32xf32> -> vector<8x32xf32>
      %c0_120 = arith.constant 0 : index
      %c0_121 = arith.constant 0 : index
      %244 = vector.load %arg12[%c0_120, %c0_121] : memref<1x32xf32, #tpu.memory_space<vmem>>, vector<1x32xf32>
      %245 = vector.shape_cast %244 : vector<1x32xf32> to vector<32xf32>
      %246 = vector.shape_cast %245 : vector<32xf32> to vector<1x32xf32>
      %247 = vector.broadcast %246 : vector<1x32xf32> to vector<8x32xf32>
      %248 = arith.addf %243, %247 : vector<8x32xf32>
      %249 = arith.truncf %248 : vector<8x32xf32> to vector<8x32xbf16>
      %c0_122 = arith.constant 0 : index
      %c0_123 = arith.constant 0 : index
      %250 = vector.load %arg24[%c0_122, %c0_123] : memref<8x32xbf16, #tpu.memory_space<vmem>>, vector<8x32xbf16>
      tpu.vector_store %arg24[%c0_122, %c0_123], %249 {strides = array<i32>} : memref<8x32xbf16, #tpu.memory_space<vmem>>, vector<8x32xbf16>,
    } else {
    }
    %c8_i32 = arith.constant 8 : i32
    %7 = arith.muli %arg1, %c8_i32 : i32
    %8 = tpu.assume_multiple %7, 8 : i32
    %c0_4 = arith.constant 0 : index
    %9 = arith.index_cast %8 : i32 to index
    %c0_5 = arith.constant 0 : index
    %10 = vector.load %arg2[%c0_4, %9, %c0_5] : memref<1x8x32xf32, #tpu.memory_space<vmem>>, vector<1x8x32xf32>
    %11 = vector.shape_cast %10 : vector<1x8x32xf32> to vector<8x32xf32>
    %c0_6 = arith.constant 0 : index
    %c0_7 = arith.constant 0 : index
    %c0_8 = arith.constant 0 : index
    %12 = vector.load %arg3[%c0_6, %c0_7, %c0_8] : memref<1x8x8xf32, #tpu.memory_space<vmem>>, vector<1x8x8xf32>
    %13 = vector.shape_cast %12 : vector<1x8x8xf32> to vector<8x8xf32>
    %c0_9 = arith.constant 0 : index
    %c0_10 = arith.constant 0 : index
    %c0_11 = arith.constant 0 : index
    %14 = vector.load %arg4[%c0_9, %c0_10, %c0_11] : memref<1x8x1xf32, #tpu.memory_space<vmem>>, vector<1x8x1xf32>
    %15 = vector.shape_cast %14 : vector<1x8x1xf32> to vector<8x1xf32>
    %cst = arith.constant dense<0.000000e+00> : vector<8xf32>
    %16 = vector.multi_reduction <add>, %11, %cst [1] : vector<8x32xf32> to vector<8xf32>
    %17 = vector.shape_cast %16 : vector<8xf32> to vector<8x1xf32>
    %cst_12 = arith.constant 3.200000e+01 : f32
    %18 = vector.broadcast %cst_12 : f32 to vector<8x1xf32>
    %19 = arith.divf %17, %18 : vector<8x1xf32>
    %20 = vector.broadcast %19 : vector<8x1xf32> to vector<8x32xf32>
    %21 = arith.subf %11, %20 : vector<8x32xf32>
    %22 = arith.mulf %21, %21 : vector<8x32xf32>
    %cst_13 = arith.constant dense<0.000000e+00> : vector<8xf32>
    %23 = vector.multi_reduction <add>, %22, %cst_13 [1] : vector<8x32xf32> to vector<8xf32>
    %24 = vector.shape_cast %23 : vector<8xf32> to vector<8x1xf32>
    %cst_14 = arith.constant 3.200000e+01 : f32
    %25 = vector.broadcast %cst_14 : f32 to vector<8x1xf32>
    %26 = arith.divf %24, %25 : vector<8x1xf32>
    %27 = vector.broadcast %19 : vector<8x1xf32> to vector<8x32xf32>
    %28 = arith.subf %11, %27 : vector<8x32xf32>
    %cst_15 = arith.constant 9.99999974E-6 : f32
    %29 = vector.broadcast %cst_15 : f32 to vector<8x1xf32>
    %30 = arith.addf %26, %29 : vector<8x1xf32>
    %31 = math.rsqrt %30 : vector<8x1xf32>
    %32 = vector.broadcast %31 : vector<8x1xf32> to vector<8x32xf32>
    %33 = arith.mulf %28, %32 : vector<8x32xf32>
    %34 = vector.shape_cast %1 : vector<32xf32> to vector<1x32xf32>
    %35 = vector.broadcast %34 : vector<1x32xf32> to vector<8x32xf32>
    %36 = arith.mulf %33, %35 : vector<8x32xf32>
    %37 = vector.shape_cast %3 : vector<32xf32> to vector<1x32xf32>
    %38 = vector.broadcast %37 : vector<1x32xf32> to vector<8x32xf32>
    %39 = arith.addf %36, %38 : vector<8x32xf32>
    %40 = arith.truncf %39 : vector<8x32xf32> to vector<8x32xbf16>
    %c0_16 = arith.constant 0 : index
    %c0_17 = arith.constant 0 : index
    %41 = vector.load %arg7[%c0_16, %c0_17] : memref<32x32xbf16, #tpu.memory_space<vmem>>, vector<32x32xbf16>
    %cst_18 = arith.constant dense<0.000000e+00> : vector<8x32xf32>
    %42 = tpu.matmul %40, %41, %cst_18 {dimension_numbers = #tpu.dot_dimension_numbers<[1], [0], [0], [1], [0, 0, 1, 1], [], []>} : vector<8x32xbf16>, vector<32x32xbf16>, vector<8x32xf32> -> vector<8x32xf32>
    %c0_19 = arith.constant 0 : index
    %c0_20 = arith.constant 0 : index
    %43 = vector.load %arg8[%c0_19, %c0_20] : memref<1x32xf32, #tpu.memory_space<vmem>>, vector<1x32xf32>
    %44 = vector.shape_cast %43 : vector<1x32xf32> to vector<32xf32>
    %45 = vector.shape_cast %44 : vector<32xf32> to vector<1x32xf32>
    %46 = vector.broadcast %45 : vector<1x32xf32> to vector<8x32xf32>
    %47 = arith.addf %42, %46 : vector<8x32xf32>
    %cst_21 = arith.constant 0.353553385 : f32
    %48 = vector.broadcast %cst_21 : f32 to vector<8x32xf32>
    %49 = arith.mulf %47, %48 : vector<8x32xf32>
    %50 = arith.truncf %49 : vector<8x32xf32> to vector<8x32xbf16>
    %51 = vector.extract_strided_slice %50 {offsets = [0, 0], sizes = [8, 8], strides = [1, 1]} : vector<8x32xbf16> to vector<8x8xbf16>
    %c0_22 = arith.constant 0 : index
    %c0_23 = arith.constant 0 : index
    %52 = vector.load %arg23[%c0_22, %c0_23] : memref<8x32xbf16, #tpu.memory_space<vmem>>, vector<8x8xbf16>
    %c0_24 = arith.constant 0 : index
    %c0_25 = arith.constant 0 : index
    %53 = vector.load %arg24[%c0_24, %c0_25] : memref<8x32xbf16, #tpu.memory_space<vmem>>, vector<8x8xbf16>
    %cst_26 = arith.constant dense<0.000000e+00> : vector<8x8xf32>
    %54 = tpu.matmul %51, %52, %cst_26 {dimension_numbers = #tpu.dot_dimension_numbers<[1], [1], [0], [0], [0, 0, 1, 0], [], []>} : vector<8x8xbf16>, vector<8x8xbf16>, vector<8x8xf32> -> vector<8x8xf32>
    %55 = arith.addf %54, %13 : vector<8x8xf32>
    %cst_27 = arith.constant dense<0xFF800000> : vector<8xf32>
    %56 = vector.multi_reduction <maximumf>, %55, %cst_27 [1] : vector<8x8xf32> to vector<8xf32>
    %57 = vector.shape_cast %56 : vector<8xf32> to vector<8x1xf32>
    %58 = vector.broadcast %57 : vector<8x1xf32> to vector<8x8xf32>
    %59 = arith.subf %55, %58 : vector<8x8xf32>
    %60 = math.exp %59 : vector<8x8xf32>
    %cst_28 = arith.constant dense<0.000000e+00> : vector<8xf32>
    %61 = vector.multi_reduction <add>, %60, %cst_28 [1] : vector<8x8xf32> to vector<8xf32>
    %62 = vector.shape_cast %61 : vector<8xf32> to vector<8x1xf32>
    %63 = tpu.reciprocal %62 {approx = true} : vector<8x1xf32> -> vector<8x1xf32>
    %64 = vector.broadcast %63 : vector<8x1xf32> to vector<8x8xf32>
    %65 = arith.mulf %60, %64 : vector<8x8xf32>
    %66 = arith.truncf %65 : vector<8x8xf32> to vector<8x8xbf16>
    %c0_29 = arith.constant 0 : index
    %c0_30 = arith.constant 0 : index
    %c0_31 = arith.constant 0 : index
    %c0_32 = arith.constant 0 : index
    %67 = vector.load %arg22[%c0_29, %c0_30, %c0_31, %c0_32] : memref<1x4x8x8xbf16, #tpu.memory_space<vmem>>, vector<1x1x8x8xbf16>
    %68 = vector.shape_cast %67 : vector<1x1x8x8xbf16> to vector<8x8xbf16>
    %69 = vector.shape_cast %66 : vector<8x8xbf16> to vector<1x1x8x8xbf16>
    tpu.vector_store %arg22[%c0_29, %c0_30, %c0_31, %c0_32], %69 {strides = array<i32>} : memref<1x4x8x8xbf16, #tpu.memory_space<vmem>>, vector<1x1x8x8xbf16>,
    %70 = arith.truncf %65 : vector<8x8xf32> to vector<8x8xbf16>
    %cst_33 = arith.constant dense<0.000000e+00> : vector<8x8xf32>
    %71 = tpu.matmul %70, %53, %cst_33 {dimension_numbers = #tpu.dot_dimension_numbers<[1], [0], [0], [1], [0, 0, 1, 1], [], []>} : vector<8x8xbf16>, vector<8x8xbf16>, vector<8x8xf32> -> vector<8x8xf32>
    %72 = arith.truncf %71 : vector<8x8xf32> to vector<8x8xbf16>
    %c0_34 = arith.constant 0 : index
    %c0_35 = arith.constant 0 : index
    %73 = vector.load %arg25[%c0_34, %c0_35] : memref<8x32xbf16, #tpu.memory_space<vmem>>, vector<8x8xbf16>
    tpu.vector_store %arg25[%c0_34, %c0_35], %72 {strides = array<i32>} : memref<8x32xbf16, #tpu.memory_space<vmem>>, vector<8x8xbf16>,
    %74 = vector.extract_strided_slice %50 {offsets = [0, 8], sizes = [8, 8], strides = [1, 1]} : vector<8x32xbf16> to vector<8x8xbf16>
    %c0_36 = arith.constant 0 : index
    %c8 = arith.constant 8 : index
    %75 = vector.load %arg23[%c0_36, %c8] : memref<8x32xbf16, #tpu.memory_space<vmem>>, vector<8x8xbf16>
    %c0_37 = arith.constant 0 : index
    %c8_38 = arith.constant 8 : index
    %76 = vector.load %arg24[%c0_37, %c8_38] : memref<8x32xbf16, #tpu.memory_space<vmem>>, vector<8x8xbf16>
    %cst_39 = arith.constant dense<0.000000e+00> : vector<8x8xf32>
    %77 = tpu.matmul %74, %75, %cst_39 {dimension_numbers = #tpu.dot_dimension_numbers<[1], [1], [0], [0], [0, 0, 1, 0], [], []>} : vector<8x8xbf16>, vector<8x8xbf16>, vector<8x8xf32> -> vector<8x8xf32>
    %78 = arith.addf %77, %13 : vector<8x8xf32>
    %cst_40 = arith.constant dense<0xFF800000> : vector<8xf32>
    %79 = vector.multi_reduction <maximumf>, %78, %cst_40 [1] : vector<8x8xf32> to vector<8xf32>
    %80 = vector.shape_cast %79 : vector<8xf32> to vector<8x1xf32>
    %81 = vector.broadcast %80 : vector<8x1xf32> to vector<8x8xf32>
    %82 = arith.subf %78, %81 : vector<8x8xf32>
    %83 = math.exp %82 : vector<8x8xf32>
    %cst_41 = arith.constant dense<0.000000e+00> : vector<8xf32>
    %84 = vector.multi_reduction <add>, %83, %cst_41 [1] : vector<8x8xf32> to vector<8xf32>
    %85 = vector.shape_cast %84 : vector<8xf32> to vector<8x1xf32>
    %86 = tpu.reciprocal %85 {approx = true} : vector<8x1xf32> -> vector<8x1xf32>
    %87 = vector.broadcast %86 : vector<8x1xf32> to vector<8x8xf32>
    %88 = arith.mulf %83, %87 : vector<8x8xf32>
    %89 = arith.truncf %88 : vector<8x8xf32> to vector<8x8xbf16>
    %c0_42 = arith.constant 0 : index
    %c1 = arith.constant 1 : index
    %c0_43 = arith.constant 0 : index
    %c0_44 = arith.constant 0 : index
    %90 = vector.load %arg22[%c0_42, %c1, %c0_43, %c0_44] : memref<1x4x8x8xbf16, #tpu.memory_space<vmem>>, vector<1x1x8x8xbf16>
    %91 = vector.shape_cast %90 : vector<1x1x8x8xbf16> to vector<8x8xbf16>
    %92 = vector.shape_cast %89 : vector<8x8xbf16> to vector<1x1x8x8xbf16>
    tpu.vector_store %arg22[%c0_42, %c1, %c0_43, %c0_44], %92 {strides = array<i32>} : memref<1x4x8x8xbf16, #tpu.memory_space<vmem>>, vector<1x1x8x8xbf16>,
    %93 = arith.truncf %88 : vector<8x8xf32> to vector<8x8xbf16>
    %cst_45 = arith.constant dense<0.000000e+00> : vector<8x8xf32>
    %94 = tpu.matmul %93, %76, %cst_45 {dimension_numbers = #tpu.dot_dimension_numbers<[1], [0], [0], [1], [0, 0, 1, 1], [], []>} : vector<8x8xbf16>, vector<8x8xbf16>, vector<8x8xf32> -> vector<8x8xf32>
    %95 = arith.truncf %94 : vector<8x8xf32> to vector<8x8xbf16>
    %c0_46 = arith.constant 0 : index
    %c8_47 = arith.constant 8 : index
    %96 = vector.load %arg25[%c0_46, %c8_47] : memref<8x32xbf16, #tpu.memory_space<vmem>>, vector<8x8xbf16>
    tpu.vector_store %arg25[%c0_46, %c8_47], %95 {strides = array<i32>} : memref<8x32xbf16, #tpu.memory_space<vmem>>, vector<8x8xbf16>,
    %97 = vector.extract_strided_slice %50 {offsets = [0, 16], sizes = [8, 8], strides = [1, 1]} : vector<8x32xbf16> to vector<8x8xbf16>
    %c0_48 = arith.constant 0 : index
    %c16 = arith.constant 16 : index
    %98 = vector.load %arg23[%c0_48, %c16] : memref<8x32xbf16, #tpu.memory_space<vmem>>, vector<8x8xbf16>
    %c0_49 = arith.constant 0 : index
    %c16_50 = arith.constant 16 : index
    %99 = vector.load %arg24[%c0_49, %c16_50] : memref<8x32xbf16, #tpu.memory_space<vmem>>, vector<8x8xbf16>
    %cst_51 = arith.constant dense<0.000000e+00> : vector<8x8xf32>
    %100 = tpu.matmul %97, %98, %cst_51 {dimension_numbers = #tpu.dot_dimension_numbers<[1], [1], [0], [0], [0, 0, 1, 0], [], []>} : vector<8x8xbf16>, vector<8x8xbf16>, vector<8x8xf32> -> vector<8x8xf32>
    %101 = arith.addf %100, %13 : vector<8x8xf32>
    %cst_52 = arith.constant dense<0xFF800000> : vector<8xf32>
    %102 = vector.multi_reduction <maximumf>, %101, %cst_52 [1] : vector<8x8xf32> to vector<8xf32>
    %103 = vector.shape_cast %102 : vector<8xf32> to vector<8x1xf32>
    %104 = vector.broadcast %103 : vector<8x1xf32> to vector<8x8xf32>
    %105 = arith.subf %101, %104 : vector<8x8xf32>
    %106 = math.exp %105 : vector<8x8xf32>
    %cst_53 = arith.constant dense<0.000000e+00> : vector<8xf32>
    %107 = vector.multi_reduction <add>, %106, %cst_53 [1] : vector<8x8xf32> to vector<8xf32>
    %108 = vector.shape_cast %107 : vector<8xf32> to vector<8x1xf32>
    %109 = tpu.reciprocal %108 {approx = true} : vector<8x1xf32> -> vector<8x1xf32>
    %110 = vector.broadcast %109 : vector<8x1xf32> to vector<8x8xf32>
    %111 = arith.mulf %106, %110 : vector<8x8xf32>
    %112 = arith.truncf %111 : vector<8x8xf32> to vector<8x8xbf16>
    %c0_54 = arith.constant 0 : index
    %c2 = arith.constant 2 : index
    %c0_55 = arith.constant 0 : index
    %c0_56 = arith.constant 0 : index
    %113 = vector.load %arg22[%c0_54, %c2, %c0_55, %c0_56] : memref<1x4x8x8xbf16, #tpu.memory_space<vmem>>, vector<1x1x8x8xbf16>
    %114 = vector.shape_cast %113 : vector<1x1x8x8xbf16> to vector<8x8xbf16>
    %115 = vector.shape_cast %112 : vector<8x8xbf16> to vector<1x1x8x8xbf16>
    tpu.vector_store %arg22[%c0_54, %c2, %c0_55, %c0_56], %115 {strides = array<i32>} : memref<1x4x8x8xbf16, #tpu.memory_space<vmem>>, vector<1x1x8x8xbf16>,
    %116 = arith.truncf %111 : vector<8x8xf32> to vector<8x8xbf16>
    %cst_57 = arith.constant dense<0.000000e+00> : vector<8x8xf32>
    %117 = tpu.matmul %116, %99, %cst_57 {dimension_numbers = #tpu.dot_dimension_numbers<[1], [0], [0], [1], [0, 0, 1, 1], [], []>} : vector<8x8xbf16>, vector<8x8xbf16>, vector<8x8xf32> -> vector<8x8xf32>
    %118 = arith.truncf %117 : vector<8x8xf32> to vector<8x8xbf16>
    %c0_58 = arith.constant 0 : index
    %c16_59 = arith.constant 16 : index
    %119 = vector.load %arg25[%c0_58, %c16_59] : memref<8x32xbf16, #tpu.memory_space<vmem>>, vector<8x8xbf16>
    tpu.vector_store %arg25[%c0_58, %c16_59], %118 {strides = array<i32>} : memref<8x32xbf16, #tpu.memory_space<vmem>>, vector<8x8xbf16>,
    %120 = vector.extract_strided_slice %50 {offsets = [0, 24], sizes = [8, 8], strides = [1, 1]} : vector<8x32xbf16> to vector<8x8xbf16>
    %c0_60 = arith.constant 0 : index
    %c24 = arith.constant 24 : index
    %121 = vector.load %arg23[%c0_60, %c24] : memref<8x32xbf16, #tpu.memory_space<vmem>>, vector<8x8xbf16>
    %c0_61 = arith.constant 0 : index
    %c24_62 = arith.constant 24 : index
    %122 = vector.load %arg24[%c0_61, %c24_62] : memref<8x32xbf16, #tpu.memory_space<vmem>>, vector<8x8xbf16>
    %cst_63 = arith.constant dense<0.000000e+00> : vector<8x8xf32>
    %123 = tpu.matmul %120, %121, %cst_63 {dimension_numbers = #tpu.dot_dimension_numbers<[1], [1], [0], [0], [0, 0, 1, 0], [], []>} : vector<8x8xbf16>, vector<8x8xbf16>, vector<8x8xf32> -> vector<8x8xf32>
    %124 = arith.addf %123, %13 : vector<8x8xf32>
    %cst_64 = arith.constant dense<0xFF800000> : vector<8xf32>
    %125 = vector.multi_reduction <maximumf>, %124, %cst_64 [1] : vector<8x8xf32> to vector<8xf32>
    %126 = vector.shape_cast %125 : vector<8xf32> to vector<8x1xf32>
    %127 = vector.broadcast %126 : vector<8x1xf32> to vector<8x8xf32>
    %128 = arith.subf %124, %127 : vector<8x8xf32>
    %129 = math.exp %128 : vector<8x8xf32>
    %cst_65 = arith.constant dense<0.000000e+00> : vector<8xf32>
    %130 = vector.multi_reduction <add>, %129, %cst_65 [1] : vector<8x8xf32> to vector<8xf32>
    %131 = vector.shape_cast %130 : vector<8xf32> to vector<8x1xf32>
    %132 = tpu.reciprocal %131 {approx = true} : vector<8x1xf32> -> vector<8x1xf32>
    %133 = vector.broadcast %132 : vector<8x1xf32> to vector<8x8xf32>
    %134 = arith.mulf %129, %133 : vector<8x8xf32>
    %135 = arith.truncf %134 : vector<8x8xf32> to vector<8x8xbf16>
    %c0_66 = arith.constant 0 : index
    %c3 = arith.constant 3 : index
    %c0_67 = arith.constant 0 : index
    %c0_68 = arith.constant 0 : index
    %136 = vector.load %arg22[%c0_66, %c3, %c0_67, %c0_68] : memref<1x4x8x8xbf16, #tpu.memory_space<vmem>>, vector<1x1x8x8xbf16>
    %137 = vector.shape_cast %136 : vector<1x1x8x8xbf16> to vector<8x8xbf16>
    %138 = vector.shape_cast %135 : vector<8x8xbf16> to vector<1x1x8x8xbf16>
    tpu.vector_store %arg22[%c0_66, %c3, %c0_67, %c0_68], %138 {strides = array<i32>} : memref<1x4x8x8xbf16, #tpu.memory_space<vmem>>, vector<1x1x8x8xbf16>,
    %139 = arith.truncf %134 : vector<8x8xf32> to vector<8x8xbf16>
    %cst_69 = arith.constant dense<0.000000e+00> : vector<8x8xf32>
    %140 = tpu.matmul %139, %122, %cst_69 {dimension_numbers = #tpu.dot_dimension_numbers<[1], [0], [0], [1], [0, 0, 1, 1], [], []>} : vector<8x8xbf16>, vector<8x8xbf16>, vector<8x8xf32> -> vector<8x8xf32>
    %141 = arith.truncf %140 : vector<8x8xf32> to vector<8x8xbf16>
    %c0_70 = arith.constant 0 : index
    %c24_71 = arith.constant 24 : index
    %142 = vector.load %arg25[%c0_70, %c24_71] : memref<8x32xbf16, #tpu.memory_space<vmem>>, vector<8x8xbf16>
    tpu.vector_store %arg25[%c0_70, %c24_71], %141 {strides = array<i32>} : memref<8x32xbf16, #tpu.memory_space<vmem>>, vector<8x8xbf16>,
    %c0_72 = arith.constant 0 : index
    %c0_73 = arith.constant 0 : index
    %143 = vector.load %arg25[%c0_72, %c0_73] : memref<8x32xbf16, #tpu.memory_space<vmem>>, vector<8x32xbf16>
    %c0_74 = arith.constant 0 : index
    %c0_75 = arith.constant 0 : index
    %144 = vector.load %arg13[%c0_74, %c0_75] : memref<32x32xbf16, #tpu.memory_space<vmem>>, vector<32x32xbf16>
    %cst_76 = arith.constant dense<0.000000e+00> : vector<8x32xf32>
    %145 = tpu.matmul %143, %144, %cst_76 {dimension_numbers = #tpu.dot_dimension_numbers<[1], [0], [0], [1], [0, 0, 1, 1], [], []>} : vector<8x32xbf16>, vector<32x32xbf16>, vector<8x32xf32> -> vector<8x32xf32>
    %c0_77 = arith.constant 0 : index
    %c0_78 = arith.constant 0 : index
    %146 = vector.load %arg14[%c0_77, %c0_78] : memref<1x32xf32, #tpu.memory_space<vmem>>, vector<1x32xf32>
    %147 = vector.shape_cast %146 : vector<1x32xf32> to vector<32xf32>
    %148 = vector.shape_cast %147 : vector<32xf32> to vector<1x32xf32>
    %149 = vector.broadcast %148 : vector<1x32xf32> to vector<8x32xf32>
    %150 = arith.addf %145, %149 : vector<8x32xf32>
    %151 = arith.addf %150, %11 : vector<8x32xf32>
    %152 = vector.broadcast %15 : vector<8x1xf32> to vector<8x32xf32>
    %153 = arith.mulf %151, %152 : vector<8x32xf32>
    %c0_79 = arith.constant 0 : index
    %c0_80 = arith.constant 0 : index
    %154 = vector.load %arg15[%c0_79, %c0_80] : memref<1x32xf32, #tpu.memory_space<vmem>>, vector<1x32xf32>
    %155 = vector.shape_cast %154 : vector<1x32xf32> to vector<32xf32>
    %c0_81 = arith.constant 0 : index
    %c0_82 = arith.constant 0 : index
    %156 = vector.load %arg16[%c0_81, %c0_82] : memref<1x32xf32, #tpu.memory_space<vmem>>, vector<1x32xf32>
    %157 = vector.shape_cast %156 : vector<1x32xf32> to vector<32xf32>
    %cst_83 = arith.constant dense<0.000000e+00> : vector<8xf32>
    %158 = vector.multi_reduction <add>, %153, %cst_83 [1] : vector<8x32xf32> to vector<8xf32>
    %159 = vector.shape_cast %158 : vector<8xf32> to vector<8x1xf32>
    %cst_84 = arith.constant 3.200000e+01 : f32
    %160 = vector.broadcast %cst_84 : f32 to vector<8x1xf32>
    %161 = arith.divf %159, %160 : vector<8x1xf32>
    %162 = vector.broadcast %161 : vector<8x1xf32> to vector<8x32xf32>
    %163 = arith.subf %153, %162 : vector<8x32xf32>
    %164 = arith.mulf %163, %163 : vector<8x32xf32>
    %cst_85 = arith.constant dense<0.000000e+00> : vector<8xf32>
    %165 = vector.multi_reduction <add>, %164, %cst_85 [1] : vector<8x32xf32> to vector<8xf32>
    %166 = vector.shape_cast %165 : vector<8xf32> to vector<8x1xf32>
    %cst_86 = arith.constant 3.200000e+01 : f32
    %167 = vector.broadcast %cst_86 : f32 to vector<8x1xf32>
    %168 = arith.divf %166, %167 : vector<8x1xf32>
    %169 = vector.broadcast %161 : vector<8x1xf32> to vector<8x32xf32>
    %170 = arith.subf %153, %169 : vector<8x32xf32>
    %cst_87 = arith.constant 9.99999974E-6 : f32
    %171 = vector.broadcast %cst_87 : f32 to vector<8x1xf32>
    %172 = arith.addf %168, %171 : vector<8x1xf32>
    %173 = math.rsqrt %172 : vector<8x1xf32>
    %174 = vector.broadcast %173 : vector<8x1xf32> to vector<8x32xf32>
    %175 = arith.mulf %170, %174 : vector<8x32xf32>
    %176 = vector.shape_cast %155 : vector<32xf32> to vector<1x32xf32>
    %177 = vector.broadcast %176 : vector<1x32xf32> to vector<8x32xf32>
    %178 = arith.mulf %175, %177 : vector<8x32xf32>
    %179 = vector.shape_cast %157 : vector<32xf32> to vector<1x32xf32>
    %180 = vector.broadcast %179 : vector<1x32xf32> to vector<8x32xf32>
    %181 = arith.addf %178, %180 : vector<8x32xf32>
    %182 = arith.truncf %181 : vector<8x32xf32> to vector<8x32xbf16>
    %c0_88 = arith.constant 0 : index
    %c0_89 = arith.constant 0 : index
    %183 = vector.load %arg18[%c0_88, %c0_89] : memref<1x64xf32, #tpu.memory_space<vmem>>, vector<1x64xf32>
    %184 = vector.shape_cast %183 : vector<1x64xf32> to vector<64xf32>
    %c0_90 = arith.constant 0 : index
    %c0_91 = arith.constant 0 : index
    %185 = vector.load %arg20[%c0_90, %c0_91] : memref<1x32xf32, #tpu.memory_space<vmem>>, vector<1x32xf32>
    %186 = vector.shape_cast %185 : vector<1x32xf32> to vector<32xf32>
    %187 = vector.shape_cast %186 : vector<32xf32> to vector<1x32xf32>
    %188 = vector.broadcast %187 : vector<1x32xf32> to vector<8x32xf32>
    %189 = arith.addf %153, %188 : vector<8x32xf32>
    %c0_92 = arith.constant 0 : index
    %c0_93 = arith.constant 0 : index
    %190 = vector.load %arg17[%c0_92, %c0_93] : memref<32x64xbf16, #tpu.memory_space<vmem>>, vector<32x64xbf16>
    %cst_94 = arith.constant dense<0.000000e+00> : vector<8x64xf32>
    %191 = tpu.matmul %182, %190, %cst_94 {dimension_numbers = #tpu.dot_dimension_numbers<[1], [0], [0], [1], [0, 0, 1, 1], [], []>} : vector<8x32xbf16>, vector<32x64xbf16>, vector<8x64xf32> -> vector<8x64xf32>
    %192 = vector.shape_cast %184 : vector<64xf32> to vector<1x64xf32>
    %193 = vector.broadcast %192 : vector<1x64xf32> to vector<8x64xf32>
    %194 = arith.addf %191, %193 : vector<8x64xf32>
    %cst_95 = arith.constant 0.000000e+00 : f32
    %195 = vector.broadcast %cst_95 : f32 to vector<8x64xf32>
    %196 = arith.maximumf %194, %195 : vector<8x64xf32>
    %197 = arith.truncf %196 : vector<8x64xf32> to vector<8x64xbf16>
    %c0_96 = arith.constant 0 : index
    %c0_97 = arith.constant 0 : index
    %198 = vector.load %arg19[%c0_96, %c0_97] : memref<64x32xbf16, #tpu.memory_space<vmem>>, vector<64x32xbf16>
    %cst_98 = arith.constant dense<0.000000e+00> : vector<8x32xf32>
    %199 = tpu.matmul %197, %198, %cst_98 {dimension_numbers = #tpu.dot_dimension_numbers<[1], [0], [0], [1], [0, 0, 1, 1], [], []>} : vector<8x64xbf16>, vector<64x32xbf16>, vector<8x32xf32> -> vector<8x32xf32>
    %200 = arith.addf %189, %199 : vector<8x32xf32>
    %201 = vector.broadcast %15 : vector<8x1xf32> to vector<8x32xf32>
    %202 = arith.mulf %200, %201 : vector<8x32xf32>
    %c0_99 = arith.constant 0 : index
    %c0_100 = arith.constant 0 : index
    %c0_101 = arith.constant 0 : index
    %203 = vector.load %arg21[%c0_99, %c0_100, %c0_101] : memref<1x8x32xf32, #tpu.memory_space<vmem>>, vector<1x8x32xf32>
    %204 = vector.shape_cast %203 : vector<1x8x32xf32> to vector<8x32xf32>
    %205 = vector.shape_cast %202 : vector<8x32xf32> to vector<1x8x32xf32>
    tpu.vector_store %arg21[%c0_99, %c0_100, %c0_101], %205 {strides = array<i32>} : memref<1x8x32xf32, #tpu.memory_space<vmem>>, vector<1x8x32xf32>,
    return
  }
  func.func @transform_0(%arg0: i32, %arg1: i32) -> (i32, i32, i32) {
    %c0_i32 = arith.constant 0 : i32
    %c0_i32_0 = arith.constant 0 : i32
    %c0_i32_1 = arith.constant 0 : i32
    return %arg0, %c0_i32, %c0_i32_0 : i32, i32, i32
  }
  func.func @transform_1(%arg0: i32, %arg1: i32) -> (i32, i32, i32) {
    %c0_i32 = arith.constant 0 : i32
    %c0_i32_0 = arith.constant 0 : i32
    return %arg0, %arg1, %c0_i32 : i32, i32, i32
  }
  func.func @transform_2(%arg0: i32, %arg1: i32) -> (i32, i32, i32) {
    %c0_i32 = arith.constant 0 : i32
    %c0_i32_0 = arith.constant 0 : i32
    return %arg0, %arg1, %c0_i32 : i32, i32, i32
  }
  func.func @transform_3(%arg0: i32, %arg1: i32) -> (i32, i32) {
    %c0_i32 = arith.constant 0 : i32
    %c0_i32_0 = arith.constant 0 : i32
    %c0_i32_1 = arith.constant 0 : i32
    return %c0_i32, %c0_i32_0 : i32, i32
  }
  func.func @transform_4(%arg0: i32, %arg1: i32) -> (i32, i32) {
    %c0_i32 = arith.constant 0 : i32
    %c0_i32_0 = arith.constant 0 : i32
    %c0_i32_1 = arith.constant 0 : i32
    return %c0_i32, %c0_i32_0 : i32, i32
  }
  func.func @transform_5(%arg0: i32, %arg1: i32) -> (i32, i32) {
    %c0_i32 = arith.constant 0 : i32
    %c0_i32_0 = arith.constant 0 : i32
    %c0_i32_1 = arith.constant 0 : i32
    return %c0_i32, %c0_i32_0 : i32, i32
  }
  func.func @transform_6(%arg0: i32, %arg1: i32) -> (i32, i32) {
    %c0_i32 = arith.constant 0 : i32
    %c0_i32_0 = arith.constant 0 : i32
    %c0_i32_1 = arith.constant 0 : i32
    return %c0_i32, %c0_i32_0 : i32, i32
  }
  func.func @transform_7(%arg0: i32, %arg1: i32) -> (i32, i32) {
    %c0_i32 = arith.constant 0 : i32
    %c0_i32_0 = arith.constant 0 : i32
    %c0_i32_1 = arith.constant 0 : i32
    return %c0_i32, %c0_i32_0 : i32, i32
  }
  func.func @transform_8(%arg0: i32, %arg1: i32) -> (i32, i32) {
    %c0_i32 = arith.constant 0 : i32
    %c0_i32_0 = arith.constant 0 : i32
    %c0_i32_1 = arith.constant 0 : i32
    return %c0_i32, %c0_i32_0 : i32, i32
  }
  func.func @transform_9(%arg0: i32, %arg1: i32) -> (i32, i32) {
    %c0_i32 = arith.constant 0 : i32
    %c0_i32_0 = arith.constant 0 : i32
    %c0_i32_1 = arith.constant 0 : i32
    return %c0_i32, %c0_i32_0 : i32, i32
  }
  func.func @transform_10(%arg0: i32, %arg1: i32) -> (i32, i32) {
    %c0_i32 = arith.constant 0 : i32
    %c0_i32_0 = arith.constant 0 : i32
    %c0_i32_1 = arith.constant 0 : i32
    return %c0_i32, %c0_i32_0 : i32, i32
  }
  func.func @transform_11(%arg0: i32, %arg1: i32) -> (i32, i32) {
    %c0_i32 = arith.constant 0 : i32
    %c0_i32_0 = arith.constant 0 : i32
    %c0_i32_1 = arith.constant 0 : i32
    return %c0_i32, %c0_i32_0 : i32, i32
  }
  func.func @transform_12(%arg0: i32, %arg1: i32) -> (i32, i32) {
    %c0_i32 = arith.constant 0 : i32
    %c0_i32_0 = arith.constant 0 : i32
    %c0_i32_1 = arith.constant 0 : i32
    return %c0_i32, %c0_i32_0 : i32, i32
  }
  func.func @transform_13(%arg0: i32, %arg1: i32) -> (i32, i32) {
    %c0_i32 = arith.constant 0 : i32
    %c0_i32_0 = arith.constant 0 : i32
    %c0_i32_1 = arith.constant 0 : i32
    return %c0_i32, %c0_i32_0 : i32, i32
  }
  func.func @transform_14(%arg0: i32, %arg1: i32) -> (i32, i32) {
    %c0_i32 = arith.constant 0 : i32
    %c0_i32_0 = arith.constant 0 : i32
    %c0_i32_1 = arith.constant 0 : i32
    return %c0_i32, %c0_i32_0 : i32, i32
  }
  func.func @transform_15(%arg0: i32, %arg1: i32) -> (i32, i32) {
    %c0_i32 = arith.constant 0 : i32
    %c0_i32_0 = arith.constant 0 : i32
    %c0_i32_1 = arith.constant 0 : i32
    return %c0_i32, %c0_i32_0 : i32, i32
  }
  func.func @transform_16(%arg0: i32, %arg1: i32) -> (i32, i32) {
    %c0_i32 = arith.constant 0 : i32
    %c0_i32_0 = arith.constant 0 : i32
    %c0_i32_1 = arith.constant 0 : i32
    return %c0_i32, %c0_i32_0 : i32, i32
  }
  func.func @transform_17(%arg0: i32, %arg1: i32) -> (i32, i32) {
    %c0_i32 = arith.constant 0 : i32
    %c0_i32_0 = arith.constant 0 : i32
    %c0_i32_1 = arith.constant 0 : i32
    return %c0_i32, %c0_i32_0 : i32, i32
  }
  func.func @transform_18(%arg0: i32, %arg1: i32) -> (i32, i32) {
    %c0_i32 = arith.constant 0 : i32
    %c0_i32_0 = arith.constant 0 : i32
    %c0_i32_1 = arith.constant 0 : i32
    return %c0_i32, %c0_i32_0 : i32, i32
  }
  func.func @transform_19(%arg0: i32, %arg1: i32) -> (i32, i32, i32) {
    %c0_i32 = arith.constant 0 : i32
    %c0_i32_0 = arith.constant 0 : i32
    return %arg0, %arg1, %c0_i32 : i32, i32, i32
  }
  func.func @transform_20(%arg0: i32, %arg1: i32) -> (i32, i32, i32, i32) {
    %c0_i32 = arith.constant 0 : i32
    %c0_i32_0 = arith.constant 0 : i32
    %c0_i32_1 = arith.constant 0 : i32
    return %arg0, %c0_i32, %arg1, %c0_i32_0 : i32, i32, i32, i32
  }
}

</mosaic_0001>

<llo_original>
// kernel: tpu_custom_call.1
$region0: #{tpu_custom_call.1}
  #allocation0 [shape = 'u32[]', space=smem, size = 0x4, offset = 0x4, fixed_abs, tag = 'smem constant byte address 0x4 - core index']
  #allocation1 [shape = 'u32[72,128]{1,0:T(1,128)}', space=vmem, size = 0x9000, scoped, tag = 'internal scratch']
  #allocation2 [shape = 'bf16[8,32]{1,0:T(8,128)(2,1)}', space=vmem, size = 0x800, scoped, tag = 'scratch operand']
  #allocation3 [shape = 'bf16[8,32]{1,0:T(8,128)(2,1)}', space=vmem, size = 0x800, scoped, tag = 'scratch operand']
  #allocation4 [shape = 'bf16[8,32]{1,0:T(8,128)(2,1)}', space=vmem, size = 0x800, scoped, tag = 'scratch operand']
  %s0 = inlined_call_operand.vmem [shape: f32[2,8,32], index: 0, kind: input, shape index: {}]
  %s1 = inlined_call_operand.vmem [shape: f32[2,8,8], index: 1, kind: input, shape index: {}]
  %s2 = inlined_call_operand.vmem [shape: f32[2,8,1], index: 2, kind: input, shape index: {}]
  %s3 = inlined_call_operand.hbm [shape: f32[1,32], index: 3, kind: input, shape index: {}]
  %s4 = inlined_call_operand.hbm [shape: f32[1,32], index: 4, kind: input, shape index: {}]
  %s5 = inlined_call_operand.vmem [shape: bf16[32,32], index: 5, kind: input, shape index: {}]
  %s6 = inlined_call_operand.hbm [shape: f32[1,32], index: 6, kind: input, shape index: {}]
  %s7 = inlined_call_operand.vmem [shape: bf16[32,32], index: 7, kind: input, shape index: {}]
  %s8 = inlined_call_operand.hbm [shape: f32[1,32], index: 8, kind: input, shape index: {}]
  %s9 = inlined_call_operand.hbm [shape: bf16[32,32], index: 9, kind: input, shape index: {}]
  %s10 = inlined_call_operand.hbm [shape: f32[1,32], index: 10, kind: input, shape index: {}]
  %s11 = inlined_call_operand.hbm [shape: bf16[32,32], index: 11, kind: input, shape index: {}]
  %s12 = inlined_call_operand.hbm [shape: f32[1,32], index: 12, kind: input, shape index: {}]
  %s13 = inlined_call_operand.hbm [shape: f32[1,32], index: 13, kind: input, shape index: {}]
  %s14 = inlined_call_operand.hbm [shape: f32[1,32], index: 14, kind: input, shape index: {}]
  %s15 = inlined_call_operand.hbm [shape: bf16[32,64], index: 15, kind: input, shape index: {}]
  %s16 = inlined_call_operand.vmem [shape: f32[1,64], index: 16, kind: input, shape index: {}]
  %s17 = inlined_call_operand.vmem [shape: bf16[64,32], index: 17, kind: input, shape index: {}]
  %s18 = inlined_call_operand.vmem [shape: f32[1,32], index: 18, kind: input, shape index: {}]
  %s19 = inlined_call_operand.hbm [shape: f32[2,8,32], index: 19, kind: output, shape index: {0}]
  %s20 = inlined_call_operand.hbm [shape: bf16[2,4,8,8], index: 20, kind: output, shape index: {1}]
  %21 = xla_tuple %s19, %s20
  %s22 = sld [smem:[#allocation0]]
  $region165: #{tpu_custom_call.1} parent=0
    _
  %s24 = ssub.s32 1, %s22
  %s25 = scalar_select 0, %s24, %s22
  $region1: #{tpu_custom_call.1} parent=0
    #allocation5 [shape = 'u8[512]{0}', space=vmem, size = 0x400, scoped, tag = 'input window, operand 3, single buffered']
    #allocation6 [shape = 's32[2]{0}', space=sflag, size = 0x8, scoped, tag = 'scoped memory for tpu_custom_call.1']
    #allocation7 [shape = 's32[2]{0}', space=sflag, size = 0x8, scoped, tag = 'scoped memory for tpu_custom_call.1']
    #allocation8 [shape = 'u8[512]{0}', space=vmem, size = 0x400, scoped, tag = 'input window, operand 4, single buffered']
    #allocation9 [shape = 's32[1]{0}', space=sflag, size = 0x4, scoped, tag = 'scoped memory for tpu_custom_call.1']
    #allocation10 [shape = 'u8[512]{0}', space=vmem, size = 0x400, scoped, tag = 'input window, operand 6, single buffered']
    #allocation11 [shape = 'u8[512]{0}', space=vmem, size = 0x400, scoped, tag = 'input window, operand 8, single buffered']
    #allocation12 [shape = 's32[1]{0}', space=sflag, size = 0x4, scoped, tag = 'scoped memory for tpu_custom_call.1']
    #allocation13 [shape = 'u8[8192]{0}', space=vmem, size = 0x2000, scoped, tag = 'input window, operand 9, single buffered']
    #allocation14 [shape = 'u8[512]{0}', space=vmem, size = 0x400, scoped, tag = 'input window, operand 10, single buffered']
    #allocation15 [shape = 's32[1]{0}', space=sflag, size = 0x4, scoped, tag = 'scoped memory for tpu_custom_call.1']
    #allocation16 [shape = 'u8[8192]{0}', space=vmem, size = 0x2000, scoped, tag = 'input window, operand 11, single buffered']
    #allocation17 [shape = 'u8[512]{0}', space=vmem, size = 0x400, scoped, tag = 'input window, operand 12, single buffered']
    #allocation18 [shape = 's32[1]{0}', space=sflag, size = 0x4, scoped, tag = 'scoped memory for tpu_custom_call.1']
    #allocation19 [shape = 'u8[512]{0}', space=vmem, size = 0x400, scoped, tag = 'input window, operand 13, single buffered']
    #allocation20 [shape = 'u8[512]{0}', space=vmem, size = 0x400, scoped, tag = 'input window, operand 14, single buffered']
    #allocation21 [shape = 's32[1]{0}', space=sflag, size = 0x4, scoped, tag = 'scoped memory for tpu_custom_call.1']
    #allocation22 [shape = 'u8[8192]{0}', space=vmem, size = 0x2000, scoped, tag = 'input window, operand 15, single buffered']
    #allocation23 [shape = 'u8[8192]{0}', space=vmem, size = 0x2000, scoped, tag = 'output window, operand 0']
    #allocation24 [shape = 'u8[16384]{0}', space=vmem, size = 0x4000, scoped, tag = 'output window, operand 1']
    #allocation25 [shape = 's32[2]{0}', space=sflag, size = 0x8, scoped, tag = 'scoped memory for tpu_custom_call.1']
    %26 = vsyncpa [#allocation6], 0
    %27 = vsyncpa [#allocation9], 0
    %28 = vsyncpa [#allocation12], 0
    %29 = vsyncpa [#allocation15], 0
    %30 = vsyncpa [#allocation18], 0
    %31 = vsyncpa [#allocation21], 0
    %32 = vsyncpa [#allocation7], 0
    %s33 = scalar_lea.sflag [#allocation7], 1
    %34 = vsyncpa %s33, 0
    %35 = vsyncpa [#allocation25], 0
    %s36 = scalar_lea.sflag [#allocation25], 1
    %37 = vsyncpa %s36, 0
    loop: start=0, step=1, limit=4
    $region2: #{tpu_custom_call.1} parent=1 // loop_pre_header
      _
    $region3: #{tpu_custom_call.1} parent=1 // loop_header
      %s39 = sphi 0, %s43
      %p40 = scmp.ge.s32.totalorder %s39, 4
      %s46 = sphi 0, %s58
      %s47 = sphi 0, %s54
      %s48 = sphi 0, %s46
      %s49 = sphi 0, %s47
      %s50 = sphi 0, %s48
      %s51 = sphi 0, %s49
      %s61 = sphi 0, %s63
      %s64 = sphi 0, %s61
      %s65 = sphi 0, %s64
      %s81 = sphi 0, %s65
      %s89 = sphi 0, %s91
      %s92 = sphi 0, %s89
      %s93 = sphi 0, %s92
      %s109 = sphi 0, %s93
      %s117 = sphi 0, %s119
      %s120 = sphi 0, %s117
      %s121 = sphi 0, %s120
      %s137 = sphi 0, %s121
      %s141 = sphi 0, %s141
      %s143 = sphi 0, %s141
      %s144 = sphi 0, %s143
      %s158 = sphi 0, %s144
      %s162 = sphi 0, %s162
      %s164 = sphi 0, %s162
      %s165 = sphi 0, %s164
      %s179 = sphi 0, %s165
      %s183 = sphi 0, %s183
      %s185 = sphi 0, %s183
      %s186 = sphi 0, %s185
      %s200 = sphi 0, %s186
      %s204 = sphi 0, %s204
      %s206 = sphi 0, %s204
      %s207 = sphi 0, %s206
      %s221 = sphi 0, %s207
      %s225 = sphi 0, %s225
      %s227 = sphi 0, %s225
      %s228 = sphi 0, %s227
      %s242 = sphi 0, %s228
      %s246 = sphi 0, %s246
      %s248 = sphi 0, %s246
      %s249 = sphi 0, %s248
      %s263 = sphi 0, %s249
      %s267 = sphi 0, %s267
      %s269 = sphi 0, %s267
      %s270 = sphi 0, %s269
      %s284 = sphi 0, %s270
      %s288 = sphi 0, %s288
      %s290 = sphi 0, %s288
      %s291 = sphi 0, %s290
      %s305 = sphi 0, %s291
      %s309 = sphi 0, %s309
      %s311 = sphi 0, %s309
      %s312 = sphi 0, %s311
      %s326 = sphi 0, %s312
      %s330 = sphi 0, %s330
      %s332 = sphi 0, %s330
      %s333 = sphi 0, %s332
      %s347 = sphi 0, %s333
      %s351 = sphi 0, %s351
      %s353 = sphi 0, %s351
      %s354 = sphi 0, %s353
      %s368 = sphi 0, %s354
      %s372 = sphi 0, %s372
      %s374 = sphi 0, %s372
      %s375 = sphi 0, %s374
      %s389 = sphi 0, %s375
      %s393 = sphi 0, %s393
      %s395 = sphi 0, %s393
      %s396 = sphi 0, %s395
      %s410 = sphi 0, %s396
      %s414 = sphi 0, %s414
      %s416 = sphi 0, %s414
      %s417 = sphi 0, %s416
      %s431 = sphi 0, %s417
      %s435 = sphi 0, %s435
      %s437 = sphi 0, %s435
      %s438 = sphi 0, %s437
      %s452 = sphi 0, %s438
      %s456 = sphi 0, %s456
      %s458 = sphi 0, %s456
      %s459 = sphi 0, %s458
      %s473 = sphi 0, %s459
      %s481 = sphi 0, %s483
      %s484 = sphi 0, %s481
      %s485 = sphi 0, %s484
      %s501 = sphi 0, %s485
      %s509 = sphi 0, %s511
      %s512 = sphi 0, %s509
      %s513 = sphi 0, %s512
      %s529 = sphi 0, %s513
    $region4: #{tpu_custom_call.1} parent=1 // loop_header_branch
      %42 = sbr.rel (%p40) target = $region8
    $region5: #{tpu_custom_call.1} parent=1 // loop_body
      %s44 = ssub.s32 %s39, 1
      %s45 = ssub.s32 %s39, 2
      %s52 = sadd.s32 1, %s47
      %p53 = scmp.ge.s32.totalorder %s52, 1
      %s54 = scalar_select %p53, 0, %s52
      %s55 = sadd.s32 1, %s46
      %s56 = scalar_select %p53, %s55, %s46
      %p57 = scmp.ge.s32.totalorder %s56, 2
      %s58 = scalar_select %p57, 0, %s56
      %s59 = ssub.s32 %s46, %s58
      %p60 = scmp.eq.s32.totalorder %s59, 0
      %s62 = sadd.s32 %s61, 1
      %s63 = scalar_select %p60, %s61, %s62
      %p66 = pneg %p60
      %p67 = scmp.eq.s32.totalorder %s39, 1
      %p68 = por %p66, %p67
      %p69 = scmp.ne.s32.totalorder %s61, %s64
      %p70 = scmp.eq.s32.totalorder %s39, 0
      %p71 = por %p69, %p70
      %p72 = scmp.ne.s32.totalorder %s61, %s64
      %p73 = scmp.eq.s32.totalorder %s44, 1
      %p74 = por %p72, %p73
      %p75 = scmp.ne.s32.totalorder %s64, %s65
      %p76 = scmp.eq.s32.totalorder %s44, 0
      %p77 = por %p75, %p76
      %p78 = scmp.ne.s32.totalorder %s64, %s65
      %p79 = scmp.eq.s32.totalorder %s45, 1
      %p80 = por %p78, %p79
      %p82 = scmp.ne.s32.totalorder %s65, %s81
      %p83 = scmp.eq.s32.totalorder %s45, 0
      %p84 = por %p82, %p83
      %s85 = ssub.s32 %s46, %s58
      %s86 = ssub.s32 %s47, %s54
      %s87 = sor.u32 %s85, %s86
      %p88 = scmp.eq.s32.totalorder %s87, 0
      %s90 = sadd.s32 %s89, 1
      %s91 = scalar_select %p88, %s89, %s90
      %p94 = pneg %p88
      %p95 = scmp.eq.s32.totalorder %s39, 1
      %p96 = por %p94, %p95
      %p97 = scmp.ne.s32.totalorder %s89, %s92
      %p98 = scmp.eq.s32.totalorder %s39, 0
      %p99 = por %p97, %p98
      %p100 = scmp.ne.s32.totalorder %s89, %s92
      %p101 = scmp.eq.s32.totalorder %s44, 1
      %p102 = por %p100, %p101
      %p103 = scmp.ne.s32.totalorder %s92, %s93
      %p104 = scmp.eq.s32.totalorder %s44, 0
      %p105 = por %p103, %p104
      %p106 = scmp.ne.s32.totalorder %s92, %s93
      %p107 = scmp.eq.s32.totalorder %s45, 1
      %p108 = por %p106, %p107
      %p110 = scmp.ne.s32.totalorder %s93, %s109
      %p111 = scmp.eq.s32.totalorder %s45, 0
      %p112 = por %p110, %p111
      %s113 = ssub.s32 %s46, %s58
      %s114 = ssub.s32 %s47, %s54
      %s115 = sor.u32 %s113, %s114
      %p116 = scmp.eq.s32.totalorder %s115, 0
      %s118 = sadd.s32 %s117, 1
      %s119 = scalar_select %p116, %s117, %s118
      %p122 = pneg %p116
      %p123 = scmp.eq.s32.totalorder %s39, 1
      %p124 = por %p122, %p123
      %p125 = scmp.ne.s32.totalorder %s117, %s120
      %p126 = scmp.eq.s32.totalorder %s39, 0
      %p127 = por %p125, %p126
      %p128 = scmp.ne.s32.totalorder %s117, %s120
      %p129 = scmp.eq.s32.totalorder %s44, 1
      %p130 = por %p128, %p129
      %p131 = scmp.ne.s32.totalorder %s120, %s121
      %p132 = scmp.eq.s32.totalorder %s44, 0
      %p133 = por %p131, %p132
      %p134 = scmp.ne.s32.totalorder %s120, %s121
      %p135 = scmp.eq.s32.totalorder %s45, 1
      %p136 = por %p134, %p135
      %p138 = scmp.ne.s32.totalorder %s121, %s137
      %p139 = scmp.eq.s32.totalorder %s45, 0
      %p140 = por %p138, %p139
      %s142 = sadd.s32 %s141, 1
      %p145 = scmp.eq.s32.totalorder %s39, 1
      %p146 = scmp.ne.s32.totalorder %s141, %s143
      %p147 = scmp.eq.s32.totalorder %s39, 0
      %p148 = por %p146, %p147
      %p149 = scmp.ne.s32.totalorder %s141, %s143
      %p150 = scmp.eq.s32.totalorder %s44, 1
      %p151 = por %p149, %p150
      %p152 = scmp.ne.s32.totalorder %s143, %s144
      %p153 = scmp.eq.s32.totalorder %s44, 0
      %p154 = por %p152, %p153
      %p155 = scmp.ne.s32.totalorder %s143, %s144
      %p156 = scmp.eq.s32.totalorder %s45, 1
      %p157 = por %p155, %p156
      %p159 = scmp.ne.s32.totalorder %s144, %s158
      %p160 = scmp.eq.s32.totalorder %s45, 0
      %p161 = por %p159, %p160
      %s163 = sadd.s32 %s162, 1
      %p166 = scmp.eq.s32.totalorder %s39, 1
      %p167 = scmp.ne.s32.totalorder %s162, %s164
      %p168 = scmp.eq.s32.totalorder %s39, 0
      %p169 = por %p167, %p168
      %p170 = scmp.ne.s32.totalorder %s162, %s164
      %p171 = scmp.eq.s32.totalorder %s44, 1
      %p172 = por %p170, %p171
      %p173 = scmp.ne.s32.totalorder %s164, %s165
      %p174 = scmp.eq.s32.totalorder %s44, 0
      %p175 = por %p173, %p174
      %p176 = scmp.ne.s32.totalorder %s164, %s165
      %p177 = scmp.eq.s32.totalorder %s45, 1
      %p178 = por %p176, %p177
      %p180 = scmp.ne.s32.totalorder %s165, %s179
      %p181 = scmp.eq.s32.totalorder %s45, 0
      %p182 = por %p180, %p181
      %s184 = sadd.s32 %s183, 1
      %p187 = scmp.eq.s32.totalorder %s39, 1
      %p188 = scmp.ne.s32.totalorder %s183, %s185
      %p189 = scmp.eq.s32.totalorder %s39, 0
      %p190 = por %p188, %p189
      %p191 = scmp.ne.s32.totalorder %s183, %s185
      %p192 = scmp.eq.s32.totalorder %s44, 1
      %p193 = por %p191, %p192
      %p194 = scmp.ne.s32.totalorder %s185, %s186
      %p195 = scmp.eq.s32.totalorder %s44, 0
      %p196 = por %p194, %p195
      %p197 = scmp.ne.s32.totalorder %s185, %s186
      %p198 = scmp.eq.s32.totalorder %s45, 1
      %p199 = por %p197, %p198
      %p201 = scmp.ne.s32.totalorder %s186, %s200
      %p202 = scmp.eq.s32.totalorder %s45, 0
      %p203 = por %p201, %p202
      %s205 = sadd.s32 %s204, 1
      %p208 = scmp.eq.s32.totalorder %s39, 1
      %p209 = scmp.ne.s32.totalorder %s204, %s206
      %p210 = scmp.eq.s32.totalorder %s39, 0
      %p211 = por %p209, %p210
      %p212 = scmp.ne.s32.totalorder %s204, %s206
      %p213 = scmp.eq.s32.totalorder %s44, 1
      %p214 = por %p212, %p213
      %p215 = scmp.ne.s32.totalorder %s206, %s207
      %p216 = scmp.eq.s32.totalorder %s44, 0
      %p217 = por %p215, %p216
      %p218 = scmp.ne.s32.totalorder %s206, %s207
      %p219 = scmp.eq.s32.totalorder %s45, 1
      %p220 = por %p218, %p219
      %p222 = scmp.ne.s32.totalorder %s207, %s221
      %p223 = scmp.eq.s32.totalorder %s45, 0
      %p224 = por %p222, %p223
      %s226 = sadd.s32 %s225, 1
      %p229 = scmp.eq.s32.totalorder %s39, 1
      %p230 = scmp.ne.s32.totalorder %s225, %s227
      %p231 = scmp.eq.s32.totalorder %s39, 0
      %p232 = por %p230, %p231
      %p233 = scmp.ne.s32.totalorder %s225, %s227
      %p234 = scmp.eq.s32.totalorder %s44, 1
      %p235 = por %p233, %p234
      %p236 = scmp.ne.s32.totalorder %s227, %s228
      %p237 = scmp.eq.s32.totalorder %s44, 0
      %p238 = por %p236, %p237
      %p239 = scmp.ne.s32.totalorder %s227, %s228
      %p240 = scmp.eq.s32.totalorder %s45, 1
      %p241 = por %p239, %p240
      %p243 = scmp.ne.s32.totalorder %s228, %s242
      %p244 = scmp.eq.s32.totalorder %s45, 0
      %p245 = por %p243, %p244
      %s247 = sadd.s32 %s246, 1
      %p250 = scmp.eq.s32.totalorder %s39, 1
      %p251 = scmp.ne.s32.totalorder %s246, %s248
      %p252 = scmp.eq.s32.totalorder %s39, 0
      %p253 = por %p251, %p252
      %p254 = scmp.ne.s32.totalorder %s246, %s248
      %p255 = scmp.eq.s32.totalorder %s44, 1
      %p256 = por %p254, %p255
      %p257 = scmp.ne.s32.totalorder %s248, %s249
      %p258 = scmp.eq.s32.totalorder %s44, 0
      %p259 = por %p257, %p258
      %p260 = scmp.ne.s32.totalorder %s248, %s249
      %p261 = scmp.eq.s32.totalorder %s45, 1
      %p262 = por %p260, %p261
      %p264 = scmp.ne.s32.totalorder %s249, %s263
      %p265 = scmp.eq.s32.totalorder %s45, 0
      %p266 = por %p264, %p265
      %s268 = sadd.s32 %s267, 1
      %p271 = scmp.eq.s32.totalorder %s39, 1
      %p272 = scmp.ne.s32.totalorder %s267, %s269
      %p273 = scmp.eq.s32.totalorder %s39, 0
      %p274 = por %p272, %p273
      %p275 = scmp.ne.s32.totalorder %s267, %s269
      %p276 = scmp.eq.s32.totalorder %s44, 1
      %p277 = por %p275, %p276
      %p278 = scmp.ne.s32.totalorder %s269, %s270
      %p279 = scmp.eq.s32.totalorder %s44, 0
      %p280 = por %p278, %p279
      %p281 = scmp.ne.s32.totalorder %s269, %s270
      %p282 = scmp.eq.s32.totalorder %s45, 1
      %p283 = por %p281, %p282
      %p285 = scmp.ne.s32.totalorder %s270, %s284
      %p286 = scmp.eq.s32.totalorder %s45, 0
      %p287 = por %p285, %p286
      %s289 = sadd.s32 %s288, 1
      %p292 = scmp.eq.s32.totalorder %s39, 1
      %p293 = scmp.ne.s32.totalorder %s288, %s290
      %p294 = scmp.eq.s32.totalorder %s39, 0
      %p295 = por %p293, %p294
      %p296 = scmp.ne.s32.totalorder %s288, %s290
      %p297 = scmp.eq.s32.totalorder %s44, 1
      %p298 = por %p296, %p297
      %p299 = scmp.ne.s32.totalorder %s290, %s291
      %p300 = scmp.eq.s32.totalorder %s44, 0
      %p301 = por %p299, %p300
      %p302 = scmp.ne.s32.totalorder %s290, %s291
      %p303 = scmp.eq.s32.totalorder %s45, 1
      %p304 = por %p302, %p303
      %p306 = scmp.ne.s32.totalorder %s291, %s305
      %p307 = scmp.eq.s32.totalorder %s45, 0
      %p308 = por %p306, %p307
      %s310 = sadd.s32 %s309, 1
      %p313 = scmp.eq.s32.totalorder %s39, 1
      %p314 = scmp.ne.s32.totalorder %s309, %s311
      %p315 = scmp.eq.s32.totalorder %s39, 0
      %p316 = por %p314, %p315
      %p317 = scmp.ne.s32.totalorder %s309, %s311
      %p318 = scmp.eq.s32.totalorder %s44, 1
      %p319 = por %p317, %p318
      %p320 = scmp.ne.s32.totalorder %s311, %s312
      %p321 = scmp.eq.s32.totalorder %s44, 0
      %p322 = por %p320, %p321
      %p323 = scmp.ne.s32.totalorder %s311, %s312
      %p324 = scmp.eq.s32.totalorder %s45, 1
      %p325 = por %p323, %p324
      %p327 = scmp.ne.s32.totalorder %s312, %s326
      %p328 = scmp.eq.s32.totalorder %s45, 0
      %p329 = por %p327, %p328
      %s331 = sadd.s32 %s330, 1
      %p334 = scmp.eq.s32.totalorder %s39, 1
      %p335 = scmp.ne.s32.totalorder %s330, %s332
      %p336 = scmp.eq.s32.totalorder %s39, 0
      %p337 = por %p335, %p336
      %p338 = scmp.ne.s32.totalorder %s330, %s332
      %p339 = scmp.eq.s32.totalorder %s44, 1
      %p340 = por %p338, %p339
      %p341 = scmp.ne.s32.totalorder %s332, %s333
      %p342 = scmp.eq.s32.totalorder %s44, 0
      %p343 = por %p341, %p342
      %p344 = scmp.ne.s32.totalorder %s332, %s333
      %p345 = scmp.eq.s32.totalorder %s45, 1
      %p346 = por %p344, %p345
      %p348 = scmp.ne.s32.totalorder %s333, %s347
      %p349 = scmp.eq.s32.totalorder %s45, 0
      %p350 = por %p348, %p349
      %s352 = sadd.s32 %s351, 1
      %p355 = scmp.eq.s32.totalorder %s39, 1
      %p356 = scmp.ne.s32.totalorder %s351, %s353
      %p357 = scmp.eq.s32.totalorder %s39, 0
      %p358 = por %p356, %p357
      %p359 = scmp.ne.s32.totalorder %s351, %s353
      %p360 = scmp.eq.s32.totalorder %s44, 1
      %p361 = por %p359, %p360
      %p362 = scmp.ne.s32.totalorder %s353, %s354
      %p363 = scmp.eq.s32.totalorder %s44, 0
      %p364 = por %p362, %p363
      %p365 = scmp.ne.s32.totalorder %s353, %s354
      %p366 = scmp.eq.s32.totalorder %s45, 1
      %p367 = por %p365, %p366
      %p369 = scmp.ne.s32.totalorder %s354, %s368
      %p370 = scmp.eq.s32.totalorder %s45, 0
      %p371 = por %p369, %p370
      %s373 = sadd.s32 %s372, 1
      %p376 = scmp.eq.s32.totalorder %s39, 1
      %p377 = scmp.ne.s32.totalorder %s372, %s374
      %p378 = scmp.eq.s32.totalorder %s39, 0
      %p379 = por %p377, %p378
      %p380 = scmp.ne.s32.totalorder %s372, %s374
      %p381 = scmp.eq.s32.totalorder %s44, 1
      %p382 = por %p380, %p381
      %p383 = scmp.ne.s32.totalorder %s374, %s375
      %p384 = scmp.eq.s32.totalorder %s44, 0
      %p385 = por %p383, %p384
      %p386 = scmp.ne.s32.totalorder %s374, %s375
      %p387 = scmp.eq.s32.totalorder %s45, 1
      %p388 = por %p386, %p387
      %p390 = scmp.ne.s32.totalorder %s375, %s389
      %p391 = scmp.eq.s32.totalorder %s45, 0
      %p392 = por %p390, %p391
      %s394 = sadd.s32 %s393, 1
      %p397 = scmp.eq.s32.totalorder %s39, 1
      %p398 = scmp.ne.s32.totalorder %s393, %s395
      %p399 = scmp.eq.s32.totalorder %s39, 0
      %p400 = por %p398, %p399
      %p401 = scmp.ne.s32.totalorder %s393, %s395
      %p402 = scmp.eq.s32.totalorder %s44, 1
      %p403 = por %p401, %p402
      %p404 = scmp.ne.s32.totalorder %s395, %s396
      %p405 = scmp.eq.s32.totalorder %s44, 0
      %p406 = por %p404, %p405
      %p407 = scmp.ne.s32.totalorder %s395, %s396
      %p408 = scmp.eq.s32.totalorder %s45, 1
      %p409 = por %p407, %p408
      %p411 = scmp.ne.s32.totalorder %s396, %s410
      %p412 = scmp.eq.s32.totalorder %s45, 0
      %p413 = por %p411, %p412
      %s415 = sadd.s32 %s414, 1
      %p418 = scmp.eq.s32.totalorder %s39, 1
      %p419 = scmp.ne.s32.totalorder %s414, %s416
      %p420 = scmp.eq.s32.totalorder %s39, 0
      %p421 = por %p419, %p420
      %p422 = scmp.ne.s32.totalorder %s414, %s416
      %p423 = scmp.eq.s32.totalorder %s44, 1
      %p424 = por %p422, %p423
      %p425 = scmp.ne.s32.totalorder %s416, %s417
      %p426 = scmp.eq.s32.totalorder %s44, 0
      %p427 = por %p425, %p426
      %p428 = scmp.ne.s32.totalorder %s416, %s417
      %p429 = scmp.eq.s32.totalorder %s45, 1
      %p430 = por %p428, %p429
      %p432 = scmp.ne.s32.totalorder %s417, %s431
      %p433 = scmp.eq.s32.totalorder %s45, 0
      %p434 = por %p432, %p433
      %s436 = sadd.s32 %s435, 1
      %p439 = scmp.eq.s32.totalorder %s39, 1
      %p440 = scmp.ne.s32.totalorder %s435, %s437
      %p441 = scmp.eq.s32.totalorder %s39, 0
      %p442 = por %p440, %p441
      %p443 = scmp.ne.s32.totalorder %s435, %s437
      %p444 = scmp.eq.s32.totalorder %s44, 1
      %p445 = por %p443, %p444
      %p446 = scmp.ne.s32.totalorder %s437, %s438
      %p447 = scmp.eq.s32.totalorder %s44, 0
      %p448 = por %p446, %p447
      %p449 = scmp.ne.s32.totalorder %s437, %s438
      %p450 = scmp.eq.s32.totalorder %s45, 1
      %p451 = por %p449, %p450
      %p453 = scmp.ne.s32.totalorder %s438, %s452
      %p454 = scmp.eq.s32.totalorder %s45, 0
      %p455 = por %p453, %p454
      %s457 = sadd.s32 %s456, 1
      %p460 = scmp.eq.s32.totalorder %s39, 1
      %p461 = scmp.ne.s32.totalorder %s456, %s458
      %p462 = scmp.eq.s32.totalorder %s39, 0
      %p463 = por %p461, %p462
      %p464 = scmp.ne.s32.totalorder %s456, %s458
      %p465 = scmp.eq.s32.totalorder %s44, 1
      %p466 = por %p464, %p465
      %p467 = scmp.ne.s32.totalorder %s458, %s459
      %p468 = scmp.eq.s32.totalorder %s44, 0
      %p469 = por %p467, %p468
      %p470 = scmp.ne.s32.totalorder %s458, %s459
      %p471 = scmp.eq.s32.totalorder %s45, 1
      %p472 = por %p470, %p471
      %p474 = scmp.ne.s32.totalorder %s459, %s473
      %p475 = scmp.eq.s32.totalorder %s45, 0
      %p476 = por %p474, %p475
      %s477 = ssub.s32 %s46, %s58
      %s478 = ssub.s32 %s47, %s54
      %s479 = sor.u32 %s477, %s478
      %p480 = scmp.eq.s32.totalorder %s479, 0
      %s482 = sadd.s32 %s481, 1
      %s483 = scalar_select %p480, %s481, %s482
      %p486 = pneg %p480
      %p487 = scmp.eq.s32.totalorder %s39, 1
      %p488 = por %p486, %p487
      %p489 = scmp.ne.s32.totalorder %s481, %s484
      %p490 = scmp.eq.s32.totalorder %s39, 0
      %p491 = por %p489, %p490
      %p492 = scmp.ne.s32.totalorder %s481, %s484
      %p493 = scmp.eq.s32.totalorder %s44, 1
      %p494 = por %p492, %p493
      %p495 = scmp.ne.s32.totalorder %s484, %s485
      %p496 = scmp.eq.s32.totalorder %s44, 0
      %p497 = por %p495, %p496
      %p498 = scmp.ne.s32.totalorder %s484, %s485
      %p499 = scmp.eq.s32.totalorder %s45, 1
      %p500 = por %p498, %p499
      %p502 = scmp.ne.s32.totalorder %s485, %s501
      %p503 = scmp.eq.s32.totalorder %s45, 0
      %p504 = por %p502, %p503
      %s505 = ssub.s32 %s46, %s58
      %s506 = ssub.s32 %s47, %s54
      %s507 = sor.u32 %s505, %s506
      %p508 = scmp.eq.s32.totalorder %s507, 0
      %s510 = sadd.s32 %s509, 1
      %s511 = scalar_select %p508, %s509, %s510
      %p514 = pneg %p508
      %p515 = scmp.eq.s32.totalorder %s39, 1
      %p516 = por %p514, %p515
      %p517 = scmp.ne.s32.totalorder %s509, %s512
      %p518 = scmp.eq.s32.totalorder %s39, 0
      %p519 = por %p517, %p518
      %p520 = scmp.ne.s32.totalorder %s509, %s512
      %p521 = scmp.eq.s32.totalorder %s44, 1
      %p522 = por %p520, %p521
      %p523 = scmp.ne.s32.totalorder %s512, %s513
      %p524 = scmp.eq.s32.totalorder %s44, 0
      %p525 = por %p523, %p524
      %p526 = scmp.ne.s32.totalorder %s512, %s513
      %p527 = scmp.eq.s32.totalorder %s45, 1
      %p528 = por %p526, %p527
      %p530 = scmp.ne.s32.totalorder %s513, %s529
      %p531 = scmp.eq.s32.totalorder %s45, 0
      %p532 = por %p530, %p531
      %p533 = scmp.le.s32.totalorder 1, %s39
      %p534 = scmp.lt.s32.totalorder %s39, 3
      %p535 = pnand %p533, %p534
      %p536 = pneg %p535
      // Predicated region
      $region9: #{tpu_custom_call.1} parent=5 // pred_check
        _
      $region10: #{tpu_custom_call.1} parent=5 // pred_check_branch
        %538 = sbr.rel (%p535) target = $region12
      $region11: #{tpu_custom_call.1} parent=5 // pred_region
        %s539 = ssub.s32 %s39, 1
        // Predicated region
        $region13: #{tpu_custom_call.1} parent=11 // pred_check
          %p540 = pneg %p154
        $region14: #{tpu_custom_call.1} parent=11 // pred_check_branch
          %542 = sbr.rel (%p540) target = $region16
        $region15: #{tpu_custom_call.1} parent=11 // pred_region
          %544 = vsyncadd [#allocation6], 0
          %s546 = sshll.u32 %s3, 4
          %s547 = int_to_ptr.hbm [resolvable:$true] %s546
          %s548 = sshll.u32 [#allocation5], 4
          %s549 = int_to_ptr.vmem [resolvable:$true] %s548
          %551 = dma.hbm_to_vmem [thread:$0]  %s547, 16, %s549, [#allocation6]
        $region16: #{tpu_custom_call.1} parent=11 // pred_fallthru
          _
        // Predicated region
        $region17: #{tpu_custom_call.1} parent=11 // pred_check
          %p552 = pneg %p175
        $region18: #{tpu_custom_call.1} parent=11 // pred_check_branch
          %554 = sbr.rel (%p552) target = $region20
        $region19: #{tpu_custom_call.1} parent=11 // pred_region
          %556 = vsyncadd [#allocation9], 0
          %s558 = sshll.u32 %s4, 4
          %s559 = int_to_ptr.hbm [resolvable:$true] %s558
          %s560 = sshll.u32 [#allocation8], 4
          %s561 = int_to_ptr.vmem [resolvable:$true] %s560
          %563 = dma.hbm_to_vmem [thread:$0]  %s559, 16, %s561, [#allocation9]
        $region20: #{tpu_custom_call.1} parent=11 // pred_fallthru
          _
        // Predicated region
        $region21: #{tpu_custom_call.1} parent=11 // pred_check
          %p564 = pneg %p196
        $region22: #{tpu_custom_call.1} parent=11 // pred_check_branch
          %566 = sbr.rel (%p564) target = $region24
        $region23: #{tpu_custom_call.1} parent=11 // pred_region
          _
        $region24: #{tpu_custom_call.1} parent=11 // pred_fallthru
          _
        // Predicated region
        $region25: #{tpu_custom_call.1} parent=11 // pred_check
          %p567 = pneg %p217
        $region26: #{tpu_custom_call.1} parent=11 // pred_check_branch
          %569 = sbr.rel (%p567) target = $region28
        $region27: #{tpu_custom_call.1} parent=11 // pred_region
          %571 = vsyncadd [#allocation9], 0
          %s573 = sshll.u32 %s6, 4
          %s574 = int_to_ptr.hbm [resolvable:$true] %s573
          %s575 = sshll.u32 [#allocation10], 4
          %s576 = int_to_ptr.vmem [resolvable:$true] %s575
          %578 = dma.hbm_to_vmem [thread:$0]  %s574, 16, %s576, [#allocation9]
        $region28: #{tpu_custom_call.1} parent=11 // pred_fallthru
          _
        // Predicated region
        $region29: #{tpu_custom_call.1} parent=11 // pred_check
          %p579 = pneg %p238
        $region30: #{tpu_custom_call.1} parent=11 // pred_check_branch
          %581 = sbr.rel (%p579) target = $region32
        $region31: #{tpu_custom_call.1} parent=11 // pred_region
          _
        $region32: #{tpu_custom_call.1} parent=11 // pred_fallthru
          _
        // Predicated region
        $region33: #{tpu_custom_call.1} parent=11 // pred_check
          %p582 = pneg %p259
        $region34: #{tpu_custom_call.1} parent=11 // pred_check_branch
          %584 = sbr.rel (%p582) target = $region36
        $region35: #{tpu_custom_call.1} parent=11 // pred_region
          %586 = vsyncadd [#allocation12], 0
          %s588 = sshll.u32 %s8, 4
          %s589 = int_to_ptr.hbm [resolvable:$true] %s588
          %s590 = sshll.u32 [#allocation11], 4
          %s591 = int_to_ptr.vmem [resolvable:$true] %s590
          %593 = dma.hbm_to_vmem [thread:$0]  %s589, 16, %s591, [#allocation12]
        $region36: #{tpu_custom_call.1} parent=11 // pred_fallthru
          _
        // Predicated region
        $region37: #{tpu_custom_call.1} parent=11 // pred_check
          %p594 = pneg %p280
        $region38: #{tpu_custom_call.1} parent=11 // pred_check_branch
          %596 = sbr.rel (%p594) target = $region40
        $region39: #{tpu_custom_call.1} parent=11 // pred_region
          %598 = vsyncadd [#allocation12], 0
          %s599 = sshll.u32 %s9, 4
          %s600 = int_to_ptr.hbm [resolvable:$true] %s599
          %s601 = sshll.u32 [#allocation13], 4
          %s602 = int_to_ptr.vmem [resolvable:$true] %s601
          %607 = dma.hbm_to_vmem [thread:$0]  %s600, 256, %s602, [#allocation12], 64, 64, 4
        $region40: #{tpu_custom_call.1} parent=11 // pred_fallthru
          _
        // Predicated region
        $region41: #{tpu_custom_call.1} parent=11 // pred_check
          %p608 = pneg %p301
        $region42: #{tpu_custom_call.1} parent=11 // pred_check_branch
          %610 = sbr.rel (%p608) target = $region44
        $region43: #{tpu_custom_call.1} parent=11 // pred_region
          %612 = vsyncadd [#allocation15], 0
          %s614 = sshll.u32 %s10, 4
          %s615 = int_to_ptr.hbm [resolvable:$true] %s614
          %s616 = sshll.u32 [#allocation14], 4
          %s617 = int_to_ptr.vmem [resolvable:$true] %s616
          %619 = dma.hbm_to_vmem [thread:$0]  %s615, 16, %s617, [#allocation15]
        $region44: #{tpu_custom_call.1} parent=11 // pred_fallthru
          _
        // Predicated region
        $region45: #{tpu_custom_call.1} parent=11 // pred_check
          %p620 = pneg %p322
        $region46: #{tpu_custom_call.1} parent=11 // pred_check_branch
          %622 = sbr.rel (%p620) target = $region48
        $region47: #{tpu_custom_call.1} parent=11 // pred_region
          %624 = vsyncadd [#allocation15], 0
          %s625 = sshll.u32 %s11, 4
          %s626 = int_to_ptr.hbm [resolvable:$true] %s625
          %s627 = sshll.u32 [#allocation16], 4
          %s628 = int_to_ptr.vmem [resolvable:$true] %s627
          %633 = dma.hbm_to_vmem [thread:$0]  %s626, 256, %s628, [#allocation15], 64, 64, 4
        $region48: #{tpu_custom_call.1} parent=11 // pred_fallthru
          _
        // Predicated region
        $region49: #{tpu_custom_call.1} parent=11 // pred_check
          %p634 = pneg %p343
        $region50: #{tpu_custom_call.1} parent=11 // pred_check_branch
          %636 = sbr.rel (%p634) target = $region52
        $region51: #{tpu_custom_call.1} parent=11 // pred_region
          %638 = vsyncadd [#allocation18], 0
          %s640 = sshll.u32 %s12, 4
          %s641 = int_to_ptr.hbm [resolvable:$true] %s640
          %s642 = sshll.u32 [#allocation17], 4
          %s643 = int_to_ptr.vmem [resolvable:$true] %s642
          %645 = dma.hbm_to_vmem [thread:$0]  %s641, 16, %s643, [#allocation18]
        $region52: #{tpu_custom_call.1} parent=11 // pred_fallthru
          _
        // Predicated region
        $region53: #{tpu_custom_call.1} parent=11 // pred_check
          %p646 = pneg %p364
        $region54: #{tpu_custom_call.1} parent=11 // pred_check_branch
          %648 = sbr.rel (%p646) target = $region56
        $region55: #{tpu_custom_call.1} parent=11 // pred_region
          %650 = vsyncadd [#allocation18], 0
          %s652 = sshll.u32 %s13, 4
          %s653 = int_to_ptr.hbm [resolvable:$true] %s652
          %s654 = sshll.u32 [#allocation19], 4
          %s655 = int_to_ptr.vmem [resolvable:$true] %s654
          %657 = dma.hbm_to_vmem [thread:$0]  %s653, 16, %s655, [#allocation18]
        $region56: #{tpu_custom_call.1} parent=11 // pred_fallthru
          _
        // Predicated region
        $region57: #{tpu_custom_call.1} parent=11 // pred_check
          %p658 = pneg %p385
        $region58: #{tpu_custom_call.1} parent=11 // pred_check_branch
          %660 = sbr.rel (%p658) target = $region60
        $region59: #{tpu_custom_call.1} parent=11 // pred_region
          %662 = vsyncadd [#allocation21], 0
          %s664 = sshll.u32 %s14, 4
          %s665 = int_to_ptr.hbm [resolvable:$true] %s664
          %s666 = sshll.u32 [#allocation20], 4
          %s667 = int_to_ptr.vmem [resolvable:$true] %s666
          %669 = dma.hbm_to_vmem [thread:$0]  %s665, 16, %s667, [#allocation21]
        $region60: #{tpu_custom_call.1} parent=11 // pred_fallthru
          _
        // Predicated region
        $region61: #{tpu_custom_call.1} parent=11 // pred_check
          %p670 = pneg %p406
        $region62: #{tpu_custom_call.1} parent=11 // pred_check_branch
          %672 = sbr.rel (%p670) target = $region64
        $region63: #{tpu_custom_call.1} parent=11 // pred_region
          %674 = vsyncadd [#allocation21], 0
          %s675 = sshll.u32 %s15, 4
          %s676 = int_to_ptr.hbm [resolvable:$true] %s675
          %s677 = sshll.u32 [#allocation22], 4
          %s678 = int_to_ptr.vmem [resolvable:$true] %s677
          %683 = dma.hbm_to_vmem [thread:$0]  %s676, 256, %s678, [#allocation21], 64, 64, 4
        $region64: #{tpu_custom_call.1} parent=11 // pred_fallthru
          _
        // Predicated region
        $region65: #{tpu_custom_call.1} parent=11 // pred_check
          %p684 = pneg %p427
        $region66: #{tpu_custom_call.1} parent=11 // pred_check_branch
          %686 = sbr.rel (%p684) target = $region68
        $region67: #{tpu_custom_call.1} parent=11 // pred_region
          _
        $region68: #{tpu_custom_call.1} parent=11 // pred_fallthru
          _
        // Predicated region
        $region69: #{tpu_custom_call.1} parent=11 // pred_check
          %p687 = pneg %p448
        $region70: #{tpu_custom_call.1} parent=11 // pred_check_branch
          %689 = sbr.rel (%p687) target = $region72
        $region71: #{tpu_custom_call.1} parent=11 // pred_region
          _
        $region72: #{tpu_custom_call.1} parent=11 // pred_fallthru
          _
        // Predicated region
        $region73: #{tpu_custom_call.1} parent=11 // pred_check
          %p690 = pneg %p469
        $region74: #{tpu_custom_call.1} parent=11 // pred_check_branch
          %692 = sbr.rel (%p690) target = $region76
        $region75: #{tpu_custom_call.1} parent=11 // pred_region
          _
        $region76: #{tpu_custom_call.1} parent=11 // pred_fallthru
          _
      $region12: #{tpu_custom_call.1} parent=5 // pred_fallthru
        _
      %p693 = scmp.lt.s32.totalorder %s39, 2
      // Predicated region
      $region77: #{tpu_custom_call.1} parent=5 // pred_check
        %p694 = pneg %p693
      $region78: #{tpu_custom_call.1} parent=5 // pred_check_branch
        %696 = sbr.rel (%p694) target = $region80
      $region79: #{tpu_custom_call.1} parent=5 // pred_region
        // Predicated region
        $region81: #{tpu_custom_call.1} parent=79 // pred_check
          %p697 = pneg %p71
        $region82: #{tpu_custom_call.1} parent=79 // pred_check_branch
          %699 = sbr.rel (%p697) target = $region84
        $region83: #{tpu_custom_call.1} parent=79 // pred_region
          %p700 = scmp.lt.s32.totalorder %s46, 1
          %s701 = scalar_select %p700, %s46, 1
          %s702 = smul.addr %s701, 8
          %s703 = scalar_lea.vmem %s0, %s702
        $region84: #{tpu_custom_call.1} parent=79 // pred_fallthru
          _
        // Predicated region
        $region85: #{tpu_custom_call.1} parent=79 // pred_check
          %p704 = pneg %p99
        $region86: #{tpu_custom_call.1} parent=79 // pred_check_branch
          %706 = sbr.rel (%p704) target = $region88
        $region87: #{tpu_custom_call.1} parent=79 // pred_region
          %p707 = scmp.lt.s32.totalorder %s46, 1
          %s708 = scalar_select %p707, %s46, 1
          %p709 = scmp.lt.s32.totalorder %s47, 0
          %s710 = scalar_select %p709, %s47, 0
          %s711 = sadd.s32 %s710, %s708
          %s712 = smul.addr %s711, 8
          %s713 = scalar_lea.vmem %s1, %s712
        $region88: #{tpu_custom_call.1} parent=79 // pred_fallthru
          _
        // Predicated region
        $region89: #{tpu_custom_call.1} parent=79 // pred_check
          %p714 = pneg %p127
        $region90: #{tpu_custom_call.1} parent=79 // pred_check_branch
          %716 = sbr.rel (%p714) target = $region92
        $region91: #{tpu_custom_call.1} parent=79 // pred_region
          %p717 = scmp.lt.s32.totalorder %s46, 1
          %s718 = scalar_select %p717, %s46, 1
          %p719 = scmp.lt.s32.totalorder %s47, 0
          %s720 = scalar_select %p719, %s47, 0
          %s721 = sadd.s32 %s720, %s718
          %s722 = smul.addr %s721, 8
          %s723 = scalar_lea.vmem %s2, %s722
        $region92: #{tpu_custom_call.1} parent=79 // pred_fallthru
          _
      $region80: #{tpu_custom_call.1} parent=5 // pred_fallthru
        _
      %p724 = scmp.le.s32.totalorder 1, %s39
      %p725 = scmp.lt.s32.totalorder %s39, 3
      %p726 = pnand %p724, %p725
      %p727 = pneg %p726
      // Predicated region
      $region93: #{tpu_custom_call.1} parent=5 // pred_check
        _
      $region94: #{tpu_custom_call.1} parent=5 // pred_check_branch
        %729 = sbr.rel (%p726) target = $region96
      $region95: #{tpu_custom_call.1} parent=5 // pred_region
        %s730 = ssub.s32 %s39, 1
        // Predicated region
        $region97: #{tpu_custom_call.1} parent=95 // pred_check
          %p731 = pneg %p154
        $region98: #{tpu_custom_call.1} parent=95 // pred_check_branch
          %733 = sbr.rel (%p731) target = $region100
        $region99: #{tpu_custom_call.1} parent=95 // pred_region
          %735 = dma.done [#allocation6], 16
        $region100: #{tpu_custom_call.1} parent=95 // pred_fallthru
          _
        // Predicated region
        $region101: #{tpu_custom_call.1} parent=95 // pred_check
          %p736 = pneg %p175
        $region102: #{tpu_custom_call.1} parent=95 // pred_check_branch
          %738 = sbr.rel (%p736) target = $region104
        $region103: #{tpu_custom_call.1} parent=95 // pred_region
          %740 = dma.done [#allocation9], 16
        $region104: #{tpu_custom_call.1} parent=95 // pred_fallthru
          _
        // Predicated region
        $region105: #{tpu_custom_call.1} parent=95 // pred_check
          %p741 = pneg %p217
        $region106: #{tpu_custom_call.1} parent=95 // pred_check_branch
          %743 = sbr.rel (%p741) target = $region108
        $region107: #{tpu_custom_call.1} parent=95 // pred_region
          %745 = dma.done [#allocation9], 16
        $region108: #{tpu_custom_call.1} parent=95 // pred_fallthru
          _
        // Predicated region
        $region109: #{tpu_custom_call.1} parent=95 // pred_check
          %p746 = pneg %p259
        $region110: #{tpu_custom_call.1} parent=95 // pred_check_branch
          %748 = sbr.rel (%p746) target = $region112
        $region111: #{tpu_custom_call.1} parent=95 // pred_region
          %750 = dma.done [#allocation12], 16
        $region112: #{tpu_custom_call.1} parent=95 // pred_fallthru
          _
        // Predicated region
        $region113: #{tpu_custom_call.1} parent=95 // pred_check
          %p751 = pneg %p280
        $region114: #{tpu_custom_call.1} parent=95 // pred_check_branch
          %753 = sbr.rel (%p751) target = $region116
        $region115: #{tpu_custom_call.1} parent=95 // pred_region
          %755 = dma.done [#allocation12], 256
        $region116: #{tpu_custom_call.1} parent=95 // pred_fallthru
          _
        // Predicated region
        $region117: #{tpu_custom_call.1} parent=95 // pred_check
          %p756 = pneg %p301
        $region118: #{tpu_custom_call.1} parent=95 // pred_check_branch
          %758 = sbr.rel (%p756) target = $region120
        $region119: #{tpu_custom_call.1} parent=95 // pred_region
          %760 = dma.done [#allocation15], 16
        $region120: #{tpu_custom_call.1} parent=95 // pred_fallthru
          _
        // Predicated region
        $region121: #{tpu_custom_call.1} parent=95 // pred_check
          %p761 = pneg %p322
        $region122: #{tpu_custom_call.1} parent=95 // pred_check_branch
          %763 = sbr.rel (%p761) target = $region124
        $region123: #{tpu_custom_call.1} parent=95 // pred_region
          %765 = dma.done [#allocation15], 256
        $region124: #{tpu_custom_call.1} parent=95 // pred_fallthru
          _
        // Predicated region
        $region125: #{tpu_custom_call.1} parent=95 // pred_check
          %p766 = pneg %p343
        $region126: #{tpu_custom_call.1} parent=95 // pred_check_branch
          %768 = sbr.rel (%p766) target = $region128
        $region127: #{tpu_custom_call.1} parent=95 // pred_region
          %770 = dma.done [#allocation18], 16
        $region128: #{tpu_custom_call.1} parent=95 // pred_fallthru
          _
        // Predicated region
        $region129: #{tpu_custom_call.1} parent=95 // pred_check
          %p771 = pneg %p364
        $region130: #{tpu_custom_call.1} parent=95 // pred_check_branch
          %773 = sbr.rel (%p771) target = $region132
        $region131: #{tpu_custom_call.1} parent=95 // pred_region
          %775 = dma.done [#allocation18], 16
        $region132: #{tpu_custom_call.1} parent=95 // pred_fallthru
          _
        // Predicated region
        $region133: #{tpu_custom_call.1} parent=95 // pred_check
          %p776 = pneg %p385
        $region134: #{tpu_custom_call.1} parent=95 // pred_check_branch
          %778 = sbr.rel (%p776) target = $region136
        $region135: #{tpu_custom_call.1} parent=95 // pred_region
          %780 = dma.done [#allocation21], 16
        $region136: #{tpu_custom_call.1} parent=95 // pred_fallthru
          _
        // Predicated region
        $region137: #{tpu_custom_call.1} parent=95 // pred_check
          %p781 = pneg %p406
        $region138: #{tpu_custom_call.1} parent=95 // pred_check_branch
          %783 = sbr.rel (%p781) target = $region140
        $region139: #{tpu_custom_call.1} parent=95 // pred_region
          %785 = dma.done [#allocation21], 256
        $region140: #{tpu_custom_call.1} parent=95 // pred_fallthru
          _
        %p786 = scmp.lt.s32.totalorder %s48, 1
        %s787 = scalar_select %p786, %s48, 1
        %s788 = smul.addr %s787, 8
        %s789 = scalar_lea.vmem %s0, %s788
        %p790 = pneg %p77
        %p791 = pneg %p74
        %p792 = scmp.lt.s32.totalorder %s48, 1
        %s793 = scalar_select %p792, %s48, 1
        %p794 = scmp.lt.s32.totalorder %s49, 0
        %s795 = scalar_select %p794, %s49, 0
        %s796 = sadd.s32 %s795, %s793
        %s797 = smul.addr %s796, 8
        %s798 = scalar_lea.vmem %s1, %s797
        %p799 = pneg %p105
        %p800 = pneg %p102
        %p801 = scmp.lt.s32.totalorder %s48, 1
        %s802 = scalar_select %p801, %s48, 1
        %p803 = scmp.lt.s32.totalorder %s49, 0
        %s804 = scalar_select %p803, %s49, 0
        %s805 = sadd.s32 %s804, %s802
        %s806 = smul.addr %s805, 8
        %s807 = scalar_lea.vmem %s2, %s806
        %p808 = pneg %p133
        %p809 = pneg %p130
        %p810 = pneg %p154
        %p811 = pneg %p151
        %p812 = pneg %p175
        %p813 = pneg %p172
        %p814 = pneg %p196
        %p815 = pneg %p193
        %p816 = pneg %p217
        %p817 = pneg %p214
        %p818 = pneg %p238
        %p819 = pneg %p235
        %p820 = pneg %p259
        %p821 = pneg %p256
        %p822 = pneg %p280
        %p823 = pneg %p277
        %p824 = pneg %p301
        %p825 = pneg %p298
        %p826 = pneg %p322
        %p827 = pneg %p319
        %p828 = pneg %p343
        %p829 = pneg %p340
        %p830 = pneg %p364
        %p831 = pneg %p361
        %p832 = pneg %p385
        %p833 = pneg %p382
        %p834 = pneg %p406
        %p835 = pneg %p403
        %p836 = pneg %p427
        %p837 = pneg %p424
        %p838 = pneg %p448
        %p839 = pneg %p445
        %p840 = pneg %p469
        %p841 = pneg %p466
        %p842 = pneg %p497
        %p843 = pneg %p494
        %s844 = sand.u32 %s484, 1
        %s845 = scalar_lea.sflag [#allocation7], %s844
        %s846 = sand.u32 %s484, 1
        %s847 = smul.addr %s846, 8
        %s848 = scalar_lea.vmem [#allocation23], %s847
        %p849 = pneg %p525
        %p850 = pneg %p522
        %s851 = sand.u32 %s512, 1
        %s852 = scalar_lea.sflag [#allocation25], %s851
        %s853 = sand.u32 %s512, 1
        %s854 = smul.addr %s853, 16
        %s855 = scalar_lea.vmem [#allocation24], %s854
        %p856 = scmp.lt.s32.totalorder %s48, 1
        %s857 = scalar_select %p856, %s48, 1
        %s858 = smul.addr %s857, 8
        %s859 = scalar_lea.vmem %s0, %s858
        %p860 = scmp.lt.s32.totalorder %s48, 1
        %s861 = scalar_select %p860, %s48, 1
        %p862 = scmp.lt.s32.totalorder %s49, 0
        %s863 = scalar_select %p862, %s49, 0
        %s864 = sadd.s32 %s863, %s861
        %s865 = smul.addr %s864, 8
        %s866 = scalar_lea.vmem %s1, %s865
        %p867 = scmp.lt.s32.totalorder %s48, 1
        %s868 = scalar_select %p867, %s48, 1
        %p869 = scmp.lt.s32.totalorder %s49, 0
        %s870 = scalar_select %p869, %s49, 0
        %s871 = sadd.s32 %s870, %s868
        %s872 = smul.addr %s871, 8
        %s873 = scalar_lea.vmem %s2, %s872
        %v875 = vld [vmem:[#allocation5] sm:$0x1]
        %v876 = vld [vmem:[#allocation8] sm:$0x1]
        %p877 = scmp.eq.s32.totalorder %s49, 0
        // Predicated region
        $region141: #{tpu_custom_call.1} parent=95 // pred_check
          %p878 = pneg %p877
        $region142: #{tpu_custom_call.1} parent=95 // pred_check_branch
          %880 = sbr.rel (%p878) target = $region144
        $region143: #{tpu_custom_call.1} parent=95 // pred_region
          %v881 = vld [vmem:[%s859] sm:$0xff]
          %vm882 = vcmask 261120
          %v883 = vsel %vm882, %v881, 0.0
          %884 = vadd.xlane.f32.xlu0 %v883
          %v885 = vpop.xlane.xlu0 %884
          %v886 = vrcp.pop 32.0
          %v887 = vmul.f32 32.0, %v886
          %v888 = vsub.f32 1.0, %v887
          %v889 = vmul.f32 %v886, %v888
          %v890 = vadd.f32 %v886, %v889
          %vm891 = vweird.f32 %v886
          %v892 = vsel %vm891, %v886, %v890
          %v893 = vmul.f32 %v885, %v892
          %v894 = vsub.f32 %v881, %v893
          %v895 = vmul.f32 %v894, %v894
          %v896 = vsel %vm882, %v895, 0.0
          %897 = vadd.xlane.f32.xlu0 %v896
          %v898 = vpop.xlane.xlu0 %897
          %v899 = vmul.f32 %v898, %v892
          %v900 = vadd.f32 %v899, 1e-05
          %v901 = vrsqrt.pop %v900
          %v902 = vmul.f32 %v901, %v900
          %v903 = vmul.f32 %v902, %v901
          %v904 = vmul.f32 0.5, %v903
          %v905 = vsub.f32 1.5, %v904
          %v906 = vmul.f32 %v901, %v905
          %vm907 = vweird.f32 %v900
          %vm908 = vweird.f32 %v901
          %vm909 = vmor %vm907, %vm908
          %v910 = vsel %vm909, %v901, %v906
          %v911 = vmul.f32 %v894, %v910
          %v913 = vperm.slane %v875, 0
          %v915 = vmul.f32 %v911, %v913
          %v917 = vperm.slane %v876, 0
          %v919 = vadd.f32 %v915, %v917
          %v920 = vpack.c.bf16 %v919, %v919
          %v921 = vld [vmem:[%s7] sm:$0xf]
          %v922 = vld [vmem:[%s7 + $0x4] sm:$0xf]
          %v923 = vld [vmem:[%s7 + $0x8] sm:$0xf]
          %v924 = vld [vmem:[%s7 + $0xc] sm:$0xf]
          %v925 = vld [vmem:[#allocation11] sm:$0x1]
          %v927 = vperm.slane %v925, 0
          %v933 = vunpack.c.l.b16 %v921
          %v934 = vunpack.c.l.b16 %v922
          %v935 = vunpack.c.l.b16 %v923
          %v936 = vunpack.c.l.b16 %v924
          %v937 = vpack.c.b16 %v934, %v933
          %v938 = vpack.c.b16 %v936, %v935
          %v942 = vsel %vm882, %v920, 0
          %944 = vmatpush.bf16.msra.mxu0 0
          %945 = vmatpush.bf16.msra.mxu0 0
          %946 = vmatpush.bf16.msra.mxu0 0
          %947 = vmatpush.bf16.msra.mxu0 0
          %948 = vmatpush.bf16.msra.mxu0 0
          %949 = vmatpush.bf16.msra.mxu0 0
          %950 = vmatpush.bf16.msra.mxu0 %v938
          %951 = vmatpush.bf16.msra.mxu0 %v937
          %952 = vmatmul.bf16.gmra.mxu0 %v942
          %v953 = vpop.f32.mrf.mxu0
          %v954 = vadd.f32 %v927, %v953
          %v955 = vpop.f32.mrf.mxu0
          %956 = vdwg.mxu0
          %v957 = vpack.c.bf16 %v954, %v954
          %vm958 = vcmask 257024
          %959 = vst.msk [vmem:[#allocation2] sm:$0xf] %vm958, %v957
          %v960 = vld [vmem:[#allocation13] sm:$0xf]
          %v961 = vld [vmem:[#allocation13 + $0x4] sm:$0xf]
          %v962 = vld [vmem:[#allocation13 + $0x8] sm:$0xf]
          %v963 = vld [vmem:[#allocation13 + $0xc] sm:$0xf]
          %v964 = vld [vmem:[#allocation14] sm:$0x1]
          %v966 = vperm.slane %v964, 0
          %v972 = vunpack.c.l.b16 %v960
          %v973 = vunpack.c.l.b16 %v961
          %v974 = vunpack.c.l.b16 %v962
          %v975 = vunpack.c.l.b16 %v963
          %v976 = vpack.c.b16 %v973, %v972
          %v977 = vpack.c.b16 %v975, %v974
          %980 = vmatpush.bf16.msra.mxu0 0
          %981 = vmatpush.bf16.msra.mxu0 0
          %982 = vmatpush.bf16.msra.mxu0 0
          %983 = vmatpush.bf16.msra.mxu0 0
          %984 = vmatpush.bf16.msra.mxu0 0
          %985 = vmatpush.bf16.msra.mxu0 0
          %986 = vmatpush.bf16.msra.mxu0 %v977
          %987 = vmatpush.bf16.msra.mxu0 %v976
          %988 = vmatmul.bf16.gmra.mxu0 %v942
          %v989 = vpop.f32.mrf.mxu0
          %v990 = vadd.f32 %v966, %v989
          %v991 = vpop.f32.mrf.mxu0
          %992 = vdwg.mxu0
          %v993 = vpack.c.bf16 %v990, %v990
          %994 = vst.msk [vmem:[#allocation3] sm:$0xf] %vm958, %v993
        $region144: #{tpu_custom_call.1} parent=95 // pred_fallthru
          _
        %s995 = smul.u32 %s49, 8
        %s996 = scalar_lea.vmem %s859, %s995
        %v997 = vld [vmem:[%s996] sm:$0xff]
        %v998 = vld [vmem:[%s866] sm:$0xff]
        %v999 = vld [vmem:[%s873] sm:$0xff]
        %vm1000 = vcmask 261120
        %v1001 = vsel %vm1000, %v997, 0.0
        %1002 = vadd.xlane.f32.xlu0 %v1001
        %v1003 = vpop.xlane.xlu0 %1002
        %v1004 = vrcp.pop 32.0
        %v1005 = vmul.f32 32.0, %v1004
        %v1006 = vsub.f32 1.0, %v1005
        %v1007 = vmul.f32 %v1004, %v1006
        %v1008 = vadd.f32 %v1004, %v1007
        %vm1009 = vweird.f32 %v1004
        %v1010 = vsel %vm1009, %v1004, %v1008
        %v1011 = vmul.f32 %v1003, %v1010
        %v1012 = vsub.f32 %v997, %v1011
        %v1013 = vmul.f32 %v1012, %v1012
        %v1014 = vsel %vm1000, %v1013, 0.0
        %1015 = vadd.xlane.f32.xlu0 %v1014
        %v1016 = vpop.xlane.xlu0 %1015
        %v1017 = vmul.f32 %v1016, %v1010
        %v1018 = vadd.f32 %v1017, 1e-05
        %v1019 = vrsqrt.pop %v1018
        %v1020 = vmul.f32 %v1019, %v1018
        %v1021 = vmul.f32 %v1020, %v1019
        %v1022 = vmul.f32 0.5, %v1021
        %v1023 = vsub.f32 1.5, %v1022
        %v1024 = vmul.f32 %v1019, %v1023
        %vm1025 = vweird.f32 %v1018
        %vm1026 = vweird.f32 %v1019
        %vm1027 = vmor %vm1025, %vm1026
        %v1028 = vsel %vm1027, %v1019, %v1024
        %v1029 = vmul.f32 %v1012, %v1028
        %v1031 = vperm.slane %v875, 0
        %v1033 = vmul.f32 %v1029, %v1031
        %v1035 = vperm.slane %v876, 0
        %v1037 = vadd.f32 %v1033, %v1035
        %v1038 = vpack.c.bf16 %v1037, %v1037
        %v1039 = vld [vmem:[%s5] sm:$0xf]
        %v1040 = vld [vmem:[%s5 + $0x4] sm:$0xf]
        %v1041 = vld [vmem:[%s5 + $0x8] sm:$0xf]
        %v1042 = vld [vmem:[%s5 + $0xc] sm:$0xf]
        %v1043 = vld [vmem:[#allocation10] sm:$0x1]
        %v1045 = vperm.slane %v1043, 0
        %v1051 = vunpack.c.l.b16 %v1039
        %v1052 = vunpack.c.l.b16 %v1040
        %v1053 = vunpack.c.l.b16 %v1041
        %v1054 = vunpack.c.l.b16 %v1042
        %v1055 = vpack.c.b16 %v1052, %v1051
        %v1056 = vpack.c.b16 %v1054, %v1053
        %v1060 = vsel %vm1000, %v1038, 0
        %1062 = vmatpush.bf16.msra.mxu0 0
        %1063 = vmatpush.bf16.msra.mxu0 0
        %1064 = vmatpush.bf16.msra.mxu0 0
        %1065 = vmatpush.bf16.msra.mxu0 0
        %1066 = vmatpush.bf16.msra.mxu0 0
        %1067 = vmatpush.bf16.msra.mxu0 0
        %1068 = vmatpush.bf16.msra.mxu0 %v1056
        %1069 = vmatpush.bf16.msra.mxu0 %v1055
        %1070 = vmatmul.bf16.gmra.mxu0 %v1060
        %v1071 = vpop.f32.mrf.mxu0
        %v1072 = vadd.f32 %v1045, %v1071
        %v1073 = vpop.f32.mrf.mxu0
        %1074 = vdwg.mxu0
        %v1075 = vmul.f32 %v1072, 0.35355338
        %v1076 = vpack.c.bf16 %v1075, %v1075
        %v1077 = vld [vmem:[#allocation2] sm:$0xf]
        %v1078 = vld [vmem:[#allocation3] sm:$0xf]
        %vm1079 = vcmask 64512
        %v1081 = vsel %vm1079, %v1076, 0
        %v1084 = vsel %vm1079, %v1077, 0
        %1086 = vmatpush.bf16.xpose.msra.mxu0 0
        %1087 = vmatpush.bf16.xpose.msra.mxu0 0
        %1088 = vmatpush.bf16.xpose.msra.mxu0 0
        %1089 = vmatpush.bf16.xpose.msra.mxu0 0
        %1090 = vmatpush.bf16.xpose.msra.mxu0 0
        %1091 = vmatpush.bf16.xpose.msra.mxu0 0
        %1092 = vmatpush.bf16.xpose.msra.mxu0 0
        %1093 = vmatpush.bf16.xpose.msra.mxu0 %v1084
        %1094 = vmatmul.bf16.gmra.mxu0 %v1081
        %v1095 = vpop.f32.mrf.mxu0
        %v1096 = vadd.f32 %v998, %v1095
        %v1097 = vpop.f32.mrf.mxu0
        %1098 = vdwg.mxu0
        %v1099 = vsel %vm1079, %v1096, -inf
        %1100 = vmax.xlane.f32.xlu0 %v1099
        %v1101 = vpop.xlane.xlu0 %1100
        %v1102 = vsub.f32 %v1096, %v1101
        %v1103 = vmul.f32 %v1102, 1.442695
        %v1104 = vpow.pop %v1103
        %v1105 = vsel %vm1079, %v1104, 0.0
        %1106 = vadd.xlane.f32.xlu0 %v1105
        %v1107 = vpop.xlane.xlu0 %1106
        %v1108 = vrcp.pop %v1107
        %v1109 = vmul.f32 %v1104, %v1108
        %v1110 = vpack.c.bf16 %v1109, %v1109
        %vm1111 = vcmask 60416
        %1112 = vst.msk [vmem:[%s855] sm:$0xf] %vm1111, %v1110
        %v1114 = vsel %vm1079, %v1110, 0
        %vm1116 = vcmask 1043456
        %v1118 = vsel %vm1116, %v1078, 0
        %1120 = vmatpush.bf16.msra.mxu0 0
        %1121 = vmatpush.bf16.msra.mxu0 0
        %1122 = vmatpush.bf16.msra.mxu0 0
        %1123 = vmatpush.bf16.msra.mxu0 0
        %1124 = vmatpush.bf16.msra.mxu0 0
        %1125 = vmatpush.bf16.msra.mxu0 0
        %1126 = vmatpush.bf16.msra.mxu0 0
        %1127 = vmatpush.bf16.msra.mxu0 %v1118
        %1128 = vmatmul.bf16.gmra.mxu0 %v1114
        %v1129 = vpop.f32.mrf.mxu0
        %v1130 = vadd.f32 0.0, %v1129
        %v1131 = vpop.f32.mrf.mxu0
        %1132 = vdwg.mxu0
        %v1133 = vpack.c.bf16 %v1130, %v1130
        %1134 = vst.msk [vmem:[#allocation4] sm:$0xf] %vm1111, %v1133
        %v1135 = vld [vmem:[#allocation2] sm:$0xf]
        %v1136 = vld [vmem:[#allocation3] sm:$0xf]
        %v1138 = vunpack.c.l.b16 %v1076
        %v1139 = vpack.c.b16 %v1138, %v1138
        %1140 = vrot.lane.b32.xlu0 %v1139, 120
        %v1141 = vpop.permute.xlu0 %1140
        %v1143 = vunpack.c.l.b16 %v1135
        %v1144 = vpack.c.b16 %v1143, %v1143
        %1145 = vrot.lane.b32.xlu0 %v1144, 120
        %v1146 = vpop.permute.xlu0 %1145
        %v1148 = vsel %vm1079, %v1141, 0
        %v1151 = vsel %vm1079, %v1146, 0
        %1153 = vmatpush.bf16.xpose.msra.mxu0 0
        %1154 = vmatpush.bf16.xpose.msra.mxu0 0
        %1155 = vmatpush.bf16.xpose.msra.mxu0 0
        %1156 = vmatpush.bf16.xpose.msra.mxu0 0
        %1157 = vmatpush.bf16.xpose.msra.mxu0 0
        %1158 = vmatpush.bf16.xpose.msra.mxu0 0
        %1159 = vmatpush.bf16.xpose.msra.mxu0 0
        %1160 = vmatpush.bf16.xpose.msra.mxu0 %v1151
        %1161 = vmatmul.bf16.gmra.mxu0 %v1148
        %v1162 = vpop.f32.mrf.mxu0
        %v1163 = vadd.f32 %v998, %v1162
        %v1164 = vpop.f32.mrf.mxu0
        %1165 = vdwg.mxu0
        %v1166 = vsel %vm1079, %v1163, -inf
        %1167 = vmax.xlane.f32.xlu0 %v1166
        %v1168 = vpop.xlane.xlu0 %1167
        %v1169 = vsub.f32 %v1163, %v1168
        %v1170 = vmul.f32 %v1169, 1.442695
        %v1171 = vpow.pop %v1170
        %v1172 = vsel %vm1079, %v1171, 0.0
        %1173 = vadd.xlane.f32.xlu0 %v1172
        %v1174 = vpop.xlane.xlu0 %1173
        %v1175 = vrcp.pop %v1174
        %v1176 = vmul.f32 %v1171, %v1175
        %v1177 = vpack.c.bf16 %v1176, %v1176
        %s1178 = scalar_lea.vmem %s855, 4 [#allocation24]
        %1179 = vst.msk [vmem:[%s1178] sm:$0xf] %vm1111, %v1177
        %v1181 = vunpack.c.l.b16 %v1136
        %v1182 = vpack.c.b16 %v1181, %v1181
        %1183 = vrot.lane.b32.xlu0 %v1182, 120
        %v1184 = vpop.permute.xlu0 %1183
        %v1186 = vsel %vm1079, %v1177, 0
        %v1189 = vsel %vm1116, %v1184, 0
        %1191 = vmatpush.bf16.msra.mxu0 0
        %1192 = vmatpush.bf16.msra.mxu0 0
        %1193 = vmatpush.bf16.msra.mxu0 0
        %1194 = vmatpush.bf16.msra.mxu0 0
        %1195 = vmatpush.bf16.msra.mxu0 0
        %1196 = vmatpush.bf16.msra.mxu0 0
        %1197 = vmatpush.bf16.msra.mxu0 0
        %1198 = vmatpush.bf16.msra.mxu0 %v1189
        %1199 = vmatmul.bf16.gmra.mxu0 %v1186
        %v1200 = vpop.f32.mrf.mxu0
        %v1201 = vadd.f32 0.0, %v1200
        %v1202 = vpop.f32.mrf.mxu0
        %1203 = vdwg.mxu0
        %v1204 = vpack.c.bf16 %v1201, %v1201
        %1206 = vrot.lane.b32.xlu0 %v1204, 8
        %v1207 = vpop.permute.xlu0 %1206
        %vm1209 = vcmask 126016
        %1210 = vst.msk [vmem:[#allocation4] sm:$0xf] %vm1209, %v1207
        %v1211 = vld [vmem:[#allocation2] sm:$0xf]
        %v1212 = vld [vmem:[#allocation3] sm:$0xf]
        %1213 = vrot.lane.b32.xlu0 %v1139, 112
        %v1214 = vpop.permute.xlu0 %1213
        %v1216 = vunpack.c.l.b16 %v1211
        %v1217 = vpack.c.b16 %v1216, %v1216
        %1218 = vrot.lane.b32.xlu0 %v1217, 112
        %v1219 = vpop.permute.xlu0 %1218
        %v1221 = vsel %vm1079, %v1214, 0
        %v1224 = vsel %vm1079, %v1219, 0
        %1226 = vmatpush.bf16.xpose.msra.mxu0 0
        %1227 = vmatpush.bf16.xpose.msra.mxu0 0
        %1228 = vmatpush.bf16.xpose.msra.mxu0 0
        %1229 = vmatpush.bf16.xpose.msra.mxu0 0
        %1230 = vmatpush.bf16.xpose.msra.mxu0 0
        %1231 = vmatpush.bf16.xpose.msra.mxu0 0
        %1232 = vmatpush.bf16.xpose.msra.mxu0 0
        %1233 = vmatpush.bf16.xpose.msra.mxu0 %v1224
        %1234 = vmatmul.bf16.gmra.mxu0 %v1221
        %v1235 = vpop.f32.mrf.mxu0
        %v1236 = vadd.f32 %v998, %v1235
        %v1237 = vpop.f32.mrf.mxu0
        %1238 = vdwg.mxu0
        %v1239 = vsel %vm1079, %v1236, -inf
        %1240 = vmax.xlane.f32.xlu0 %v1239
        %v1241 = vpop.xlane.xlu0 %1240
        %v1242 = vsub.f32 %v1236, %v1241
        %v1243 = vmul.f32 %v1242, 1.442695
        %v1244 = vpow.pop %v1243
        %v1245 = vsel %vm1079, %v1244, 0.0
        %1246 = vadd.xlane.f32.xlu0 %v1245
        %v1247 = vpop.xlane.xlu0 %1246
        %v1248 = vrcp.pop %v1247
        %v1249 = vmul.f32 %v1244, %v1248
        %v1250 = vpack.c.bf16 %v1249, %v1249
        %s1251 = scalar_lea.vmem %s855, 8 [#allocation24]
        %1252 = vst.msk [vmem:[%s1251] sm:$0xf] %vm1111, %v1250
        %v1254 = vunpack.c.l.b16 %v1212
        %v1255 = vpack.c.b16 %v1254, %v1254
        %1256 = vrot.lane.b32.xlu0 %v1255, 112
        %v1257 = vpop.permute.xlu0 %1256
        %v1259 = vsel %vm1079, %v1250, 0
        %v1262 = vsel %vm1116, %v1257, 0
        %1264 = vmatpush.bf16.msra.mxu0 0
        %1265 = vmatpush.bf16.msra.mxu0 0
        %1266 = vmatpush.bf16.msra.mxu0 0
        %1267 = vmatpush.bf16.msra.mxu0 0
        %1268 = vmatpush.bf16.msra.mxu0 0
        %1269 = vmatpush.bf16.msra.mxu0 0
        %1270 = vmatpush.bf16.msra.mxu0 0
        %1271 = vmatpush.bf16.msra.mxu0 %v1262
        %1272 = vmatmul.bf16.gmra.mxu0 %v1259
        %v1273 = vpop.f32.mrf.mxu0
        %v1274 = vadd.f32 0.0, %v1273
        %v1275 = vpop.f32.mrf.mxu0
        %1276 = vdwg.mxu0
        %v1277 = vpack.c.bf16 %v1274, %v1274
        %1279 = vrot.lane.b32.xlu0 %v1277, 16
        %v1280 = vpop.permute.xlu0 %1279
        %vm1282 = vcmask 191616
        %1283 = vst.msk [vmem:[#allocation4] sm:$0xf] %vm1282, %v1280
        %v1284 = vld [vmem:[#allocation2] sm:$0xf]
        %v1285 = vld [vmem:[#allocation3] sm:$0xf]
        %1286 = vrot.lane.b32.xlu0 %v1139, 104
        %v1287 = vpop.permute.xlu0 %1286
        %v1289 = vunpack.c.l.b16 %v1284
        %v1290 = vpack.c.b16 %v1289, %v1289
        %1291 = vrot.lane.b32.xlu0 %v1290, 104
        %v1292 = vpop.permute.xlu0 %1291
        %v1294 = vsel %vm1079, %v1287, 0
        %v1297 = vsel %vm1079, %v1292, 0
        %1299 = vmatpush.bf16.xpose.msra.mxu0 0
        %1300 = vmatpush.bf16.xpose.msra.mxu0 0
        %1301 = vmatpush.bf16.xpose.msra.mxu0 0
        %1302 = vmatpush.bf16.xpose.msra.mxu0 0
        %1303 = vmatpush.bf16.xpose.msra.mxu0 0
        %1304 = vmatpush.bf16.xpose.msra.mxu0 0
        %1305 = vmatpush.bf16.xpose.msra.mxu0 0
        %1306 = vmatpush.bf16.xpose.msra.mxu0 %v1297
        %1307 = vmatmul.bf16.gmra.mxu0 %v1294
        %v1308 = vpop.f32.mrf.mxu0
        %v1309 = vadd.f32 %v998, %v1308
        %v1310 = vpop.f32.mrf.mxu0
        %1311 = vdwg.mxu0
        %v1312 = vsel %vm1079, %v1309, -inf
        %1313 = vmax.xlane.f32.xlu0 %v1312
        %v1314 = vpop.xlane.xlu0 %1313
        %v1315 = vsub.f32 %v1309, %v1314
        %v1316 = vmul.f32 %v1315, 1.442695
        %v1317 = vpow.pop %v1316
        %v1318 = vsel %vm1079, %v1317, 0.0
        %1319 = vadd.xlane.f32.xlu0 %v1318
        %v1320 = vpop.xlane.xlu0 %1319
        %v1321 = vrcp.pop %v1320
        %v1322 = vmul.f32 %v1317, %v1321
        %v1323 = vpack.c.bf16 %v1322, %v1322
        %s1324 = scalar_lea.vmem %s855, 12 [#allocation24]
        %1325 = vst.msk [vmem:[%s1324] sm:$0xf] %vm1111, %v1323
        %v1327 = vunpack.c.l.b16 %v1285
        %v1328 = vpack.c.b16 %v1327, %v1327
        %1329 = vrot.lane.b32.xlu0 %v1328, 104
        %v1330 = vpop.permute.xlu0 %1329
        %v1332 = vsel %vm1079, %v1323, 0
        %v1335 = vsel %vm1116, %v1330, 0
        %1337 = vmatpush.bf16.msra.mxu0 0
        %1338 = vmatpush.bf16.msra.mxu0 0
        %1339 = vmatpush.bf16.msra.mxu0 0
        %1340 = vmatpush.bf16.msra.mxu0 0
        %1341 = vmatpush.bf16.msra.mxu0 0
        %1342 = vmatpush.bf16.msra.mxu0 0
        %1343 = vmatpush.bf16.msra.mxu0 0
        %1344 = vmatpush.bf16.msra.mxu0 %v1335
        %1345 = vmatmul.bf16.gmra.mxu0 %v1332
        %v1346 = vpop.f32.mrf.mxu0
        %v1347 = vadd.f32 0.0, %v1346
        %v1348 = vpop.f32.mrf.mxu0
        %1349 = vdwg.mxu0
        %v1350 = vpack.c.bf16 %v1347, %v1347
        %1352 = vrot.lane.b32.xlu0 %v1350, 24
        %v1353 = vpop.permute.xlu0 %1352
        %vm1355 = vcmask 257216
        %1356 = vst.msk [vmem:[#allocation4] sm:$0xf] %vm1355, %v1353
        %v1357 = vld [vmem:[#allocation4] sm:$0xf]
        %v1358 = vld [vmem:[#allocation16] sm:$0xf]
        %v1359 = vld [vmem:[#allocation16 + $0x4] sm:$0xf]
        %v1360 = vld [vmem:[#allocation16 + $0x8] sm:$0xf]
        %v1361 = vld [vmem:[#allocation16 + $0xc] sm:$0xf]
        %v1362 = vld [vmem:[#allocation17] sm:$0x1]
        %v1364 = vperm.slane %v1362, 0
        %v1370 = vunpack.c.l.b16 %v1358
        %v1371 = vunpack.c.l.b16 %v1359
        %v1372 = vunpack.c.l.b16 %v1360
        %v1373 = vunpack.c.l.b16 %v1361
        %v1374 = vpack.c.b16 %v1371, %v1370
        %v1375 = vpack.c.b16 %v1373, %v1372
        %v1379 = vsel %vm1000, %v1357, 0
        %1381 = vmatpush.bf16.msra.mxu0 0
        %1382 = vmatpush.bf16.msra.mxu0 0
        %1383 = vmatpush.bf16.msra.mxu0 0
        %1384 = vmatpush.bf16.msra.mxu0 0
        %1385 = vmatpush.bf16.msra.mxu0 0
        %1386 = vmatpush.bf16.msra.mxu0 0
        %1387 = vmatpush.bf16.msra.mxu0 %v1375
        %1388 = vmatpush.bf16.msra.mxu0 %v1374
        %1389 = vmatmul.bf16.gmra.mxu0 %v1379
        %v1390 = vpop.f32.mrf.mxu0
        %v1391 = vadd.f32 %v1364, %v1390
        %v1392 = vpop.f32.mrf.mxu0
        %1393 = vdwg.mxu0
        %v1394 = vadd.f32 %v1391, %v997
        %1396 = vset.pattern.permute.xlu0 0
        %1397 = vperm.xlu0 %1396, %v999
        %v1398 = vpop.permute.xlu0 %1397
        %v1400 = vmul.f32 %v1394, %v1398
        %v1401 = vld [vmem:[#allocation19] sm:$0x1]
        %v1402 = vld [vmem:[#allocation20] sm:$0x1]
        %v1403 = vsel %vm1000, %v1400, 0.0
        %1404 = vadd.xlane.f32.xlu0 %v1403
        %v1405 = vpop.xlane.xlu0 %1404
        %v1406 = vmul.f32 %v1405, %v1010
        %v1407 = vsub.f32 %v1400, %v1406
        %v1408 = vmul.f32 %v1407, %v1407
        %v1409 = vsel %vm1000, %v1408, 0.0
        %1410 = vadd.xlane.f32.xlu0 %v1409
        %v1411 = vpop.xlane.xlu0 %1410
        %v1412 = vmul.f32 %v1411, %v1010
        %v1413 = vadd.f32 %v1412, 1e-05
        %v1414 = vrsqrt.pop %v1413
        %v1415 = vmul.f32 %v1414, %v1413
        %v1416 = vmul.f32 %v1415, %v1414
        %v1417 = vmul.f32 0.5, %v1416
        %v1418 = vsub.f32 1.5, %v1417
        %v1419 = vmul.f32 %v1414, %v1418
        %vm1420 = vweird.f32 %v1413
        %vm1421 = vweird.f32 %v1414
        %vm1422 = vmor %vm1420, %vm1421
        %v1423 = vsel %vm1422, %v1414, %v1419
        %v1424 = vmul.f32 %v1407, %v1423
        %v1426 = vperm.slane %v1401, 0
        %v1428 = vmul.f32 %v1424, %v1426
        %v1430 = vperm.slane %v1402, 0
        %v1432 = vadd.f32 %v1428, %v1430
        %v1433 = vpack.c.bf16 %v1432, %v1432
        %v1434 = vld [vmem:[%s16] sm:$0x1]
        %v1435 = vld [vmem:[%s18] sm:$0x1]
        %v1437 = vperm.slane %v1435, 0
        %v1439 = vadd.f32 %v1400, %v1437
        %v1440 = vld [vmem:[#allocation22] sm:$0xf]
        %v1441 = vld [vmem:[#allocation22 + $0x4] sm:$0xf]
        %v1442 = vld [vmem:[#allocation22 + $0x8] sm:$0xf]
        %v1443 = vld [vmem:[#allocation22 + $0xc] sm:$0xf]
        %v1445 = vperm.slane %v1434, 0
        %v1451 = vunpack.c.l.b16 %v1440
        %v1452 = vunpack.c.l.b16 %v1441
        %v1453 = vunpack.c.l.b16 %v1442
        %v1454 = vunpack.c.l.b16 %v1443
        %v1455 = vpack.c.b16 %v1452, %v1451
        %v1456 = vpack.c.b16 %v1454, %v1453
        %v1460 = vsel %vm1000, %v1433, 0
        %1462 = vmatpush.bf16.msra.mxu0 0
        %1463 = vmatpush.bf16.msra.mxu0 0
        %1464 = vmatpush.bf16.msra.mxu0 0
        %1465 = vmatpush.bf16.msra.mxu0 0
        %1466 = vmatpush.bf16.msra.mxu0 0
        %1467 = vmatpush.bf16.msra.mxu0 0
        %1468 = vmatpush.bf16.msra.mxu0 %v1456
        %1469 = vmatpush.bf16.msra.mxu0 %v1455
        %1470 = vmatmul.bf16.gmra.mxu0 %v1460
        %v1471 = vpop.f32.mrf.mxu0
        %v1472 = vadd.f32 %v1445, %v1471
        %v1473 = vpop.f32.mrf.mxu0
        %1474 = vdwg.mxu0
        %v1475 = vmax.f32 %v1472, 0.0
        %v1476 = vpack.c.bf16 %v1475, %v1475
        %v1477 = vld [vmem:[%s17] sm:$0xf]
        %v1478 = vld [vmem:[%s17 + $0x4] sm:$0xf]
        %v1479 = vld [vmem:[%s17 + $0x8] sm:$0xf]
        %v1480 = vld [vmem:[%s17 + $0xc] sm:$0xf]
        %v1481 = vld [vmem:[%s17 + $0x10] sm:$0xf]
        %v1482 = vld [vmem:[%s17 + $0x14] sm:$0xf]
        %v1483 = vld [vmem:[%s17 + $0x18] sm:$0xf]
        %v1484 = vld [vmem:[%s17 + $0x1c] sm:$0xf]
        %v1493 = vunpack.c.l.b16 %v1477
        %v1494 = vunpack.c.l.b16 %v1478
        %v1495 = vunpack.c.l.b16 %v1479
        %v1496 = vunpack.c.l.b16 %v1480
        %v1497 = vunpack.c.l.b16 %v1481
        %v1498 = vunpack.c.l.b16 %v1482
        %v1499 = vunpack.c.l.b16 %v1483
        %v1500 = vunpack.c.l.b16 %v1484
        %v1501 = vpack.c.b16 %v1494, %v1493
        %v1502 = vpack.c.b16 %v1496, %v1495
        %v1503 = vpack.c.b16 %v1498, %v1497
        %v1504 = vpack.c.b16 %v1500, %v1499
        %vm1509 = vcmask 523264
        %v1511 = vsel %vm1509, %v1476, 0
        %1513 = vmatpush.bf16.msra.mxu0 0
        %1514 = vmatpush.bf16.msra.mxu0 0
        %1515 = vmatpush.bf16.msra.mxu0 0
        %1516 = vmatpush.bf16.msra.mxu0 0
        %1517 = vmatpush.bf16.msra.mxu0 %v1504
        %1518 = vmatpush.bf16.msra.mxu0 %v1503
        %1519 = vmatpush.bf16.msra.mxu0 %v1502
        %1520 = vmatpush.bf16.msra.mxu0 %v1501
        %1521 = vmatmul.bf16.gmra.mxu0 %v1511
        %v1522 = vpop.f32.mrf.mxu0
        %v1523 = vadd.f32 0.0, %v1522
        %v1524 = vpop.f32.mrf.mxu0
        %1525 = vdwg.mxu0
        %v1526 = vadd.f32 %v1439, %v1523
        %v1527 = vmul.f32 %v1526, %v1398
        %1528 = vst.msk [vmem:[%s848] sm:$0xff] %vm1000, %v1527
        %s1529 = sand.u32 %s484, 1
        %s1530 = scalar_lea.sflag [#allocation7], %s1529
        %s1531 = sand.u32 %s484, 1
        %s1532 = smul.addr %s1531, 8
        %s1533 = scalar_lea.vmem [#allocation23], %s1532
        %s1534 = sand.u32 %s512, 1
        %s1535 = scalar_lea.sflag [#allocation25], %s1534
        %s1536 = sand.u32 %s512, 1
        %s1537 = smul.addr %s1536, 16
        %s1538 = scalar_lea.vmem [#allocation24], %s1537
        // Predicated region
        $region145: #{tpu_custom_call.1} parent=95 // pred_check
          %p1539 = pneg %p494
        $region146: #{tpu_custom_call.1} parent=95 // pred_check_branch
          %1541 = sbr.rel (%p1539) target = $region148
        $region147: #{tpu_custom_call.1} parent=95 // pred_region
          %1543 = vsyncadd %s1530, 0
          %s1544 = sadd.s32 %s49, %s48
          %s1545 = smul.addr %s1544, 8
          %s1546 = scalar_lea.hbm %s19, %s1545
          %s1548 = sshll.u32 %s1533, 4
          %s1549 = int_to_ptr.vmem [resolvable:$true] %s1548
          %s1550 = sshll.u32 %s1546, 4
          %s1551 = int_to_ptr.hbm [resolvable:$true] %s1550
          %1553 = dma.vmem_to_hbm [thread:$0]  %s1549, 128, %s1551, %s1530
        $region148: #{tpu_custom_call.1} parent=95 // pred_fallthru
          _
        // Predicated region
        $region149: #{tpu_custom_call.1} parent=95 // pred_check
          %p1554 = pneg %p522
        $region150: #{tpu_custom_call.1} parent=95 // pred_check_branch
          %1556 = sbr.rel (%p1554) target = $region152
        $region151: #{tpu_custom_call.1} parent=95 // pred_region
          %1558 = vsyncadd %s1535, 0
          %s1559 = smul.addr %s48, 4
          %s1560 = sadd.s32 %s49, %s1559
          %s1561 = smul.addr %s1560, 4
          %s1562 = scalar_lea.hbm %s20, %s1561
          %s1563 = sshll.u32 %s1538, 4
          %s1564 = int_to_ptr.vmem [resolvable:$true] %s1563
          %s1565 = sshll.u32 %s1562, 4
          %s1566 = int_to_ptr.hbm [resolvable:$true] %s1565
          %1571 = dma.vmem_to_hbm [thread:$0]  %s1564, 256, %s1566, %s1535, 64, 64, 4
        $region152: #{tpu_custom_call.1} parent=95 // pred_fallthru
          _
      $region96: #{tpu_custom_call.1} parent=5 // pred_fallthru
        _
      %p1572 = scmp.le.s32.totalorder 2, %s39
      // Predicated region
      $region153: #{tpu_custom_call.1} parent=5 // pred_check
        %p1573 = pneg %p1572
      $region154: #{tpu_custom_call.1} parent=5 // pred_check_branch
        %1575 = sbr.rel (%p1573) target = $region156
      $region155: #{tpu_custom_call.1} parent=5 // pred_region
        %s1576 = ssub.s32 %s39, 2
        // Predicated region
        $region157: #{tpu_custom_call.1} parent=155 // pred_check
          %p1577 = pneg %p500
        $region158: #{tpu_custom_call.1} parent=155 // pred_check_branch
          %1579 = sbr.rel (%p1577) target = $region160
        $region159: #{tpu_custom_call.1} parent=155 // pred_region
          %s1580 = sand.u32 %s485, 1
          %s1581 = scalar_lea.sflag [#allocation7], %s1580
          %s1582 = sand.u32 %s485, 1
          %s1583 = smul.addr %s1582, 8
          %s1584 = scalar_lea.vmem [#allocation23], %s1583
          %1586 = dma.done %s1581, 128
        $region160: #{tpu_custom_call.1} parent=155 // pred_fallthru
          _
        // Predicated region
        $region161: #{tpu_custom_call.1} parent=155 // pred_check
          %p1587 = pneg %p528
        $region162: #{tpu_custom_call.1} parent=155 // pred_check_branch
          %1589 = sbr.rel (%p1587) target = $region164
        $region163: #{tpu_custom_call.1} parent=155 // pred_region
          %s1590 = sand.u32 %s513, 1
          %s1591 = scalar_lea.sflag [#allocation25], %s1590
          %s1592 = sand.u32 %s513, 1
          %s1593 = smul.addr %s1592, 16
          %s1594 = scalar_lea.vmem [#allocation24], %s1593
          %1596 = dma.done %s1591, 256
        $region164: #{tpu_custom_call.1} parent=155 // pred_fallthru
          _
      $region156: #{tpu_custom_call.1} parent=5 // pred_fallthru
        _
    $region6: #{tpu_custom_call.1} parent=1 // loop_footer
      %s43 = sadd.s32 1, %s39
    $region7: #{tpu_custom_call.1} parent=1 // loop_footer_branch
      %38 = sbr.rel target = $region3
    $region8: #{tpu_custom_call.1} parent=1 // loop_exit
      _
    %1597 = vsyncpa [#allocation6], 1
    %s1598 = scalar_lea.sflag [#allocation6], 1
    %1599 = vsyncpa %s1598, 1
    %1600 = vsyncpa [#allocation9], 1
    %1601 = vsyncpa [#allocation12], 1
    %1602 = vsyncpa [#allocation15], 1
    %1603 = vsyncpa [#allocation18], 1
    %1604 = vsyncpa [#allocation21], 1
    %1605 = vsyncpa [#allocation7], 1
    %s1606 = scalar_lea.sflag [#allocation7], 1
    %1607 = vsyncpa %s1606, 1
    %1608 = vsyncpa [#allocation25], 1
    %s1609 = scalar_lea.sflag [#allocation25], 1
    %1610 = vsyncpa %s1609, 1

// kernel: tpu_custom_call.1
$region0: #{tpu_custom_call.1}
  #allocation0 [shape = 'u32[]', space=smem, size = 0x4, offset = 0x4, fixed_abs, tag = 'smem constant byte address 0x4 - core index']
  #allocation1 [shape = 'u32[72,128]{1,0:T(1,128)}', space=vmem, size = 0x9000, scoped, tag = 'internal scratch']
  #allocation2 [shape = 'bf16[8,32]{1,0:T(8,128)(2,1)}', space=vmem, size = 0x800, scoped, tag = 'scratch operand']
  #allocation3 [shape = 'bf16[8,32]{1,0:T(8,128)(2,1)}', space=vmem, size = 0x800, scoped, tag = 'scratch operand']
  #allocation4 [shape = 'bf16[8,32]{1,0:T(8,128)(2,1)}', space=vmem, size = 0x800, scoped, tag = 'scratch operand']
  %s0 = inlined_call_operand.vmem [shape: f32[2,8,32], index: 0, kind: input, shape index: {}]
  %s1 = inlined_call_operand.vmem [shape: f32[2,8,8], index: 1, kind: input, shape index: {}]
  %s2 = inlined_call_operand.vmem [shape: f32[2,8,1], index: 2, kind: input, shape index: {}]
  %s3 = inlined_call_operand.hbm [shape: f32[1,32], index: 3, kind: input, shape index: {}]
  %s4 = inlined_call_operand.hbm [shape: f32[1,32], index: 4, kind: input, shape index: {}]
  %s5 = inlined_call_operand.vmem [shape: bf16[32,32], index: 5, kind: input, shape index: {}]
  %s6 = inlined_call_operand.hbm [shape: f32[1,32], index: 6, kind: input, shape index: {}]
  %s7 = inlined_call_operand.vmem [shape: bf16[32,32], index: 7, kind: input, shape index: {}]
  %s8 = inlined_call_operand.hbm [shape: f32[1,32], index: 8, kind: input, shape index: {}]
  %s9 = inlined_call_operand.hbm [shape: bf16[32,32], index: 9, kind: input, shape index: {}]
  %s10 = inlined_call_operand.hbm [shape: f32[1,32], index: 10, kind: input, shape index: {}]
  %s11 = inlined_call_operand.hbm [shape: bf16[32,32], index: 11, kind: input, shape index: {}]
  %s12 = inlined_call_operand.hbm [shape: f32[1,32], index: 12, kind: input, shape index: {}]
  %s13 = inlined_call_operand.hbm [shape: f32[1,32], index: 13, kind: input, shape index: {}]
  %s14 = inlined_call_operand.hbm [shape: f32[1,32], index: 14, kind: input, shape index: {}]
  %s15 = inlined_call_operand.hbm [shape: bf16[32,64], index: 15, kind: input, shape index: {}]
  %s16 = inlined_call_operand.vmem [shape: f32[1,64], index: 16, kind: input, shape index: {}]
  %s17 = inlined_call_operand.vmem [shape: bf16[64,32], index: 17, kind: input, shape index: {}]
  %s18 = inlined_call_operand.vmem [shape: f32[1,32], index: 18, kind: input, shape index: {}]
  %s19 = inlined_call_operand.hbm [shape: f32[2,8,32], index: 19, kind: output, shape index: {0}]
  %s20 = inlined_call_operand.hbm [shape: bf16[2,4,8,8], index: 20, kind: output, shape index: {1}]
  %21 = xla_tuple %s19, %s20
  %s22 = sld [smem:[#allocation0]]
  $region165: #{tpu_custom_call.1} parent=0
    _
  %s24 = ssub.s32 1, %s22
  %s25 = scalar_select 0, %s24, %s22
  $region1: #{tpu_custom_call.1} parent=0
    #allocation5 [shape = 'u8[512]{0}', space=vmem, size = 0x400, scoped, tag = 'input window, operand 3, single buffered']
    #allocation6 [shape = 's32[2]{0}', space=sflag, size = 0x8, scoped, tag = 'scoped memory for tpu_custom_call.1']
    #allocation7 [shape = 's32[2]{0}', space=sflag, size = 0x8, scoped, tag = 'scoped memory for tpu_custom_call.1']
    #allocation8 [shape = 'u8[512]{0}', space=vmem, size = 0x400, scoped, tag = 'input window, operand 4, single buffered']
    #allocation9 [shape = 's32[1]{0}', space=sflag, size = 0x4, scoped, tag = 'scoped memory for tpu_custom_call.1']
    #allocation10 [shape = 'u8[512]{0}', space=vmem, size = 0x400, scoped, tag = 'input window, operand 6, single buffered']
    #allocation11 [shape = 'u8[512]{0}', space=vmem, size = 0x400, scoped, tag = 'input window, operand 8, single buffered']
    #allocation12 [shape = 's32[1]{0}', space=sflag, size = 0x4, scoped, tag = 'scoped memory for tpu_custom_call.1']
    #allocation13 [shape = 'u8[8192]{0}', space=vmem, size = 0x2000, scoped, tag = 'input window, operand 9, single buffered']
    #allocation14 [shape = 'u8[512]{0}', space=vmem, size = 0x400, scoped, tag = 'input window, operand 10, single buffered']
    #allocation15 [shape = 's32[1]{0}', space=sflag, size = 0x4, scoped, tag = 'scoped memory for tpu_custom_call.1']
    #allocation16 [shape = 'u8[8192]{0}', space=vmem, size = 0x2000, scoped, tag = 'input window, operand 11, single buffered']
    #allocation17 [shape = 'u8[512]{0}', space=vmem, size = 0x400, scoped, tag = 'input window, operand 12, single buffered']
    #allocation18 [shape = 's32[1]{0}', space=sflag, size = 0x4, scoped, tag = 'scoped memory for tpu_custom_call.1']
    #allocation19 [shape = 'u8[512]{0}', space=vmem, size = 0x400, scoped, tag = 'input window, operand 13, single buffered']
    #allocation20 [shape = 'u8[512]{0}', space=vmem, size = 0x400, scoped, tag = 'input window, operand 14, single buffered']
    #allocation21 [shape = 's32[1]{0}', space=sflag, size = 0x4, scoped, tag = 'scoped memory for tpu_custom_call.1']
    #allocation22 [shape = 'u8[8192]{0}', space=vmem, size = 0x2000, scoped, tag = 'input window, operand 15, single buffered']
    #allocation23 [shape = 'u8[8192]{0}', space=vmem, size = 0x2000, scoped, tag = 'output window, operand 0']
    #allocation24 [shape = 'u8[16384]{0}', space=vmem, size = 0x4000, scoped, tag = 'output window, operand 1']
    #allocation25 [shape = 's32[2]{0}', space=sflag, size = 0x8, scoped, tag = 'scoped memory for tpu_custom_call.1']
    %26 = vsyncpa [#allocation6], 0
    %27 = vsyncpa [#allocation9], 0
    %28 = vsyncpa [#allocation12], 0
    %29 = vsyncpa [#allocation15], 0
    %30 = vsyncpa [#allocation18], 0
    %31 = vsyncpa [#allocation21], 0
    %32 = vsyncpa [#allocation7], 0
    %s33 = scalar_lea.sflag [#allocation7], 1
    %34 = vsyncpa %s33, 0
    %35 = vsyncpa [#allocation25], 0
    %s36 = scalar_lea.sflag [#allocation25], 1
    %37 = vsyncpa %s36, 0
    loop: start=0, step=1, limit=4
    $region2: #{tpu_custom_call.1} parent=1 // loop_pre_header
      _
    $region3: #{tpu_custom_call.1} parent=1 // loop_header
      %s39 = sphi 0, %s43
      %p40 = scmp.ge.s32.totalorder %s39, 4
      %s46 = sphi 0, %s58
      %s47 = sphi 0, %s54
      %s48 = sphi 0, %s46
      %s49 = sphi 0, %s47
      %s50 = sphi 0, %s48
      %s51 = sphi 0, %s49
      %s61 = sphi 0, %s63
      %s64 = sphi 0, %s61
      %s65 = sphi 0, %s64
      %s81 = sphi 0, %s65
      %s89 = sphi 0, %s91
      %s92 = sphi 0, %s89
      %s93 = sphi 0, %s92
      %s109 = sphi 0, %s93
      %s117 = sphi 0, %s119
      %s120 = sphi 0, %s117
      %s121 = sphi 0, %s120
      %s137 = sphi 0, %s121
      %s141 = sphi 0, %s141
      %s143 = sphi 0, %s141
      %s144 = sphi 0, %s143
      %s158 = sphi 0, %s144
      %s162 = sphi 0, %s162
      %s164 = sphi 0, %s162
      %s165 = sphi 0, %s164
      %s179 = sphi 0, %s165
      %s183 = sphi 0, %s183
      %s185 = sphi 0, %s183
      %s186 = sphi 0, %s185
      %s200 = sphi 0, %s186
      %s204 = sphi 0, %s204
      %s206 = sphi 0, %s204
      %s207 = sphi 0, %s206
      %s221 = sphi 0, %s207
      %s225 = sphi 0, %s225
      %s227 = sphi 0, %s225
      %s228 = sphi 0, %s227
      %s242 = sphi 0, %s228
      %s246 = sphi 0, %s246
      %s248 = sphi 0, %s246
      %s249 = sphi 0, %s248
      %s263 = sphi 0, %s249
      %s267 = sphi 0, %s267
      %s269 = sphi 0, %s267
      %s270 = sphi 0, %s269
      %s284 = sphi 0, %s270
      %s288 = sphi 0, %s288
      %s290 = sphi 0, %s288
      %s291 = sphi 0, %s290
      %s305 = sphi 0, %s291
      %s309 = sphi 0, %s309
      %s311 = sphi 0, %s309
      %s312 = sphi 0, %s311
      %s326 = sphi 0, %s312
      %s330 = sphi 0, %s330
      %s332 = sphi 0, %s330
      %s333 = sphi 0, %s332
      %s347 = sphi 0, %s333
      %s351 = sphi 0, %s351
      %s353 = sphi 0, %s351
      %s354 = sphi 0, %s353
      %s368 = sphi 0, %s354
      %s372 = sphi 0, %s372
      %s374 = sphi 0, %s372
      %s375 = sphi 0, %s374
      %s389 = sphi 0, %s375
      %s393 = sphi 0, %s393
      %s395 = sphi 0, %s393
      %s396 = sphi 0, %s395
      %s410 = sphi 0, %s396
      %s414 = sphi 0, %s414
      %s416 = sphi 0, %s414
      %s417 = sphi 0, %s416
      %s431 = sphi 0, %s417
      %s435 = sphi 0, %s435
      %s437 = sphi 0, %s435
      %s438 = sphi 0, %s437
      %s452 = sphi 0, %s438
      %s456 = sphi 0, %s456
      %s458 = sphi 0, %s456
      %s459 = sphi 0, %s458
      %s473 = sphi 0, %s459
      %s481 = sphi 0, %s483
      %s484 = sphi 0, %s481
      %s485 = sphi 0, %s484
      %s501 = sphi 0, %s485
      %s509 = sphi 0, %s511
      %s512 = sphi 0, %s509
      %s513 = sphi 0, %s512
      %s529 = sphi 0, %s513
    $region4: #{tpu_custom_call.1} parent=1 // loop_header_branch
      %42 = sbr.rel (%p40) target = $region8
    $region5: #{tpu_custom_call.1} parent=1 // loop_body
      %s44 = ssub.s32 %s39, 1
      %s45 = ssub.s32 %s39, 2
      %s52 = sadd.s32 1, %s47
      %p53 = scmp.ge.s32.totalorder %s52, 1
      %s54 = scalar_select %p53, 0, %s52
      %s55 = sadd.s32 1, %s46
      %s56 = scalar_select %p53, %s55, %s46
      %p57 = scmp.ge.s32.totalorder %s56, 2
      %s58 = scalar_select %p57, 0, %s56
      %s59 = ssub.s32 %s46, %s58
      %p60 = scmp.eq.s32.totalorder %s59, 0
      %s62 = sadd.s32 %s61, 1
      %s63 = scalar_select %p60, %s61, %s62
      %p66 = pneg %p60
      %p67 = scmp.eq.s32.totalorder %s39, 1
      %p68 = por %p66, %p67
      %p69 = scmp.ne.s32.totalorder %s61, %s64
      %p70 = scmp.eq.s32.totalorder %s39, 0
      %p71 = por %p69, %p70
      %p72 = scmp.ne.s32.totalorder %s61, %s64
      %p73 = scmp.eq.s32.totalorder %s44, 1
      %p74 = por %p72, %p73
      %p75 = scmp.ne.s32.totalorder %s64, %s65
      %p76 = scmp.eq.s32.totalorder %s44, 0
      %p77 = por %p75, %p76
      %p78 = scmp.ne.s32.totalorder %s64, %s65
      %p79 = scmp.eq.s32.totalorder %s45, 1
      %p80 = por %p78, %p79
      %p82 = scmp.ne.s32.totalorder %s65, %s81
      %p83 = scmp.eq.s32.totalorder %s45, 0
      %p84 = por %p82, %p83
      %s85 = ssub.s32 %s46, %s58
      %s86 = ssub.s32 %s47, %s54
      %s87 = sor.u32 %s85, %s86
      %p88 = scmp.eq.s32.totalorder %s87, 0
      %s90 = sadd.s32 %s89, 1
      %s91 = scalar_select %p88, %s89, %s90
      %p94 = pneg %p88
      %p95 = scmp.eq.s32.totalorder %s39, 1
      %p96 = por %p94, %p95
      %p97 = scmp.ne.s32.totalorder %s89, %s92
      %p98 = scmp.eq.s32.totalorder %s39, 0
      %p99 = por %p97, %p98
      %p100 = scmp.ne.s32.totalorder %s89, %s92
      %p101 = scmp.eq.s32.totalorder %s44, 1
      %p102 = por %p100, %p101
      %p103 = scmp.ne.s32.totalorder %s92, %s93
      %p104 = scmp.eq.s32.totalorder %s44, 0
      %p105 = por %p103, %p104
      %p106 = scmp.ne.s32.totalorder %s92, %s93
      %p107 = scmp.eq.s32.totalorder %s45, 1
      %p108 = por %p106, %p107
      %p110 = scmp.ne.s32.totalorder %s93, %s109
      %p111 = scmp.eq.s32.totalorder %s45, 0
      %p112 = por %p110, %p111
      %s113 = ssub.s32 %s46, %s58
      %s114 = ssub.s32 %s47, %s54
      %s115 = sor.u32 %s113, %s114
      %p116 = scmp.eq.s32.totalorder %s115, 0
      %s118 = sadd.s32 %s117, 1
      %s119 = scalar_select %p116, %s117, %s118
      %p122 = pneg %p116
      %p123 = scmp.eq.s32.totalorder %s39, 1
      %p124 = por %p122, %p123
      %p125 = scmp.ne.s32.totalorder %s117, %s120
      %p126 = scmp.eq.s32.totalorder %s39, 0
      %p127 = por %p125, %p126
      %p128 = scmp.ne.s32.totalorder %s117, %s120
      %p129 = scmp.eq.s32.totalorder %s44, 1
      %p130 = por %p128, %p129
      %p131 = scmp.ne.s32.totalorder %s120, %s121
      %p132 = scmp.eq.s32.totalorder %s44, 0
      %p133 = por %p131, %p132
      %p134 = scmp.ne.s32.totalorder %s120, %s121
      %p135 = scmp.eq.s32.totalorder %s45, 1
      %p136 = por %p134, %p135
      %p138 = scmp.ne.s32.totalorder %s121, %s137
      %p139 = scmp.eq.s32.totalorder %s45, 0
      %p140 = por %p138, %p139
      %s142 = sadd.s32 %s141, 1
      %p145 = scmp.eq.s32.totalorder %s39, 1
      %p146 = scmp.ne.s32.totalorder %s141, %s143
      %p147 = scmp.eq.s32.totalorder %s39, 0
      %p148 = por %p146, %p147
      %p149 = scmp.ne.s32.totalorder %s141, %s143
      %p150 = scmp.eq.s32.totalorder %s44, 1
      %p151 = por %p149, %p150
      %p152 = scmp.ne.s32.totalorder %s143, %s144
      %p153 = scmp.eq.s32.totalorder %s44, 0
      %p154 = por %p152, %p153
      %p155 = scmp.ne.s32.totalorder %s143, %s144
      %p156 = scmp.eq.s32.totalorder %s45, 1
      %p157 = por %p155, %p156
      %p159 = scmp.ne.s32.totalorder %s144, %s158
      %p160 = scmp.eq.s32.totalorder %s45, 0
      %p161 = por %p159, %p160
      %s163 = sadd.s32 %s162, 1
      %p166 = scmp.eq.s32.totalorder %s39, 1
      %p167 = scmp.ne.s32.totalorder %s162, %s164
      %p168 = scmp.eq.s32.totalorder %s39, 0
      %p169 = por %p167, %p168
      %p170 = scmp.ne.s32.totalorder %s162, %s164
      %p171 = scmp.eq.s32.totalorder %s44, 1
      %p172 = por %p170, %p171
      %p173 = scmp.ne.s32.totalorder %s164, %s165
      %p174 = scmp.eq.s32.totalorder %s44, 0
      %p175 = por %p173, %p174
      %p176 = scmp.ne.s32.totalorder %s164, %s165
      %p177 = scmp.eq.s32.totalorder %s45, 1
      %p178 = por %p176, %p177
      %p180 = scmp.ne.s32.totalorder %s165, %s179
      %p181 = scmp.eq.s32.totalorder %s45, 0
      %p182 = por %p180, %p181
      %s184 = sadd.s32 %s183, 1
      %p187 = scmp.eq.s32.totalorder %s39, 1
      %p188 = scmp.ne.s32.totalorder %s183, %s185
      %p189 = scmp.eq.s32.totalorder %s39, 0
      %p190 = por %p188, %p189
      %p191 = scmp.ne.s32.totalorder %s183, %s185
      %p192 = scmp.eq.s32.totalorder %s44, 1
      %p193 = por %p191, %p192
      %p194 = scmp.ne.s32.totalorder %s185, %s186
      %p195 = scmp.eq.s32.totalorder %s44, 0
      %p196 = por %p194, %p195
      %p197 = scmp.ne.s32.totalorder %s185, %s186
      %p198 = scmp.eq.s32.totalorder %s45, 1
      %p199 = por %p197, %p198
      %p201 = scmp.ne.s32.totalorder %s186, %s200
      %p202 = scmp.eq.s32.totalorder %s45, 0
      %p203 = por %p201, %p202
      %s205 = sadd.s32 %s204, 1
      %p208 = scmp.eq.s32.totalorder %s39, 1
      %p209 = scmp.ne.s32.totalorder %s204, %s206
      %p210 = scmp.eq.s32.totalorder %s39, 0
      %p211 = por %p209, %p210
      %p212 = scmp.ne.s32.totalorder %s204, %s206
      %p213 = scmp.eq.s32.totalorder %s44, 1
      %p214 = por %p212, %p213
      %p215 = scmp.ne.s32.totalorder %s206, %s207
      %p216 = scmp.eq.s32.totalorder %s44, 0
      %p217 = por %p215, %p216
      %p218 = scmp.ne.s32.totalorder %s206, %s207
      %p219 = scmp.eq.s32.totalorder %s45, 1
      %p220 = por %p218, %p219
      %p222 = scmp.ne.s32.totalorder %s207, %s221
      %p223 = scmp.eq.s32.totalorder %s45, 0
      %p224 = por %p222, %p223
      %s226 = sadd.s32 %s225, 1
      %p229 = scmp.eq.s32.totalorder %s39, 1
      %p230 = scmp.ne.s32.totalorder %s225, %s227
      %p231 = scmp.eq.s32.totalorder %s39, 0
      %p232 = por %p230, %p231
      %p233 = scmp.ne.s32.totalorder %s225, %s227
      %p234 = scmp.eq.s32.totalorder %s44, 1
      %p235 = por %p233, %p234
      %p236 = scmp.ne.s32.totalorder %s227, %s228
      %p237 = scmp.eq.s32.totalorder %s44, 0
      %p238 = por %p236, %p237
      %p239 = scmp.ne.s32.totalorder %s227, %s228
      %p240 = scmp.eq.s32.totalorder %s45, 1
      %p241 = por %p239, %p240
      %p243 = scmp.ne.s32.totalorder %s228, %s242
      %p244 = scmp.eq.s32.totalorder %s45, 0
      %p245 = por %p243, %p244
      %s247 = sadd.s32 %s246, 1
      %p250 = scmp.eq.s32.totalorder %s39, 1
      %p251 = scmp.ne.s32.totalorder %s246, %s248
      %p252 = scmp.eq.s32.totalorder %s39, 0
      %p253 = por %p251, %p252
      %p254 = scmp.ne.s32.totalorder %s246, %s248
      %p255 = scmp.eq.s32.totalorder %s44, 1
      %p256 = por %p254, %p255
      %p257 = scmp.ne.s32.totalorder %s248, %s249
      %p258 = scmp.eq.s32.totalorder %s44, 0
      %p259 = por %p257, %p258
      %p260 = scmp.ne.s32.totalorder %s248, %s249
      %p261 = scmp.eq.s32.totalorder %s45, 1
      %p262 = por %p260, %p261
      %p264 = scmp.ne.s32.totalorder %s249, %s263
      %p265 = scmp.eq.s32.totalorder %s45, 0
      %p266 = por %p264, %p265
      %s268 = sadd.s32 %s267, 1
      %p271 = scmp.eq.s32.totalorder %s39, 1
      %p272 = scmp.ne.s32.totalorder %s267, %s269
      %p273 = scmp.eq.s32.totalorder %s39, 0
      %p274 = por %p272, %p273
      %p275 = scmp.ne.s32.totalorder %s267, %s269
      %p276 = scmp.eq.s32.totalorder %s44, 1
      %p277 = por %p275, %p276
      %p278 = scmp.ne.s32.totalorder %s269, %s270
      %p279 = scmp.eq.s32.totalorder %s44, 0
      %p280 = por %p278, %p279
      %p281 = scmp.ne.s32.totalorder %s269, %s270
      %p282 = scmp.eq.s32.totalorder %s45, 1
      %p283 = por %p281, %p282
      %p285 = scmp.ne.s32.totalorder %s270, %s284
      %p286 = scmp.eq.s32.totalorder %s45, 0
      %p287 = por %p285, %p286
      %s289 = sadd.s32 %s288, 1
      %p292 = scmp.eq.s32.totalorder %s39, 1
      %p293 = scmp.ne.s32.totalorder %s288, %s290
      %p294 = scmp.eq.s32.totalorder %s39, 0
      %p295 = por %p293, %p294
      %p296 = scmp.ne.s32.totalorder %s288, %s290
      %p297 = scmp.eq.s32.totalorder %s44, 1
      %p298 = por %p296, %p297
      %p299 = scmp.ne.s32.totalorder %s290, %s291
      %p300 = scmp.eq.s32.totalorder %s44, 0
      %p301 = por %p299, %p300
      %p302 = scmp.ne.s32.totalorder %s290, %s291
      %p303 = scmp.eq.s32.totalorder %s45, 1
      %p304 = por %p302, %p303
      %p306 = scmp.ne.s32.totalorder %s291, %s305
      %p307 = scmp.eq.s32.totalorder %s45, 0
      %p308 = por %p306, %p307
      %s310 = sadd.s32 %s309, 1
      %p313 = scmp.eq.s32.totalorder %s39, 1
      %p314 = scmp.ne.s32.totalorder %s309, %s311
      %p315 = scmp.eq.s32.totalorder %s39, 0
      %p316 = por %p314, %p315
      %p317 = scmp.ne.s32.totalorder %s309, %s311
      %p318 = scmp.eq.s32.totalorder %s44, 1
      %p319 = por %p317, %p318
      %p320 = scmp.ne.s32.totalorder %s311, %s312
      %p321 = scmp.eq.s32.totalorder %s44, 0
      %p322 = por %p320, %p321
      %p323 = scmp.ne.s32.totalorder %s311, %s312
      %p324 = scmp.eq.s32.totalorder %s45, 1
      %p325 = por %p323, %p324
      %p327 = scmp.ne.s32.totalorder %s312, %s326
      %p328 = scmp.eq.s32.totalorder %s45, 0
      %p329 = por %p327, %p328
      %s331 = sadd.s32 %s330, 1
      %p334 = scmp.eq.s32.totalorder %s39, 1
      %p335 = scmp.ne.s32.totalorder %s330, %s332
      %p336 = scmp.eq.s32.totalorder %s39, 0
      %p337 = por %p335, %p336
      %p338 = scmp.ne.s32.totalorder %s330, %s332
      %p339 = scmp.eq.s32.totalorder %s44, 1
      %p340 = por %p338, %p339
      %p341 = scmp.ne.s32.totalorder %s332, %s333
      %p342 = scmp.eq.s32.totalorder %s44, 0
      %p343 = por %p341, %p342
      %p344 = scmp.ne.s32.totalorder %s332, %s333
      %p345 = scmp.eq.s32.totalorder %s45, 1
      %p346 = por %p344, %p345
      %p348 = scmp.ne.s32.totalorder %s333, %s347
      %p349 = scmp.eq.s32.totalorder %s45, 0
      %p350 = por %p348, %p349
      %s352 = sadd.s32 %s351, 1
      %p355 = scmp.eq.s32.totalorder %s39, 1
      %p356 = scmp.ne.s32.totalorder %s351, %s353
      %p357 = scmp.eq.s32.totalorder %s39, 0
      %p358 = por %p356, %p357
      %p359 = scmp.ne.s32.totalorder %s351, %s353
      %p360 = scmp.eq.s32.totalorder %s44, 1
      %p361 = por %p359, %p360
      %p362 = scmp.ne.s32.totalorder %s353, %s354
      %p363 = scmp.eq.s32.totalorder %s44, 0
      %p364 = por %p362, %p363
      %p365 = scmp.ne.s32.totalorder %s353, %s354
      %p366 = scmp.eq.s32.totalorder %s45, 1
      %p367 = por %p365, %p366
      %p369 = scmp.ne.s32.totalorder %s354, %s368
      %p370 = scmp.eq.s32.totalorder %s45, 0
      %p371 = por %p369, %p370
      %s373 = sadd.s32 %s372, 1
      %p376 = scmp.eq.s32.totalorder %s39, 1
      %p377 = scmp.ne.s32.totalorder %s372, %s374
      %p378 = scmp.eq.s32.totalorder %s39, 0
      %p379 = por %p377, %p378
      %p380 = scmp.ne.s32.totalorder %s372, %s374
      %p381 = scmp.eq.s32.totalorder %s44, 1
      %p382 = por %p380, %p381
      %p383 = scmp.ne.s32.totalorder %s374, %s375
      %p384 = scmp.eq.s32.totalorder %s44, 0
      %p385 = por %p383, %p384
      %p386 = scmp.ne.s32.totalorder %s374, %s375
      %p387 = scmp.eq.s32.totalorder %s45, 1
      %p388 = por %p386, %p387
      %p390 = scmp.ne.s32.totalorder %s375, %s389
      %p391 = scmp.eq.s32.totalorder %s45, 0
      %p392 = por %p390, %p391
      %s394 = sadd.s32 %s393, 1
      %p397 = scmp.eq.s32.totalorder %s39, 1
      %p398 = scmp.ne.s32.totalorder %s393, %s395
      %p399 = scmp.eq.s32.totalorder %s39, 0
      %p400 = por %p398, %p399
      %p401 = scmp.ne.s32.totalorder %s393, %s395
      %p402 = scmp.eq.s32.totalorder %s44, 1
      %p403 = por %p401, %p402
      %p404 = scmp.ne.s32.totalorder %s395, %s396
      %p405 = scmp.eq.s32.totalorder %s44, 0
      %p406 = por %p404, %p405
      %p407 = scmp.ne.s32.totalorder %s395, %s396
      %p408 = scmp.eq.s32.totalorder %s45, 1
      %p409 = por %p407, %p408
      %p411 = scmp.ne.s32.totalorder %s396, %s410
      %p412 = scmp.eq.s32.totalorder %s45, 0
      %p413 = por %p411, %p412
      %s415 = sadd.s32 %s414, 1
      %p418 = scmp.eq.s32.totalorder %s39, 1
      %p419 = scmp.ne.s32.totalorder %s414, %s416
      %p420 = scmp.eq.s32.totalorder %s39, 0
      %p421 = por %p419, %p420
      %p422 = scmp.ne.s32.totalorder %s414, %s416
      %p423 = scmp.eq.s32.totalorder %s44, 1
      %p424 = por %p422, %p423
      %p425 = scmp.ne.s32.totalorder %s416, %s417
      %p426 = scmp.eq.s32.totalorder %s44, 0
      %p427 = por %p425, %p426
      %p428 = scmp.ne.s32.totalorder %s416, %s417
      %p429 = scmp.eq.s32.totalorder %s45, 1
      %p430 = por %p428, %p429
      %p432 = scmp.ne.s32.totalorder %s417, %s431
      %p433 = scmp.eq.s32.totalorder %s45, 0
      %p434 = por %p432, %p433
      %s436 = sadd.s32 %s435, 1
      %p439 = scmp.eq.s32.totalorder %s39, 1
      %p440 = scmp.ne.s32.totalorder %s435, %s437
      %p441 = scmp.eq.s32.totalorder %s39, 0
      %p442 = por %p440, %p441
      %p443 = scmp.ne.s32.totalorder %s435, %s437
      %p444 = scmp.eq.s32.totalorder %s44, 1
      %p445 = por %p443, %p444
      %p446 = scmp.ne.s32.totalorder %s437, %s438
      %p447 = scmp.eq.s32.totalorder %s44, 0
      %p448 = por %p446, %p447
      %p449 = scmp.ne.s32.totalorder %s437, %s438
      %p450 = scmp.eq.s32.totalorder %s45, 1
      %p451 = por %p449, %p450
      %p453 = scmp.ne.s32.totalorder %s438, %s452
      %p454 = scmp.eq.s32.totalorder %s45, 0
      %p455 = por %p453, %p454
      %s457 = sadd.s32 %s456, 1
      %p460 = scmp.eq.s32.totalorder %s39, 1
      %p461 = scmp.ne.s32.totalorder %s456, %s458
      %p462 = scmp.eq.s32.totalorder %s39, 0
      %p463 = por %p461, %p462
      %p464 = scmp.ne.s32.totalorder %s456, %s458
      %p465 = scmp.eq.s32.totalorder %s44, 1
      %p466 = por %p464, %p465
      %p467 = scmp.ne.s32.totalorder %s458, %s459
      %p468 = scmp.eq.s32.totalorder %s44, 0
      %p469 = por %p467, %p468
      %p470 = scmp.ne.s32.totalorder %s458, %s459
      %p471 = scmp.eq.s32.totalorder %s45, 1
      %p472 = por %p470, %p471
      %p474 = scmp.ne.s32.totalorder %s459, %s473
      %p475 = scmp.eq.s32.totalorder %s45, 0
      %p476 = por %p474, %p475
      %s477 = ssub.s32 %s46, %s58
      %s478 = ssub.s32 %s47, %s54
      %s479 = sor.u32 %s477, %s478
      %p480 = scmp.eq.s32.totalorder %s479, 0
      %s482 = sadd.s32 %s481, 1
      %s483 = scalar_select %p480, %s481, %s482
      %p486 = pneg %p480
      %p487 = scmp.eq.s32.totalorder %s39, 1
      %p488 = por %p486, %p487
      %p489 = scmp.ne.s32.totalorder %s481, %s484
      %p490 = scmp.eq.s32.totalorder %s39, 0
      %p491 = por %p489, %p490
      %p492 = scmp.ne.s32.totalorder %s481, %s484
      %p493 = scmp.eq.s32.totalorder %s44, 1
      %p494 = por %p492, %p493
      %p495 = scmp.ne.s32.totalorder %s484, %s485
      %p496 = scmp.eq.s32.totalorder %s44, 0
      %p497 = por %p495, %p496
      %p498 = scmp.ne.s32.totalorder %s484, %s485
      %p499 = scmp.eq.s32.totalorder %s45, 1
      %p500 = por %p498, %p499
      %p502 = scmp.ne.s32.totalorder %s485, %s501
      %p503 = scmp.eq.s32.totalorder %s45, 0
      %p504 = por %p502, %p503
      %s505 = ssub.s32 %s46, %s58
      %s506 = ssub.s32 %s47, %s54
      %s507 = sor.u32 %s505, %s506
      %p508 = scmp.eq.s32.totalorder %s507, 0
      %s510 = sadd.s32 %s509, 1
      %s511 = scalar_select %p508, %s509, %s510
      %p514 = pneg %p508
      %p515 = scmp.eq.s32.totalorder %s39, 1
      %p516 = por %p514, %p515
      %p517 = scmp.ne.s32.totalorder %s509, %s512
      %p518 = scmp.eq.s32.totalorder %s39, 0
      %p519 = por %p517, %p518
      %p520 = scmp.ne.s32.totalorder %s509, %s512
      %p521 = scmp.eq.s32.totalorder %s44, 1
      %p522 = por %p520, %p521
      %p523 = scmp.ne.s32.totalorder %s512, %s513
      %p524 = scmp.eq.s32.totalorder %s44, 0
      %p525 = por %p523, %p524
      %p526 = scmp.ne.s32.totalorder %s512, %s513
      %p527 = scmp.eq.s32.totalorder %s45, 1
      %p528 = por %p526, %p527
      %p530 = scmp.ne.s32.totalorder %s513, %s529
      %p531 = scmp.eq.s32.totalorder %s45, 0
      %p532 = por %p530, %p531
      %p533 = scmp.le.s32.totalorder 1, %s39
      %p534 = scmp.lt.s32.totalorder %s39, 3
      %p535 = pnand %p533, %p534
      %p536 = pneg %p535
      // Predicated region
      $region9: #{tpu_custom_call.1} parent=5 // pred_check
        _
      $region10: #{tpu_custom_call.1} parent=5 // pred_check_branch
        %538 = sbr.rel (%p535) target = $region12
      $region11: #{tpu_custom_call.1} parent=5 // pred_region
        %s539 = ssub.s32 %s39, 1
        // Predicated region
        $region13: #{tpu_custom_call.1} parent=11 // pred_check
          %p540 = pneg %p154
        $region14: #{tpu_custom_call.1} parent=11 // pred_check_branch
          %542 = sbr.rel (%p540) target = $region16
        $region15: #{tpu_custom_call.1} parent=11 // pred_region
          %544 = vsyncadd [#allocation6], 0
          %s546 = sshll.u32 %s3, 4
          %s547 = int_to_ptr.hbm [resolvable:$true] %s546
          %s548 = sshll.u32 [#allocation5], 4
          %s549 = int_to_ptr.vmem [resolvable:$true] %s548
          %551 = dma.hbm_to_vmem [thread:$0]  %s547, 16, %s549, [#allocation6]
        $region16: #{tpu_custom_call.1} parent=11 // pred_fallthru
          _
        // Predicated region
        $region17: #{tpu_custom_call.1} parent=11 // pred_check
          %p552 = pneg %p175
        $region18: #{tpu_custom_call.1} parent=11 // pred_check_branch
          %554 = sbr.rel (%p552) target = $region20
        $region19: #{tpu_custom_call.1} parent=11 // pred_region
          %556 = vsyncadd [#allocation9], 0
          %s558 = sshll.u32 %s4, 4
          %s559 = int_to_ptr.hbm [resolvable:$true] %s558
          %s560 = sshll.u32 [#allocation8], 4
          %s561 = int_to_ptr.vmem [resolvable:$true] %s560
          %563 = dma.hbm_to_vmem [thread:$0]  %s559, 16, %s561, [#allocation9]
        $region20: #{tpu_custom_call.1} parent=11 // pred_fallthru
          _
        // Predicated region
        $region21: #{tpu_custom_call.1} parent=11 // pred_check
          %p564 = pneg %p196
        $region22: #{tpu_custom_call.1} parent=11 // pred_check_branch
          %566 = sbr.rel (%p564) target = $region24
        $region23: #{tpu_custom_call.1} parent=11 // pred_region
          _
        $region24: #{tpu_custom_call.1} parent=11 // pred_fallthru
          _
        // Predicated region
        $region25: #{tpu_custom_call.1} parent=11 // pred_check
          %p567 = pneg %p217
        $region26: #{tpu_custom_call.1} parent=11 // pred_check_branch
          %569 = sbr.rel (%p567) target = $region28
        $region27: #{tpu_custom_call.1} parent=11 // pred_region
          %571 = vsyncadd [#allocation9], 0
          %s573 = sshll.u32 %s6, 4
          %s574 = int_to_ptr.hbm [resolvable:$true] %s573
          %s575 = sshll.u32 [#allocation10], 4
          %s576 = int_to_ptr.vmem [resolvable:$true] %s575
          %578 = dma.hbm_to_vmem [thread:$0]  %s574, 16, %s576, [#allocation9]
        $region28: #{tpu_custom_call.1} parent=11 // pred_fallthru
          _
        // Predicated region
        $region29: #{tpu_custom_call.1} parent=11 // pred_check
          %p579 = pneg %p238
        $region30: #{tpu_custom_call.1} parent=11 // pred_check_branch
          %581 = sbr.rel (%p579) target = $region32
        $region31: #{tpu_custom_call.1} parent=11 // pred_region
          _
        $region32: #{tpu_custom_call.1} parent=11 // pred_fallthru
          _
        // Predicated region
        $region33: #{tpu_custom_call.1} parent=11 // pred_check
          %p582 = pneg %p259
        $region34: #{tpu_custom_call.1} parent=11 // pred_check_branch
          %584 = sbr.rel (%p582) target = $region36
        $region35: #{tpu_custom_call.1} parent=11 // pred_region
          %586 = vsyncadd [#allocation12], 0
          %s588 = sshll.u32 %s8, 4
          %s589 = int_to_ptr.hbm [resolvable:$true] %s588
          %s590 = sshll.u32 [#allocation11], 4
          %s591 = int_to_ptr.vmem [resolvable:$true] %s590
          %593 = dma.hbm_to_vmem [thread:$0]  %s589, 16, %s591, [#allocation12]
        $region36: #{tpu_custom_call.1} parent=11 // pred_fallthru
          _
        // Predicated region
        $region37: #{tpu_custom_call.1} parent=11 // pred_check
          %p594 = pneg %p280
        $region38: #{tpu_custom_call.1} parent=11 // pred_check_branch
          %596 = sbr.rel (%p594) target = $region40
        $region39: #{tpu_custom_call.1} parent=11 // pred_region
          %598 = vsyncadd [#allocation12], 0
          %s599 = sshll.u32 %s9, 4
          %s600 = int_to_ptr.hbm [resolvable:$true] %s599
          %s601 = sshll.u32 [#allocation13], 4
          %s602 = int_to_ptr.vmem [resolvable:$true] %s601
          %607 = dma.hbm_to_vmem [thread:$0]  %s600, 256, %s602, [#allocation12], 64, 64, 4
        $region40: #{tpu_custom_call.1} parent=11 // pred_fallthru
          _
        // Predicated region
        $region41: #{tpu_custom_call.1} parent=11 // pred_check
          %p608 = pneg %p301
        $region42: #{tpu_custom_call.1} parent=11 // pred_check_branch
          %610 = sbr.rel (%p608) target = $region44
        $region43: #{tpu_custom_call.1} parent=11 // pred_region
          %612 = vsyncadd [#allocation15], 0
          %s614 = sshll.u32 %s10, 4
          %s615 = int_to_ptr.hbm [resolvable:$true] %s614
          %s616 = sshll.u32 [#allocation14], 4
          %s617 = int_to_ptr.vmem [resolvable:$true] %s616
          %619 = dma.hbm_to_vmem [thread:$0]  %s615, 16, %s617, [#allocation15]
        $region44: #{tpu_custom_call.1} parent=11 // pred_fallthru
          _
        // Predicated region
        $region45: #{tpu_custom_call.1} parent=11 // pred_check
          %p620 = pneg %p322
        $region46: #{tpu_custom_call.1} parent=11 // pred_check_branch
          %622 = sbr.rel (%p620) target = $region48
        $region47: #{tpu_custom_call.1} parent=11 // pred_region
          %624 = vsyncadd [#allocation15], 0
          %s625 = sshll.u32 %s11, 4
          %s626 = int_to_ptr.hbm [resolvable:$true] %s625
          %s627 = sshll.u32 [#allocation16], 4
          %s628 = int_to_ptr.vmem [resolvable:$true] %s627
          %633 = dma.hbm_to_vmem [thread:$0]  %s626, 256, %s628, [#allocation15], 64, 64, 4
        $region48: #{tpu_custom_call.1} parent=11 // pred_fallthru
          _
        // Predicated region
        $region49: #{tpu_custom_call.1} parent=11 // pred_check
          %p634 = pneg %p343
        $region50: #{tpu_custom_call.1} parent=11 // pred_check_branch
          %636 = sbr.rel (%p634) target = $region52
        $region51: #{tpu_custom_call.1} parent=11 // pred_region
          %638 = vsyncadd [#allocation18], 0
          %s640 = sshll.u32 %s12, 4
          %s641 = int_to_ptr.hbm [resolvable:$true] %s640
          %s642 = sshll.u32 [#allocation17], 4
          %s643 = int_to_ptr.vmem [resolvable:$true] %s642
          %645 = dma.hbm_to_vmem [thread:$0]  %s641, 16, %s643, [#allocation18]
        $region52: #{tpu_custom_call.1} parent=11 // pred_fallthru
          _
        // Predicated region
        $region53: #{tpu_custom_call.1} parent=11 // pred_check
          %p646 = pneg %p364
        $region54: #{tpu_custom_call.1} parent=11 // pred_check_branch
          %648 = sbr.rel (%p646) target = $region56
        $region55: #{tpu_custom_call.1} parent=11 // pred_region
          %650 = vsyncadd [#allocation18], 0
          %s652 = sshll.u32 %s13, 4
          %s653 = int_to_ptr.hbm [resolvable:$true] %s652
          %s654 = sshll.u32 [#allocation19], 4
          %s655 = int_to_ptr.vmem [resolvable:$true] %s654
          %657 = dma.hbm_to_vmem [thread:$0]  %s653, 16, %s655, [#allocation18]
        $region56: #{tpu_custom_call.1} parent=11 // pred_fallthru
          _
        // Predicated region
        $region57: #{tpu_custom_call.1} parent=11 // pred_check
          %p658 = pneg %p385
        $region58: #{tpu_custom_call.1} parent=11 // pred_check_branch
          %660 = sbr.rel (%p658) target = $region60
        $region59: #{tpu_custom_call.1} parent=11 // pred_region
          %662 = vsyncadd [#allocation21], 0
          %s664 = sshll.u32 %s14, 4
          %s665 = int_to_ptr.hbm [resolvable:$true] %s664
          %s666 = sshll.u32 [#allocation20], 4
          %s667 = int_to_ptr.vmem [resolvable:$true] %s666
          %669 = dma.hbm_to_vmem [thread:$0]  %s665, 16, %s667, [#allocation21]
        $region60: #{tpu_custom_call.1} parent=11 // pred_fallthru
          _
        // Predicated region
        $region61: #{tpu_custom_call.1} parent=11 // pred_check
          %p670 = pneg %p406
        $region62: #{tpu_custom_call.1} parent=11 // pred_check_branch
          %672 = sbr.rel (%p670) target = $region64
        $region63: #{tpu_custom_call.1} parent=11 // pred_region
          %674 = vsyncadd [#allocation21], 0
          %s675 = sshll.u32 %s15, 4
          %s676 = int_to_ptr.hbm [resolvable:$true] %s675
          %s677 = sshll.u32 [#allocation22], 4
          %s678 = int_to_ptr.vmem [resolvable:$true] %s677
          %683 = dma.hbm_to_vmem [thread:$0]  %s676, 256, %s678, [#allocation21], 64, 64, 4
        $region64: #{tpu_custom_call.1} parent=11 // pred_fallthru
          _
        // Predicated region
        $region65: #{tpu_custom_call.1} parent=11 // pred_check
          %p684 = pneg %p427
        $region66: #{tpu_custom_call.1} parent=11 // pred_check_branch
          %686 = sbr.rel (%p684) target = $region68
        $region67: #{tpu_custom_call.1} parent=11 // pred_region
          _
        $region68: #{tpu_custom_call.1} parent=11 // pred_fallthru
          _
        // Predicated region
        $region69: #{tpu_custom_call.1} parent=11 // pred_check
          %p687 = pneg %p448
        $region70: #{tpu_custom_call.1} parent=11 // pred_check_branch
          %689 = sbr.rel (%p687) target = $region72
        $region71: #{tpu_custom_call.1} parent=11 // pred_region
          _
        $region72: #{tpu_custom_call.1} parent=11 // pred_fallthru
          _
        // Predicated region
        $region73: #{tpu_custom_call.1} parent=11 // pred_check
          %p690 = pneg %p469
        $region74: #{tpu_custom_call.1} parent=11 // pred_check_branch
          %692 = sbr.rel (%p690) target = $region76
        $region75: #{tpu_custom_call.1} parent=11 // pred_region
          _
        $region76: #{tpu_custom_call.1} parent=11 // pred_fallthru
          _
      $region12: #{tpu_custom_call.1} parent=5 // pred_fallthru
        _
      %p693 = scmp.lt.s32.totalorder %s39, 2
      // Predicated region
      $region77: #{tpu_custom_call.1} parent=5 // pred_check
        %p694 = pneg %p693
      $region78: #{tpu_custom_call.1} parent=5 // pred_check_branch
        %696 = sbr.rel (%p694) target = $region80
      $region79: #{tpu_custom_call.1} parent=5 // pred_region
        // Predicated region
        $region81: #{tpu_custom_call.1} parent=79 // pred_check
          %p697 = pneg %p71
        $region82: #{tpu_custom_call.1} parent=79 // pred_check_branch
          %699 = sbr.rel (%p697) target = $region84
        $region83: #{tpu_custom_call.1} parent=79 // pred_region
          %p700 = scmp.lt.s32.totalorder %s46, 1
          %s701 = scalar_select %p700, %s46, 1
          %s702 = smul.addr %s701, 8
          %s703 = scalar_lea.vmem %s0, %s702
        $region84: #{tpu_custom_call.1} parent=79 // pred_fallthru
          _
        // Predicated region
        $region85: #{tpu_custom_call.1} parent=79 // pred_check
          %p704 = pneg %p99
        $region86: #{tpu_custom_call.1} parent=79 // pred_check_branch
          %706 = sbr.rel (%p704) target = $region88
        $region87: #{tpu_custom_call.1} parent=79 // pred_region
          %p707 = scmp.lt.s32.totalorder %s46, 1
          %s708 = scalar_select %p707, %s46, 1
          %p709 = scmp.lt.s32.totalorder %s47, 0
          %s710 = scalar_select %p709, %s47, 0
          %s711 = sadd.s32 %s710, %s708
          %s712 = smul.addr %s711, 8
          %s713 = scalar_lea.vmem %s1, %s712
        $region88: #{tpu_custom_call.1} parent=79 // pred_fallthru
          _
        // Predicated region
        $region89: #{tpu_custom_call.1} parent=79 // pred_check
          %p714 = pneg %p127
        $region90: #{tpu_custom_call.1} parent=79 // pred_check_branch
          %716 = sbr.rel (%p714) target = $region92
        $region91: #{tpu_custom_call.1} parent=79 // pred_region
          %p717 = scmp.lt.s32.totalorder %s46, 1
          %s718 = scalar_select %p717, %s46, 1
          %p719 = scmp.lt.s32.totalorder %s47, 0
          %s720 = scalar_select %p719, %s47, 0
          %s721 = sadd.s32 %s720, %s718
          %s722 = smul.addr %s721, 8
          %s723 = scalar_lea.vmem %s2, %s722
        $region92: #{tpu_custom_call.1} parent=79 // pred_fallthru
          _
      $region80: #{tpu_custom_call.1} parent=5 // pred_fallthru
        _
      %p724 = scmp.le.s32.totalorder 1, %s39
      %p725 = scmp.lt.s32.totalorder %s39, 3
      %p726 = pnand %p724, %p725
      %p727 = pneg %p726
      // Predicated region
      $region93: #{tpu_custom_call.1} parent=5 // pred_check
        _
      $region94: #{tpu_custom_call.1} parent=5 // pred_check_branch
        %729 = sbr.rel (%p726) target = $region96
      $region95: #{tpu_custom_call.1} parent=5 // pred_region
        %s730 = ssub.s32 %s39, 1
        // Predicated region
        $region97: #{tpu_custom_call.1} parent=95 // pred_check
          %p731 = pneg %p154
        $region98: #{tpu_custom_call.1} parent=95 // pred_check_branch
          %733 = sbr.rel (%p731) target = $region100
        $region99: #{tpu_custom_call.1} parent=95 // pred_region
          %735 = dma.done [#allocation6], 16
        $region100: #{tpu_custom_call.1} parent=95 // pred_fallthru
          _
        // Predicated region
        $region101: #{tpu_custom_call.1} parent=95 // pred_check
          %p736 = pneg %p175
        $region102: #{tpu_custom_call.1} parent=95 // pred_check_branch
          %738 = sbr.rel (%p736) target = $region104
        $region103: #{tpu_custom_call.1} parent=95 // pred_region
          %740 = dma.done [#allocation9], 16
        $region104: #{tpu_custom_call.1} parent=95 // pred_fallthru
          _
        // Predicated region
        $region105: #{tpu_custom_call.1} parent=95 // pred_check
          %p741 = pneg %p217
        $region106: #{tpu_custom_call.1} parent=95 // pred_check_branch
          %743 = sbr.rel (%p741) target = $region108
        $region107: #{tpu_custom_call.1} parent=95 // pred_region
          %745 = dma.done [#allocation9], 16
        $region108: #{tpu_custom_call.1} parent=95 // pred_fallthru
          _
        // Predicated region
        $region109: #{tpu_custom_call.1} parent=95 // pred_check
          %p746 = pneg %p259
        $region110: #{tpu_custom_call.1} parent=95 // pred_check_branch
          %748 = sbr.rel (%p746) target = $region112
        $region111: #{tpu_custom_call.1} parent=95 // pred_region
          %750 = dma.done [#allocation12], 16
        $region112: #{tpu_custom_call.1} parent=95 // pred_fallthru
          _
        // Predicated region
        $region113: #{tpu_custom_call.1} parent=95 // pred_check
          %p751 = pneg %p280
        $region114: #{tpu_custom_call.1} parent=95 // pred_check_branch
          %753 = sbr.rel (%p751) target = $region116
        $region115: #{tpu_custom_call.1} parent=95 // pred_region
          %755 = dma.done [#allocation12], 256
        $region116: #{tpu_custom_call.1} parent=95 // pred_fallthru
          _
        // Predicated region
        $region117: #{tpu_custom_call.1} parent=95 // pred_check
          %p756 = pneg %p301
        $region118: #{tpu_custom_call.1} parent=95 // pred_check_branch
          %758 = sbr.rel (%p756) target = $region120
        $region119: #{tpu_custom_call.1} parent=95 // pred_region
          %760 = dma.done [#allocation15], 16
        $region120: #{tpu_custom_call.1} parent=95 // pred_fallthru
          _
        // Predicated region
        $region121: #{tpu_custom_call.1} parent=95 // pred_check
          %p761 = pneg %p322
        $region122: #{tpu_custom_call.1} parent=95 // pred_check_branch
          %763 = sbr.rel (%p761) target = $region124
        $region123: #{tpu_custom_call.1} parent=95 // pred_region
          %765 = dma.done [#allocation15], 256
        $region124: #{tpu_custom_call.1} parent=95 // pred_fallthru
          _
        // Predicated region
        $region125: #{tpu_custom_call.1} parent=95 // pred_check
          %p766 = pneg %p343
        $region126: #{tpu_custom_call.1} parent=95 // pred_check_branch
          %768 = sbr.rel (%p766) target = $region128
        $region127: #{tpu_custom_call.1} parent=95 // pred_region
          %770 = dma.done [#allocation18], 16
        $region128: #{tpu_custom_call.1} parent=95 // pred_fallthru
          _
        // Predicated region
        $region129: #{tpu_custom_call.1} parent=95 // pred_check
          %p771 = pneg %p364
        $region130: #{tpu_custom_call.1} parent=95 // pred_check_branch
          %773 = sbr.rel (%p771) target = $region132
        $region131: #{tpu_custom_call.1} parent=95 // pred_region
          %775 = dma.done [#allocation18], 16
        $region132: #{tpu_custom_call.1} parent=95 // pred_fallthru
          _
        // Predicated region
        $region133: #{tpu_custom_call.1} parent=95 // pred_check
          %p776 = pneg %p385
        $region134: #{tpu_custom_call.1} parent=95 // pred_check_branch
          %778 = sbr.rel (%p776) target = $region136
        $region135: #{tpu_custom_call.1} parent=95 // pred_region
          %780 = dma.done [#allocation21], 16
        $region136: #{tpu_custom_call.1} parent=95 // pred_fallthru
          _
        // Predicated region
        $region137: #{tpu_custom_call.1} parent=95 // pred_check
          %p781 = pneg %p406
        $region138: #{tpu_custom_call.1} parent=95 // pred_check_branch
          %783 = sbr.rel (%p781) target = $region140
        $region139: #{tpu_custom_call.1} parent=95 // pred_region
          %785 = dma.done [#allocation21], 256
        $region140: #{tpu_custom_call.1} parent=95 // pred_fallthru
          _
        %p786 = scmp.lt.s32.totalorder %s48, 1
        %s787 = scalar_select %p786, %s48, 1
        %s788 = smul.addr %s787, 8
        %s789 = scalar_lea.vmem %s0, %s788
        %p790 = pneg %p77
        %p791 = pneg %p74
        %p792 = scmp.lt.s32.totalorder %s48, 1
        %s793 = scalar_select %p792, %s48, 1
        %p794 = scmp.lt.s32.totalorder %s49, 0
        %s795 = scalar_select %p794, %s49, 0
        %s796 = sadd.s32 %s795, %s793
        %s797 = smul.addr %s796, 8
        %s798 = scalar_lea.vmem %s1, %s797
        %p799 = pneg %p105
        %p800 = pneg %p102
        %p801 = scmp.lt.s32.totalorder %s48, 1
        %s802 = scalar_select %p801, %s48, 1
        %p803 = scmp.lt.s32.totalorder %s49, 0
        %s804 = scalar_select %p803, %s49, 0
        %s805 = sadd.s32 %s804, %s802
        %s806 = smul.addr %s805, 8
        %s807 = scalar_lea.vmem %s2, %s806
        %p808 = pneg %p133
        %p809 = pneg %p130
        %p810 = pneg %p154
        %p811 = pneg %p151
        %p812 = pneg %p175
        %p813 = pneg %p172
        %p814 = pneg %p196
        %p815 = pneg %p193
        %p816 = pneg %p217
        %p817 = pneg %p214
        %p818 = pneg %p238
        %p819 = pneg %p235
        %p820 = pneg %p259
        %p821 = pneg %p256
        %p822 = pneg %p280
        %p823 = pneg %p277
        %p824 = pneg %p301
        %p825 = pneg %p298
        %p826 = pneg %p322
        %p827 = pneg %p319
        %p828 = pneg %p343
        %p829 = pneg %p340
        %p830 = pneg %p364
        %p831 = pneg %p361
        %p832 = pneg %p385
        %p833 = pneg %p382
        %p834 = pneg %p406
        %p835 = pneg %p403
        %p836 = pneg %p427
        %p837 = pneg %p424
        %p838 = pneg %p448
        %p839 = pneg %p445
        %p840 = pneg %p469
        %p841 = pneg %p466
        %p842 = pneg %p497
        %p843 = pneg %p494
        %s844 = sand.u32 %s484, 1
        %s845 = scalar_lea.sflag [#allocation7], %s844
        %s846 = sand.u32 %s484, 1
        %s847 = smul.addr %s846, 8
        %s848 = scalar_lea.vmem [#allocation23], %s847
        %p849 = pneg %p525
        %p850 = pneg %p522
        %s851 = sand.u32 %s512, 1
        %s852 = scalar_lea.sflag [#allocation25], %s851
        %s853 = sand.u32 %s512, 1
        %s854 = smul.addr %s853, 16
        %s855 = scalar_lea.vmem [#allocation24], %s854
        %p856 = scmp.lt.s32.totalorder %s48, 1
        %s857 = scalar_select %p856, %s48, 1
        %s858 = smul.addr %s857, 8
        %s859 = scalar_lea.vmem %s0, %s858
        %p860 = scmp.lt.s32.totalorder %s48, 1
        %s861 = scalar_select %p860, %s48, 1
        %p862 = scmp.lt.s32.totalorder %s49, 0
        %s863 = scalar_select %p862, %s49, 0
        %s864 = sadd.s32 %s863, %s861
        %s865 = smul.addr %s864, 8
        %s866 = scalar_lea.vmem %s1, %s865
        %p867 = scmp.lt.s32.totalorder %s48, 1
        %s868 = scalar_select %p867, %s48, 1
        %p869 = scmp.lt.s32.totalorder %s49, 0
        %s870 = scalar_select %p869, %s49, 0
        %s871 = sadd.s32 %s870, %s868
        %s872 = smul.addr %s871, 8
        %s873 = scalar_lea.vmem %s2, %s872
        %v875 = vld [vmem:[#allocation5] sm:$0x1]
        %v876 = vld [vmem:[#allocation8] sm:$0x1]
        %p877 = scmp.eq.s32.totalorder %s49, 0
        // Predicated region
        $region141: #{tpu_custom_call.1} parent=95 // pred_check
          %p878 = pneg %p877
        $region142: #{tpu_custom_call.1} parent=95 // pred_check_branch
          %880 = sbr.rel (%p878) target = $region144
        $region143: #{tpu_custom_call.1} parent=95 // pred_region
          %v881 = vld [vmem:[%s859] sm:$0xff]
          %vm882 = vcmask 261120
          %v883 = vsel %vm882, %v881, 0.0
          %884 = vadd.xlane.f32.xlu0 %v883
          %v885 = vpop.xlane.xlu0 %884
          %v886 = vrcp.pop 32.0
          %v887 = vmul.f32 32.0, %v886
          %v888 = vsub.f32 1.0, %v887
          %v889 = vmul.f32 %v886, %v888
          %v890 = vadd.f32 %v886, %v889
          %vm891 = vweird.f32 %v886
          %v892 = vsel %vm891, %v886, %v890
          %v893 = vmul.f32 %v885, %v892
          %v894 = vsub.f32 %v881, %v893
          %v895 = vmul.f32 %v894, %v894
          %v896 = vsel %vm882, %v895, 0.0
          %897 = vadd.xlane.f32.xlu0 %v896
          %v898 = vpop.xlane.xlu0 %897
          %v899 = vmul.f32 %v898, %v892
          %v900 = vadd.f32 %v899, 1e-05
          %v901 = vrsqrt.pop %v900
          %v902 = vmul.f32 %v901, %v900
          %v903 = vmul.f32 %v902, %v901
          %v904 = vmul.f32 0.5, %v903
          %v905 = vsub.f32 1.5, %v904
          %v906 = vmul.f32 %v901, %v905
          %vm907 = vweird.f32 %v900
          %vm908 = vweird.f32 %v901
          %vm909 = vmor %vm907, %vm908
          %v910 = vsel %vm909, %v901, %v906
          %v911 = vmul.f32 %v894, %v910
          %v913 = vperm.slane %v875, 0
          %v915 = vmul.f32 %v911, %v913
          %v917 = vperm.slane %v876, 0
          %v919 = vadd.f32 %v915, %v917
          %v920 = vpack.c.bf16 %v919, %v919
          %v921 = vld [vmem:[%s7] sm:$0xf]
          %v922 = vld [vmem:[%s7 + $0x4] sm:$0xf]
          %v923 = vld [vmem:[%s7 + $0x8] sm:$0xf]
          %v924 = vld [vmem:[%s7 + $0xc] sm:$0xf]
          %v925 = vld [vmem:[#allocation11] sm:$0x1]
          %v927 = vperm.slane %v925, 0
          %v933 = vunpack.c.l.b16 %v921
          %v934 = vunpack.c.l.b16 %v922
          %v935 = vunpack.c.l.b16 %v923
          %v936 = vunpack.c.l.b16 %v924
          %v937 = vpack.c.b16 %v934, %v933
          %v938 = vpack.c.b16 %v936, %v935
          %v942 = vsel %vm882, %v920, 0
          %944 = vmatpush.bf16.msra.mxu0 0
          %945 = vmatpush.bf16.msra.mxu0 0
          %946 = vmatpush.bf16.msra.mxu0 0
          %947 = vmatpush.bf16.msra.mxu0 0
          %948 = vmatpush.bf16.msra.mxu0 0
          %949 = vmatpush.bf16.msra.mxu0 0
          %950 = vmatpush.bf16.msra.mxu0 %v938
          %951 = vmatpush.bf16.msra.mxu0 %v937
          %952 = vmatmul.bf16.gmra.mxu0 %v942
          %v953 = vpop.f32.mrf.mxu0
          %v954 = vadd.f32 %v927, %v953
          %v955 = vpop.f32.mrf.mxu0
          %956 = vdwg.mxu0
          %v957 = vpack.c.bf16 %v954, %v954
          %vm958 = vcmask 257024
          %959 = vst.msk [vmem:[#allocation2] sm:$0xf] %vm958, %v957
          %v960 = vld [vmem:[#allocation13] sm:$0xf]
          %v961 = vld [vmem:[#allocation13 + $0x4] sm:$0xf]
          %v962 = vld [vmem:[#allocation13 + $0x8] sm:$0xf]
          %v963 = vld [vmem:[#allocation13 + $0xc] sm:$0xf]
          %v964 = vld [vmem:[#allocation14] sm:$0x1]
          %v966 = vperm.slane %v964, 0
          %v972 = vunpack.c.l.b16 %v960
          %v973 = vunpack.c.l.b16 %v961
          %v974 = vunpack.c.l.b16 %v962
          %v975 = vunpack.c.l.b16 %v963
          %v976 = vpack.c.b16 %v973, %v972
          %v977 = vpack.c.b16 %v975, %v974
          %980 = vmatpush.bf16.msra.mxu0 0
          %981 = vmatpush.bf16.msra.mxu0 0
          %982 = vmatpush.bf16.msra.mxu0 0
          %983 = vmatpush.bf16.msra.mxu0 0
          %984 = vmatpush.bf16.msra.mxu0 0
          %985 = vmatpush.bf16.msra.mxu0 0
          %986 = vmatpush.bf16.msra.mxu0 %v977
          %987 = vmatpush.bf16.msra.mxu0 %v976
          %988 = vmatmul.bf16.gmra.mxu0 %v942
          %v989 = vpop.f32.mrf.mxu0
          %v990 = vadd.f32 %v966, %v989
          %v991 = vpop.f32.mrf.mxu0
          %992 = vdwg.mxu0
          %v993 = vpack.c.bf16 %v990, %v990
          %994 = vst.msk [vmem:[#allocation3] sm:$0xf] %vm958, %v993
        $region144: #{tpu_custom_call.1} parent=95 // pred_fallthru
          _
        %s995 = smul.u32 %s49, 8
        %s996 = scalar_lea.vmem %s859, %s995
        %v997 = vld [vmem:[%s996] sm:$0xff]
        %v998 = vld [vmem:[%s866] sm:$0xff]
        %v999 = vld [vmem:[%s873] sm:$0xff]
        %vm1000 = vcmask 261120
        %v1001 = vsel %vm1000, %v997, 0.0
        %1002 = vadd.xlane.f32.xlu0 %v1001
        %v1003 = vpop.xlane.xlu0 %1002
        %v1004 = vrcp.pop 32.0
        %v1005 = vmul.f32 32.0, %v1004
        %v1006 = vsub.f32 1.0, %v1005
        %v1007 = vmul.f32 %v1004, %v1006
        %v1008 = vadd.f32 %v1004, %v1007
        %vm1009 = vweird.f32 %v1004
        %v1010 = vsel %vm1009, %v1004, %v1008
        %v1011 = vmul.f32 %v1003, %v1010
        %v1012 = vsub.f32 %v997, %v1011
        %v1013 = vmul.f32 %v1012, %v1012
        %v1014 = vsel %vm1000, %v1013, 0.0
        %1015 = vadd.xlane.f32.xlu0 %v1014
        %v1016 = vpop.xlane.xlu0 %1015
        %v1017 = vmul.f32 %v1016, %v1010
        %v1018 = vadd.f32 %v1017, 1e-05
        %v1019 = vrsqrt.pop %v1018
        %v1020 = vmul.f32 %v1019, %v1018
        %v1021 = vmul.f32 %v1020, %v1019
        %v1022 = vmul.f32 0.5, %v1021
        %v1023 = vsub.f32 1.5, %v1022
        %v1024 = vmul.f32 %v1019, %v1023
        %vm1025 = vweird.f32 %v1018
        %vm1026 = vweird.f32 %v1019
        %vm1027 = vmor %vm1025, %vm1026
        %v1028 = vsel %vm1027, %v1019, %v1024
        %v1029 = vmul.f32 %v1012, %v1028
        %v1031 = vperm.slane %v875, 0
        %v1033 = vmul.f32 %v1029, %v1031
        %v1035 = vperm.slane %v876, 0
        %v1037 = vadd.f32 %v1033, %v1035
        %v1038 = vpack.c.bf16 %v1037, %v1037
        %v1039 = vld [vmem:[%s5] sm:$0xf]
        %v1040 = vld [vmem:[%s5 + $0x4] sm:$0xf]
        %v1041 = vld [vmem:[%s5 + $0x8] sm:$0xf]
        %v1042 = vld [vmem:[%s5 + $0xc] sm:$0xf]
        %v1043 = vld [vmem:[#allocation10] sm:$0x1]
        %v1045 = vperm.slane %v1043, 0
        %v1051 = vunpack.c.l.b16 %v1039
        %v1052 = vunpack.c.l.b16 %v1040
        %v1053 = vunpack.c.l.b16 %v1041
        %v1054 = vunpack.c.l.b16 %v1042
        %v1055 = vpack.c.b16 %v1052, %v1051
        %v1056 = vpack.c.b16 %v1054, %v1053
        %v1060 = vsel %vm1000, %v1038, 0
        %1062 = vmatpush.bf16.msra.mxu0 0
        %1063 = vmatpush.bf16.msra.mxu0 0
        %1064 = vmatpush.bf16.msra.mxu0 0
        %1065 = vmatpush.bf16.msra.mxu0 0
        %1066 = vmatpush.bf16.msra.mxu0 0
        %1067 = vmatpush.bf16.msra.mxu0 0
        %1068 = vmatpush.bf16.msra.mxu0 %v1056
        %1069 = vmatpush.bf16.msra.mxu0 %v1055
        %1070 = vmatmul.bf16.gmra.mxu0 %v1060
        %v1071 = vpop.f32.mrf.mxu0
        %v1072 = vadd.f32 %v1045, %v1071
        %v1073 = vpop.f32.mrf.mxu0
        %1074 = vdwg.mxu0
        %v1075 = vmul.f32 %v1072, 0.35355338
        %v1076 = vpack.c.bf16 %v1075, %v1075
        %v1077 = vld [vmem:[#allocation2] sm:$0xf]
        %v1078 = vld [vmem:[#allocation3] sm:$0xf]
        %vm1079 = vcmask 64512
        %v1081 = vsel %vm1079, %v1076, 0
        %v1084 = vsel %vm1079, %v1077, 0
        %1086 = vmatpush.bf16.xpose.msra.mxu0 0
        %1087 = vmatpush.bf16.xpose.msra.mxu0 0
        %1088 = vmatpush.bf16.xpose.msra.mxu0 0
        %1089 = vmatpush.bf16.xpose.msra.mxu0 0
        %1090 = vmatpush.bf16.xpose.msra.mxu0 0
        %1091 = vmatpush.bf16.xpose.msra.mxu0 0
        %1092 = vmatpush.bf16.xpose.msra.mxu0 0
        %1093 = vmatpush.bf16.xpose.msra.mxu0 %v1084
        %1094 = vmatmul.bf16.gmra.mxu0 %v1081
        %v1095 = vpop.f32.mrf.mxu0
        %v1096 = vadd.f32 %v998, %v1095
        %v1097 = vpop.f32.mrf.mxu0
        %1098 = vdwg.mxu0
        %v1099 = vsel %vm1079, %v1096, -inf
        %1100 = vmax.xlane.f32.xlu0 %v1099
        %v1101 = vpop.xlane.xlu0 %1100
        %v1102 = vsub.f32 %v1096, %v1101
        %v1103 = vmul.f32 %v1102, 1.442695
        %v1104 = vpow.pop %v1103
        %v1105 = vsel %vm1079, %v1104, 0.0
        %1106 = vadd.xlane.f32.xlu0 %v1105
        %v1107 = vpop.xlane.xlu0 %1106
        %v1108 = vrcp.pop %v1107
        %v1109 = vmul.f32 %v1104, %v1108
        %v1110 = vpack.c.bf16 %v1109, %v1109
        %vm1111 = vcmask 60416
        %1112 = vst.msk [vmem:[%s855] sm:$0xf] %vm1111, %v1110
        %v1114 = vsel %vm1079, %v1110, 0
        %vm1116 = vcmask 1043456
        %v1118 = vsel %vm1116, %v1078, 0
        %1120 = vmatpush.bf16.msra.mxu0 0
        %1121 = vmatpush.bf16.msra.mxu0 0
        %1122 = vmatpush.bf16.msra.mxu0 0
        %1123 = vmatpush.bf16.msra.mxu0 0
        %1124 = vmatpush.bf16.msra.mxu0 0
        %1125 = vmatpush.bf16.msra.mxu0 0
        %1126 = vmatpush.bf16.msra.mxu0 0
        %1127 = vmatpush.bf16.msra.mxu0 %v1118
        %1128 = vmatmul.bf16.gmra.mxu0 %v1114
        %v1129 = vpop.f32.mrf.mxu0
        %v1130 = vadd.f32 0.0, %v1129
        %v1131 = vpop.f32.mrf.mxu0
        %1132 = vdwg.mxu0
        %v1133 = vpack.c.bf16 %v1130, %v1130
        %1134 = vst.msk [vmem:[#allocation4] sm:$0xf] %vm1111, %v1133
        %v1135 = vld [vmem:[#allocation2] sm:$0xf]
        %v1136 = vld [vmem:[#allocation3] sm:$0xf]
        %v1138 = vunpack.c.l.b16 %v1076
        %v1139 = vpack.c.b16 %v1138, %v1138
        %1140 = vrot.lane.b32.xlu0 %v1139, 120
        %v1141 = vpop.permute.xlu0 %1140
        %v1143 = vunpack.c.l.b16 %v1135
        %v1144 = vpack.c.b16 %v1143, %v1143
        %1145 = vrot.lane.b32.xlu0 %v1144, 120
        %v1146 = vpop.permute.xlu0 %1145
        %v1148 = vsel %vm1079, %v1141, 0
        %v1151 = vsel %vm1079, %v1146, 0
        %1153 = vmatpush.bf16.xpose.msra.mxu0 0
        %1154 = vmatpush.bf16.xpose.msra.mxu0 0
        %1155 = vmatpush.bf16.xpose.msra.mxu0 0
        %1156 = vmatpush.bf16.xpose.msra.mxu0 0
        %1157 = vmatpush.bf16.xpose.msra.mxu0 0
        %1158 = vmatpush.bf16.xpose.msra.mxu0 0
        %1159 = vmatpush.bf16.xpose.msra.mxu0 0
        %1160 = vmatpush.bf16.xpose.msra.mxu0 %v1151
        %1161 = vmatmul.bf16.gmra.mxu0 %v1148
        %v1162 = vpop.f32.mrf.mxu0
        %v1163 = vadd.f32 %v998, %v1162
        %v1164 = vpop.f32.mrf.mxu0
        %1165 = vdwg.mxu0
        %v1166 = vsel %vm1079, %v1163, -inf
        %1167 = vmax.xlane.f32.xlu0 %v1166
        %v1168 = vpop.xlane.xlu0 %1167
        %v1169 = vsub.f32 %v1163, %v1168
        %v1170 = vmul.f32 %v1169, 1.442695
        %v1171 = vpow.pop %v1170
        %v1172 = vsel %vm1079, %v1171, 0.0
        %1173 = vadd.xlane.f32.xlu0 %v1172
        %v1174 = vpop.xlane.xlu0 %1173
        %v1175 = vrcp.pop %v1174
        %v1176 = vmul.f32 %v1171, %v1175
        %v1177 = vpack.c.bf16 %v1176, %v1176
        %s1178 = scalar_lea.vmem %s855, 4 [#allocation24]
        %1179 = vst.msk [vmem:[%s1178] sm:$0xf] %vm1111, %v1177
        %v1181 = vunpack.c.l.b16 %v1136
        %v1182 = vpack.c.b16 %v1181, %v1181
        %1183 = vrot.lane.b32.xlu0 %v1182, 120
        %v1184 = vpop.permute.xlu0 %1183
        %v1186 = vsel %vm1079, %v1177, 0
        %v1189 = vsel %vm1116, %v1184, 0
        %1191 = vmatpush.bf16.msra.mxu0 0
        %1192 = vmatpush.bf16.msra.mxu0 0
        %1193 = vmatpush.bf16.msra.mxu0 0
        %1194 = vmatpush.bf16.msra.mxu0 0
        %1195 = vmatpush.bf16.msra.mxu0 0
        %1196 = vmatpush.bf16.msra.mxu0 0
        %1197 = vmatpush.bf16.msra.mxu0 0
        %1198 = vmatpush.bf16.msra.mxu0 %v1189
        %1199 = vmatmul.bf16.gmra.mxu0 %v1186
        %v1200 = vpop.f32.mrf.mxu0
        %v1201 = vadd.f32 0.0, %v1200
        %v1202 = vpop.f32.mrf.mxu0
        %1203 = vdwg.mxu0
        %v1204 = vpack.c.bf16 %v1201, %v1201
        %1206 = vrot.lane.b32.xlu0 %v1204, 8
        %v1207 = vpop.permute.xlu0 %1206
        %vm1209 = vcmask 126016
        %1210 = vst.msk [vmem:[#allocation4] sm:$0xf] %vm1209, %v1207
        %v1211 = vld [vmem:[#allocation2] sm:$0xf]
        %v1212 = vld [vmem:[#allocation3] sm:$0xf]
        %1213 = vrot.lane.b32.xlu0 %v1139, 112
        %v1214 = vpop.permute.xlu0 %1213
        %v1216 = vunpack.c.l.b16 %v1211
        %v1217 = vpack.c.b16 %v1216, %v1216
        %1218 = vrot.lane.b32.xlu0 %v1217, 112
        %v1219 = vpop.permute.xlu0 %1218
        %v1221 = vsel %vm1079, %v1214, 0
        %v1224 = vsel %vm1079, %v1219, 0
        %1226 = vmatpush.bf16.xpose.msra.mxu0 0
        %1227 = vmatpush.bf16.xpose.msra.mxu0 0
        %1228 = vmatpush.bf16.xpose.msra.mxu0 0
        %1229 = vmatpush.bf16.xpose.msra.mxu0 0
        %1230 = vmatpush.bf16.xpose.msra.mxu0 0
        %1231 = vmatpush.bf16.xpose.msra.mxu0 0
        %1232 = vmatpush.bf16.xpose.msra.mxu0 0
        %1233 = vmatpush.bf16.xpose.msra.mxu0 %v1224
        %1234 = vmatmul.bf16.gmra.mxu0 %v1221
        %v1235 = vpop.f32.mrf.mxu0
        %v1236 = vadd.f32 %v998, %v1235
        %v1237 = vpop.f32.mrf.mxu0
        %1238 = vdwg.mxu0
        %v1239 = vsel %vm1079, %v1236, -inf
        %1240 = vmax.xlane.f32.xlu0 %v1239
        %v1241 = vpop.xlane.xlu0 %1240
        %v1242 = vsub.f32 %v1236, %v1241
        %v1243 = vmul.f32 %v1242, 1.442695
        %v1244 = vpow.pop %v1243
        %v1245 = vsel %vm1079, %v1244, 0.0
        %1246 = vadd.xlane.f32.xlu0 %v1245
        %v1247 = vpop.xlane.xlu0 %1246
        %v1248 = vrcp.pop %v1247
        %v1249 = vmul.f32 %v1244, %v1248
        %v1250 = vpack.c.bf16 %v1249, %v1249
        %s1251 = scalar_lea.vmem %s855, 8 [#allocation24]
        %1252 = vst.msk [vmem:[%s1251] sm:$0xf] %vm1111, %v1250
        %v1254 = vunpack.c.l.b16 %v1212
        %v1255 = vpack.c.b16 %v1254, %v1254
        %1256 = vrot.lane.b32.xlu0 %v1255, 112
        %v1257 = vpop.permute.xlu0 %1256
        %v1259 = vsel %vm1079, %v1250, 0
        %v1262 = vsel %vm1116, %v1257, 0
        %1264 = vmatpush.bf16.msra.mxu0 0
        %1265 = vmatpush.bf16.msra.mxu0 0
        %1266 = vmatpush.bf16.msra.mxu0 0
        %1267 = vmatpush.bf16.msra.mxu0 0
        %1268 = vmatpush.bf16.msra.mxu0 0
        %1269 = vmatpush.bf16.msra.mxu0 0
        %1270 = vmatpush.bf16.msra.mxu0 0
        %1271 = vmatpush.bf16.msra.mxu0 %v1262
        %1272 = vmatmul.bf16.gmra.mxu0 %v1259
        %v1273 = vpop.f32.mrf.mxu0
        %v1274 = vadd.f32 0.0, %v1273
        %v1275 = vpop.f32.mrf.mxu0
        %1276 = vdwg.mxu0
        %v1277 = vpack.c.bf16 %v1274, %v1274
        %1279 = vrot.lane.b32.xlu0 %v1277, 16
        %v1280 = vpop.permute.xlu0 %1279
        %vm1282 = vcmask 191616
        %1283 = vst.msk [vmem:[#allocation4] sm:$0xf] %vm1282, %v1280
        %v1284 = vld [vmem:[#allocation2] sm:$0xf]
        %v1285 = vld [vmem:[#allocation3] sm:$0xf]
        %1286 = vrot.lane.b32.xlu0 %v1139, 104
        %v1287 = vpop.permute.xlu0 %1286
        %v1289 = vunpack.c.l.b16 %v1284
        %v1290 = vpack.c.b16 %v1289, %v1289
        %1291 = vrot.lane.b32.xlu0 %v1290, 104
        %v1292 = vpop.permute.xlu0 %1291
        %v1294 = vsel %vm1079, %v1287, 0
        %v1297 = vsel %vm1079, %v1292, 0
        %1299 = vmatpush.bf16.xpose.msra.mxu0 0
        %1300 = vmatpush.bf16.xpose.msra.mxu0 0
        %1301 = vmatpush.bf16.xpose.msra.mxu0 0
        %1302 = vmatpush.bf16.xpose.msra.mxu0 0
        %1303 = vmatpush.bf16.xpose.msra.mxu0 0
        %1304 = vmatpush.bf16.xpose.msra.mxu0 0
        %1305 = vmatpush.bf16.xpose.msra.mxu0 0
        %1306 = vmatpush.bf16.xpose.msra.mxu0 %v1297
        %1307 = vmatmul.bf16.gmra.mxu0 %v1294
        %v1308 = vpop.f32.mrf.mxu0
        %v1309 = vadd.f32 %v998, %v1308
        %v1310 = vpop.f32.mrf.mxu0
        %1311 = vdwg.mxu0
        %v1312 = vsel %vm1079, %v1309, -inf
        %1313 = vmax.xlane.f32.xlu0 %v1312
        %v1314 = vpop.xlane.xlu0 %1313
        %v1315 = vsub.f32 %v1309, %v1314
        %v1316 = vmul.f32 %v1315, 1.442695
        %v1317 = vpow.pop %v1316
        %v1318 = vsel %vm1079, %v1317, 0.0
        %1319 = vadd.xlane.f32.xlu0 %v1318
        %v1320 = vpop.xlane.xlu0 %1319
        %v1321 = vrcp.pop %v1320
        %v1322 = vmul.f32 %v1317, %v1321
        %v1323 = vpack.c.bf16 %v1322, %v1322
        %s1324 = scalar_lea.vmem %s855, 12 [#allocation24]
        %1325 = vst.msk [vmem:[%s1324] sm:$0xf] %vm1111, %v1323
        %v1327 = vunpack.c.l.b16 %v1285
        %v1328 = vpack.c.b16 %v1327, %v1327
        %1329 = vrot.lane.b32.xlu0 %v1328, 104
        %v1330 = vpop.permute.xlu0 %1329
        %v1332 = vsel %vm1079, %v1323, 0
        %v1335 = vsel %vm1116, %v1330, 0
        %1337 = vmatpush.bf16.msra.mxu0 0
        %1338 = vmatpush.bf16.msra.mxu0 0
        %1339 = vmatpush.bf16.msra.mxu0 0
        %1340 = vmatpush.bf16.msra.mxu0 0
        %1341 = vmatpush.bf16.msra.mxu0 0
        %1342 = vmatpush.bf16.msra.mxu0 0
        %1343 = vmatpush.bf16.msra.mxu0 0
        %1344 = vmatpush.bf16.msra.mxu0 %v1335
        %1345 = vmatmul.bf16.gmra.mxu0 %v1332
        %v1346 = vpop.f32.mrf.mxu0
        %v1347 = vadd.f32 0.0, %v1346
        %v1348 = vpop.f32.mrf.mxu0
        %1349 = vdwg.mxu0
        %v1350 = vpack.c.bf16 %v1347, %v1347
        %1352 = vrot.lane.b32.xlu0 %v1350, 24
        %v1353 = vpop.permute.xlu0 %1352
        %vm1355 = vcmask 257216
        %1356 = vst.msk [vmem:[#allocation4] sm:$0xf] %vm1355, %v1353
        %v1357 = vld [vmem:[#allocation4] sm:$0xf]
        %v1358 = vld [vmem:[#allocation16] sm:$0xf]
        %v1359 = vld [vmem:[#allocation16 + $0x4] sm:$0xf]
        %v1360 = vld [vmem:[#allocation16 + $0x8] sm:$0xf]
        %v1361 = vld [vmem:[#allocation16 + $0xc] sm:$0xf]
        %v1362 = vld [vmem:[#allocation17] sm:$0x1]
        %v1364 = vperm.slane %v1362, 0
        %v1370 = vunpack.c.l.b16 %v1358
        %v1371 = vunpack.c.l.b16 %v1359
        %v1372 = vunpack.c.l.b16 %v1360
        %v1373 = vunpack.c.l.b16 %v1361
        %v1374 = vpack.c.b16 %v1371, %v1370
        %v1375 = vpack.c.b16 %v1373, %v1372
        %v1379 = vsel %vm1000, %v1357, 0
        %1381 = vmatpush.bf16.msra.mxu0 0
        %1382 = vmatpush.bf16.msra.mxu0 0
        %1383 = vmatpush.bf16.msra.mxu0 0
        %1384 = vmatpush.bf16.msra.mxu0 0
        %1385 = vmatpush.bf16.msra.mxu0 0
        %1386 = vmatpush.bf16.msra.mxu0 0
        %1387 = vmatpush.bf16.msra.mxu0 %v1375
        %1388 = vmatpush.bf16.msra.mxu0 %v1374
        %1389 = vmatmul.bf16.gmra.mxu0 %v1379
        %v1390 = vpop.f32.mrf.mxu0
        %v1391 = vadd.f32 %v1364, %v1390
        %v1392 = vpop.f32.mrf.mxu0
        %1393 = vdwg.mxu0
        %v1394 = vadd.f32 %v1391, %v997
        %1396 = vset.pattern.permute.xlu0 0
        %1397 = vperm.xlu0 %1396, %v999
        %v1398 = vpop.permute.xlu0 %1397
        %v1400 = vmul.f32 %v1394, %v1398
        %v1401 = vld [vmem:[#allocation19] sm:$0x1]
        %v1402 = vld [vmem:[#allocation20] sm:$0x1]
        %v1403 = vsel %vm1000, %v1400, 0.0
        %1404 = vadd.xlane.f32.xlu0 %v1403
        %v1405 = vpop.xlane.xlu0 %1404
        %v1406 = vmul.f32 %v1405, %v1010
        %v1407 = vsub.f32 %v1400, %v1406
        %v1408 = vmul.f32 %v1407, %v1407
        %v1409 = vsel %vm1000, %v1408, 0.0
        %1410 = vadd.xlane.f32.xlu0 %v1409
        %v1411 = vpop.xlane.xlu0 %1410
        %v1412 = vmul.f32 %v1411, %v1010
        %v1413 = vadd.f32 %v1412, 1e-05
        %v1414 = vrsqrt.pop %v1413
        %v1415 = vmul.f32 %v1414, %v1413
        %v1416 = vmul.f32 %v1415, %v1414
        %v1417 = vmul.f32 0.5, %v1416
        %v1418 = vsub.f32 1.5, %v1417
        %v1419 = vmul.f32 %v1414, %v1418
        %vm1420 = vweird.f32 %v1413
        %vm1421 = vweird.f32 %v1414
        %vm1422 = vmor %vm1420, %vm1421
        %v1423 = vsel %vm1422, %v1414, %v1419
        %v1424 = vmul.f32 %v1407, %v1423
        %v1426 = vperm.slane %v1401, 0
        %v1428 = vmul.f32 %v1424, %v1426
        %v1430 = vperm.slane %v1402, 0
        %v1432 = vadd.f32 %v1428, %v1430
        %v1433 = vpack.c.bf16 %v1432, %v1432
        %v1434 = vld [vmem:[%s16] sm:$0x1]
        %v1435 = vld [vmem:[%s18] sm:$0x1]
        %v1437 = vperm.slane %v1435, 0
        %v1439 = vadd.f32 %v1400, %v1437
        %v1440 = vld [vmem:[#allocation22] sm:$0xf]
        %v1441 = vld [vmem:[#allocation22 + $0x4] sm:$0xf]
        %v1442 = vld [vmem:[#allocation22 + $0x8] sm:$0xf]
        %v1443 = vld [vmem:[#allocation22 + $0xc] sm:$0xf]
        %v1445 = vperm.slane %v1434, 0
        %v1451 = vunpack.c.l.b16 %v1440
        %v1452 = vunpack.c.l.b16 %v1441
        %v1453 = vunpack.c.l.b16 %v1442
        %v1454 = vunpack.c.l.b16 %v1443
        %v1455 = vpack.c.b16 %v1452, %v1451
        %v1456 = vpack.c.b16 %v1454, %v1453
        %v1460 = vsel %vm1000, %v1433, 0
        %1462 = vmatpush.bf16.msra.mxu0 0
        %1463 = vmatpush.bf16.msra.mxu0 0
        %1464 = vmatpush.bf16.msra.mxu0 0
        %1465 = vmatpush.bf16.msra.mxu0 0
        %1466 = vmatpush.bf16.msra.mxu0 0
        %1467 = vmatpush.bf16.msra.mxu0 0
        %1468 = vmatpush.bf16.msra.mxu0 %v1456
        %1469 = vmatpush.bf16.msra.mxu0 %v1455
        %1470 = vmatmul.bf16.gmra.mxu0 %v1460
        %v1471 = vpop.f32.mrf.mxu0
        %v1472 = vadd.f32 %v1445, %v1471
        %v1473 = vpop.f32.mrf.mxu0
        %1474 = vdwg.mxu0
        %v1475 = vmax.f32 %v1472, 0.0
        %v1476 = vpack.c.bf16 %v1475, %v1475
        %v1477 = vld [vmem:[%s17] sm:$0xf]
        %v1478 = vld [vmem:[%s17 + $0x4] sm:$0xf]
        %v1479 = vld [vmem:[%s17 + $0x8] sm:$0xf]
        %v1480 = vld [vmem:[%s17 + $0xc] sm:$0xf]
        %v1481 = vld [vmem:[%s17 + $0x10] sm:$0xf]
        %v1482 = vld [vmem:[%s17 + $0x14] sm:$0xf]
        %v1483 = vld [vmem:[%s17 + $0x18] sm:$0xf]
        %v1484 = vld [vmem:[%s17 + $0x1c] sm:$0xf]
        %v1493 = vunpack.c.l.b16 %v1477
        %v1494 = vunpack.c.l.b16 %v1478
        %v1495 = vunpack.c.l.b16 %v1479
        %v1496 = vunpack.c.l.b16 %v1480
        %v1497 = vunpack.c.l.b16 %v1481
        %v1498 = vunpack.c.l.b16 %v1482
        %v1499 = vunpack.c.l.b16 %v1483
        %v1500 = vunpack.c.l.b16 %v1484
        %v1501 = vpack.c.b16 %v1494, %v1493
        %v1502 = vpack.c.b16 %v1496, %v1495
        %v1503 = vpack.c.b16 %v1498, %v1497
        %v1504 = vpack.c.b16 %v1500, %v1499
        %vm1509 = vcmask 523264
        %v1511 = vsel %vm1509, %v1476, 0
        %1513 = vmatpush.bf16.msra.mxu0 0
        %1514 = vmatpush.bf16.msra.mxu0 0
        %1515 = vmatpush.bf16.msra.mxu0 0
        %1516 = vmatpush.bf16.msra.mxu0 0
        %1517 = vmatpush.bf16.msra.mxu0 %v1504
        %1518 = vmatpush.bf16.msra.mxu0 %v1503
        %1519 = vmatpush.bf16.msra.mxu0 %v1502
        %1520 = vmatpush.bf16.msra.mxu0 %v1501
        %1521 = vmatmul.bf16.gmra.mxu0 %v1511
        %v1522 = vpop.f32.mrf.mxu0
        %v1523 = vadd.f32 0.0, %v1522
        %v1524 = vpop.f32.mrf.mxu0
        %1525 = vdwg.mxu0
        %v1526 = vadd.f32 %v1439, %v1523
        %v1527 = vmul.f32 %v1526, %v1398
        %1528 = vst.msk [vmem:[%s848] sm:$0xff] %vm1000, %v1527
        %s1529 = sand.u32 %s484, 1
        %s1530 = scalar_lea.sflag [#allocation7], %s1529
        %s1531 = sand.u32 %s484, 1
        %s1532 = smul.addr %s1531, 8
        %s1533 = scalar_lea.vmem [#allocation23], %s1532
        %s1534 = sand.u32 %s512, 1
        %s1535 = scalar_lea.sflag [#allocation25], %s1534
        %s1536 = sand.u32 %s512, 1
        %s1537 = smul.addr %s1536, 16
        %s1538 = scalar_lea.vmem [#allocation24], %s1537
        // Predicated region
        $region145: #{tpu_custom_call.1} parent=95 // pred_check
          %p1539 = pneg %p494
        $region146: #{tpu_custom_call.1} parent=95 // pred_check_branch
          %1541 = sbr.rel (%p1539) target = $region148
        $region147: #{tpu_custom_call.1} parent=95 // pred_region
          %1543 = vsyncadd %s1530, 0
          %s1544 = sadd.s32 %s49, %s48
          %s1545 = smul.addr %s1544, 8
          %s1546 = scalar_lea.hbm %s19, %s1545
          %s1548 = sshll.u32 %s1533, 4
          %s1549 = int_to_ptr.vmem [resolvable:$true] %s1548
          %s1550 = sshll.u32 %s1546, 4
          %s1551 = int_to_ptr.hbm [resolvable:$true] %s1550
          %1553 = dma.vmem_to_hbm [thread:$0]  %s1549, 128, %s1551, %s1530
        $region148: #{tpu_custom_call.1} parent=95 // pred_fallthru
          _
        // Predicated region
        $region149: #{tpu_custom_call.1} parent=95 // pred_check
          %p1554 = pneg %p522
        $region150: #{tpu_custom_call.1} parent=95 // pred_check_branch
          %1556 = sbr.rel (%p1554) target = $region152
        $region151: #{tpu_custom_call.1} parent=95 // pred_region
          %1558 = vsyncadd %s1535, 0
          %s1559 = smul.addr %s48, 4
          %s1560 = sadd.s32 %s49, %s1559
          %s1561 = smul.addr %s1560, 4
          %s1562 = scalar_lea.hbm %s20, %s1561
          %s1563 = sshll.u32 %s1538, 4
          %s1564 = int_to_ptr.vmem [resolvable:$true] %s1563
          %s1565 = sshll.u32 %s1562, 4
          %s1566 = int_to_ptr.hbm [resolvable:$true] %s1565
          %1571 = dma.vmem_to_hbm [thread:$0]  %s1564, 256, %s1566, %s1535, 64, 64, 4
        $region152: #{tpu_custom_call.1} parent=95 // pred_fallthru
          _
      $region96: #{tpu_custom_call.1} parent=5 // pred_fallthru
        _
      %p1572 = scmp.le.s32.totalorder 2, %s39
      // Predicated region
      $region153: #{tpu_custom_call.1} parent=5 // pred_check
        %p1573 = pneg %p1572
      $region154: #{tpu_custom_call.1} parent=5 // pred_check_branch
        %1575 = sbr.rel (%p1573) target = $region156
      $region155: #{tpu_custom_call.1} parent=5 // pred_region
        %s1576 = ssub.s32 %s39, 2
        // Predicated region
        $region157: #{tpu_custom_call.1} parent=155 // pred_check
          %p1577 = pneg %p500
        $region158: #{tpu_custom_call.1} parent=155 // pred_check_branch
          %1579 = sbr.rel (%p1577) target = $region160
        $region159: #{tpu_custom_call.1} parent=155 // pred_region
          %s1580 = sand.u32 %s485, 1
          %s1581 = scalar_lea.sflag [#allocation7], %s1580
          %s1582 = sand.u32 %s485, 1
          %s1583 = smul.addr %s1582, 8
          %s1584 = scalar_lea.vmem [#allocation23], %s1583
          %1586 = dma.done %s1581, 128
        $region160: #{tpu_custom_call.1} parent=155 // pred_fallthru
          _
        // Predicated region
        $region161: #{tpu_custom_call.1} parent=155 // pred_check
          %p1587 = pneg %p528
        $region162: #{tpu_custom_call.1} parent=155 // pred_check_branch
          %1589 = sbr.rel (%p1587) target = $region164
        $region163: #{tpu_custom_call.1} parent=155 // pred_region
          %s1590 = sand.u32 %s513, 1
          %s1591 = scalar_lea.sflag [#allocation25], %s1590
          %s1592 = sand.u32 %s513, 1
          %s1593 = smul.addr %s1592, 16
          %s1594 = scalar_lea.vmem [#allocation24], %s1593
          %1596 = dma.done %s1591, 256
        $region164: #{tpu_custom_call.1} parent=155 // pred_fallthru
          _
      $region156: #{tpu_custom_call.1} parent=5 // pred_fallthru
        _
    $region6: #{tpu_custom_call.1} parent=1 // loop_footer
      %s43 = sadd.s32 1, %s39
    $region7: #{tpu_custom_call.1} parent=1 // loop_footer_branch
      %38 = sbr.rel target = $region3
    $region8: #{tpu_custom_call.1} parent=1 // loop_exit
      _
    %1597 = vsyncpa [#allocation6], 1
    %s1598 = scalar_lea.sflag [#allocation6], 1
    %1599 = vsyncpa %s1598, 1
    %1600 = vsyncpa [#allocation9], 1
    %1601 = vsyncpa [#allocation12], 1
    %1602 = vsyncpa [#allocation15], 1
    %1603 = vsyncpa [#allocation18], 1
    %1604 = vsyncpa [#allocation21], 1
    %1605 = vsyncpa [#allocation7], 1
    %s1606 = scalar_lea.sflag [#allocation7], 1
    %1607 = vsyncpa %s1606, 1
    %1608 = vsyncpa [#allocation25], 1
    %s1609 = scalar_lea.sflag [#allocation25], 1
    %1610 = vsyncpa %s1609, 1

</llo_original>
